<compile_context>
chip_gen: v7x
topology: tpu7x:2x2x1
jax: 0.10.0
libtpu: 0.0.40
codegen_flags: <defaults>
</compile_context>

<pallas_src>
import math
import functools

import jax
import jax.numpy as jnp
from jax.experimental import pallas as pl
from jax.experimental.pallas import tpu as pltpu


# ------------------------------ kernel helpers ------------------------------

def _layernorm(x, gamma, beta, eps):
    # fp32 statistics (VPU); gamma/beta broadcast from (1, D).
    mu = jnp.mean(x, axis=-1, keepdims=True)
    var = jnp.mean(jnp.square(x - mu), axis=-1, keepdims=True)
    return (x - mu) * jax.lax.rsqrt(var + eps) * gamma + beta


# ------------------------------ fused stack kernel ------------------------------

def rev_stack_kernel(p_ref, pw_ref, pb_ref, pos_ref,
                     f_g_ref, f_b_ref, wqkv_ref, bqkv_ref, wo_ref, bo_ref,
                     g_g_ref, g_b_ref, w1_ref, b1_ref, w2_ref, b2_ref,
                     h_g_ref, h_b_ref, hw_ref, hb_ref,
                     o_ref, x1_sc, x2_sc,
                     *, num_heads, batch_tile, seq_len):
    """One grid step = (batch tile b, layer k).

    Activations are kept flat as (Bt*N, D) so QKV / out-proj / MLP matmuls use
    the full Bt*N rows as the MXU M dim.  X1/X2 stay resident in VMEM scratch
    across the depth sweep; patch embedding runs at k == 0 and the classifier
    head at the last layer, so activations never round-trip through HBM.
    """
    k = pl.program_id(1)
    Bt, N = batch_tile, seq_len

    # ---------------- patch embed + pos (first layer only) ----------------
    @pl.when(k == 0)
    def _():
        emb = jnp.dot(p_ref[...], pw_ref[...],
                      preferred_element_type=jnp.float32)          # (Bt*N, D)
        x0 = emb + pb_ref[...] + pos_ref[...]
        x1_sc[...] = x0
        x2_sc[...] = x0

    x1 = x1_sc[...]
    x2 = x2_sc[...]
    d = x2.shape[-1]
    dh = d // num_heads
    scale = 1.0 / math.sqrt(dh)

    # ---------------- F: Y1 = X1 + MHA(LN_eps=1e-6(X2)) ----------------
    xn = _layernorm(x2, f_g_ref[...], f_b_ref[...], 1e-6).astype(jnp.bfloat16)
    # Single lane-dense fused QKV projection: (Bt*N, D) @ (D, 3D).
    qkv = jnp.dot(xn, wqkv_ref[...],
                  preferred_element_type=jnp.float32) + bqkv_ref[...]

    # Per-(sample, head) attention core with plain 2D matmuls (static slices of
    # the lane dim; no in-kernel 3D/4D transposes).
    ctx_rows = []
    for bt in range(Bt):
        r0 = bt * N
        head_ctx = []
        for h in range(num_heads):
            c0 = h * dh
            q = (qkv[r0:r0 + N, c0:c0 + dh] * scale).astype(jnp.bfloat16)
            kk = qkv[r0:r0 + N, d + c0:d + c0 + dh].astype(jnp.bfloat16)
            v = qkv[r0:r0 + N, 2 * d + c0:2 * d + c0 + dh].astype(jnp.bfloat16)
            s = jnp.einsum('qe,ke->qk', q, kk,
                           preferred_element_type=jnp.float32)     # (N, N) f32
            s = s - jnp.max(s, axis=-1, keepdims=True)
            p = jnp.exp(s)
            p = p * pl.reciprocal(jnp.sum(p, axis=-1, keepdims=True), approx=True)
            head_ctx.append(jnp.dot(p.astype(jnp.bfloat16), v,
                                    preferred_element_type=jnp.float32))
        ctx_rows.append(jnp.concatenate(head_ctx, axis=-1))        # (N, D)
    ctx = jnp.concatenate(ctx_rows, axis=0).astype(jnp.bfloat16)   # (Bt*N, D)

    # Single K=D output projection (no per-head partials / H-way reduce).
    attn = jnp.dot(ctx, wo_ref[...],
                   preferred_element_type=jnp.float32) + bo_ref[...]
    y1 = x1 + attn

    # ---------------- G: Y2 = X2 + MLP(LN_eps=1e-5(Y1)) ----------------
    yn = _layernorm(y1, g_g_ref[...], g_b_ref[...], 1e-5).astype(jnp.bfloat16)
    hmid = jnp.dot(yn, w1_ref[...],
                   preferred_element_type=jnp.float32) + b1_ref[...]
    hmid = 0.5 * hmid * (1.0 + jax.lax.erf(hmid * (1.0 / math.sqrt(2.0))))  # exact GELU
    mlp = jnp.dot(hmid.astype(jnp.bfloat16), w2_ref[...],
                  preferred_element_type=jnp.float32) + b2_ref[...]
    y2 = x2 + mlp

    x1_sc[...] = y1
    x2_sc[...] = y2

    # ---------------- head epilogue (last layer only) ----------------
    @pl.when(k == pl.num_programs(1) - 1)
    def _():
        rows = []
        for bt in range(Bt):
            r0 = bt * N
            m1 = jnp.mean(y1[r0:r0 + N], axis=0, keepdims=True)    # (1, D)
            m2 = jnp.mean(y2[r0:r0 + N], axis=0, keepdims=True)    # (1, D)
            rows.append(jnp.concatenate([m1, m2], axis=-1))        # (1, 2D)
        m = jnp.concatenate(rows, axis=0)                          # (Bt, 2D)
        mn = _layernorm(m, h_g_ref[...], h_b_ref[...], 1e-5)
        logits = jnp.dot(mn.astype(jnp.bfloat16), hw_ref[...],
                         preferred_element_type=jnp.float32) + hb_ref[...]
        o_ref[...] = logits.astype(o_ref.dtype)


# ------------------------------ pallas_call wrapper ------------------------------

def rev_stack_call(patches, patch_w, patch_b, pos_tiled, st, head,
                   *, num_heads, batch_tile, seq_len):
    nb, BtN, Pk = patches.shape                  # nb = B // Bt, BtN = Bt * N
    D = patch_w.shape[1]
    depth = st["wqkv"].shape[0]
    C = head["w"].shape[1]

    def per_layer(arr):
        nd = arr.ndim - 1
        return pl.BlockSpec((None,) + arr.shape[1:],
                            lambda b, k, nd=nd: (k,) + (0,) * nd)

    def const(arr):
        nd = arr.ndim
        return pl.BlockSpec(arr.shape, lambda b, k, nd=nd: (0,) * nd)

    layer_arrays = [st["f_g"], st["f_b"], st["wqkv"], st["bqkv"], st["wo"], st["bo"],
                    st["g_g"], st["g_b"], st["w1"], st["b1"], st["w2"], st["b2"]]
    head_arrays = [head["ln_g"], head["ln_b"], head["w"], head["b"]]

    in_specs = [pl.BlockSpec((None, BtN, Pk), lambda b, k: (b, 0, 0)),  # patches
                const(patch_w), const(patch_b), const(pos_tiled)]
    in_specs += [per_layer(a) for a in layer_arrays]
    in_specs += [const(a) for a in head_arrays]

    out = pl.pallas_call(
        functools.partial(rev_stack_kernel, num_heads=num_heads,
                          batch_tile=batch_tile, seq_len=seq_len),
        out_shape=jax.ShapeDtypeStruct((nb, batch_tile, C), jnp.float32),
        grid=(nb, depth),
        in_specs=in_specs,
        out_specs=pl.BlockSpec((None, batch_tile, C), lambda b, k: (b, 0, 0)),
        scratch_shapes=[pltpu.VMEM((BtN, D), jnp.float32),   # X1 residual stream
                        pltpu.VMEM((BtN, D), jnp.float32)],  # X2 residual stream
        compiler_params=pltpu.CompilerParams(
            dimension_semantics=("parallel", "arbitrary"),
            # Above the 32 MiB scoped default (needed at real RevViT sizes for
            # the double-buffered per-layer weights), below v7x's 64 MiB cap.
            vmem_limit_bytes=48 * 1024 * 1024),
    )(patches, patch_w, patch_b, pos_tiled, *layer_arrays, *head_arrays)
    return out.reshape(nb * batch_tile, C)


# ------------------------------ model setup / forward ------------------------------

def init_params(key, *, embed_dim, n_head, depth, patch_size, image_size,
                num_classes, in_chans=3, mlp_ratio=4):
    D = embed_dim
    ph, pw = patch_size
    N = (image_size[0] // ph) * (image_size[1] // pw)
    P = in_chans * ph * pw
    Pk = ((P + 127) // 128) * 128          # pad contraction dim for MXU/lane density
    Hd = mlp_ratio * D

    keys = iter(jax.random.split(key, 16))

    def nrm(shape, dtype=jnp.float32, std=0.02):
        return (jax.random.normal(next(keys), shape, jnp.float32) * std).astype(dtype)

    # Conv2d weight in PyTorch layout (D, Cin, ph, pw), folded to a (P, D) matmul,
    # zero-padded along the contraction dim to Pk.
    w_conv = nrm((D, in_chans, ph, pw))
    w_flat = jnp.transpose(w_conv.reshape(D, P), (1, 0))
    patch_w = jnp.zeros((Pk, D), jnp.float32).at[:P, :].set(w_flat)

    params = dict(
        patch_w=patch_w.astype(jnp.bfloat16),
        patch_b=jnp.zeros((1, D), jnp.float32),
        # PyTorch inits pos_embeddings to zeros; small random values keep the
        # synthetic benchmark non-degenerate.
        pos=nrm((N, D)),
        stacked=dict(
            f_g=jnp.ones((depth, 1, D), jnp.float32),
            f_b=jnp.zeros((depth, 1, D), jnp.float32),
            # Fused QKV weight (D, 3D) -> one lane-dense matmul per layer.
            wqkv=nrm((depth, D, 3 * D), jnp.bfloat16),
            bqkv=jnp.zeros((depth, 1, 3 * D), jnp.float32),
            # Output projection kept as a single (D, D) matmul.
            wo=nrm((depth, D, D), jnp.bfloat16),
            bo=jnp.zeros((depth, 1, D), jnp.float32),
            g_g=jnp.ones((depth, 1, D), jnp.float32),
            g_b=jnp.zeros((depth, 1, D), jnp.float32),
            w1=nrm((depth, D, Hd), jnp.bfloat16),
            b1=jnp.zeros((depth, 1, Hd), jnp.float32),
            w2=nrm((depth, Hd, D), jnp.bfloat16),
            b2=jnp.zeros((depth, 1, D), jnp.float32),
        ),
        head=dict(
            ln_g=jnp.ones((1, 2 * D), jnp.float32),
            ln_b=jnp.zeros((1, 2 * D), jnp.float32),
            w=nrm((2 * D, num_classes), jnp.bfloat16),
            b=jnp.zeros((1, num_classes), jnp.float32),
        ),
    )
    return params


def revvit_forward(x_nchw, params, *, patch_size, n_head, batch_tile=None):
    B, Cin, Himg, Wimg = x_nchw.shape
    ph, pw = patch_size
    Hp, Wp = Himg // ph, Wimg // pw
    N = Hp * Wp
    P = Cin * ph * pw
    Pk = params["patch_w"].shape[0]

    # Batch tile: amortizes per-layer weight DMA over Bt samples.  Capped at 4
    # so the activation scratch + streamed weights also fit v7x's 64 MiB VMEM.
    if batch_tile is None:
        batch_tile = next(bt for bt in (4, 2, 1) if B % bt == 0)
    assert B % batch_tile == 0
    Bt = batch_tile

    # Unfold non-overlapping patches; contraction order (c, u, v) matches Conv2d.
    p = x_nchw.reshape(B, Cin, Hp, ph, Wp, pw)
    p = jnp.transpose(p, (0, 2, 4, 1, 3, 5)).reshape(B, N, P)
    if Pk > P:
        p = jnp.pad(p, ((0, 0), (0, 0), (0, Pk - P)))
    p = p.astype(jnp.bfloat16)                 # pre-cast: halves patch DMA bytes
    p = p.reshape(B // Bt, Bt * N, Pk)         # one (Bt*N, Pk) slab per grid step

    # Positional embedding pre-tiled over the batch tile (constant across grid).
    pos_tiled = jnp.tile(params["pos"], (Bt, 1))

    # num_registers = 0 (default) -> no register tokens; drop_path_rate = 0 -> identity.
    return rev_stack_call(p, params["patch_w"], params["patch_b"], pos_tiled,
                          params["stacked"], params["head"],
                          num_heads=n_head, batch_tile=Bt, seq_len=N)


if __name__ == "__main__":
    B, CIN, H, W = 2, 3, 16, 16
    EMBED_DIM, N_HEAD, DEPTH, NUM_CLASSES = 32, 4, 2, 10
    PATCH = (2, 2)

    key = jax.random.PRNGKey(0)
    k_x, k_p = jax.random.split(key)
    x = jax.random.normal(k_x, (B, CIN, H, W), jnp.float32)
    params = init_params(k_p, embed_dim=EMBED_DIM, n_head=N_HEAD, depth=DEPTH,
                         patch_size=PATCH, image_size=(H, W),
                         num_classes=NUM_CLASSES)

    out = revvit_forward(x, params, patch_size=PATCH, n_head=N_HEAD)
    out = jax.block_until_ready(out)

    assert out.shape == (B, NUM_CLASSES), out.shape
    assert bool(jnp.all(jnp.isfinite(out)))
    print("KERNEL_OK")
</pallas_src>

<mosaic_0001>
module attributes {stable_mosaic.version = 11 : i64} {
  func.func @rev_stack_kernel(%arg0: i32, %arg1: i32, %arg2: memref<1x128x128xbf16, #tpu.memory_space<vmem>>, %arg3: memref<128x32xbf16, #tpu.memory_space<vmem>>, %arg4: memref<1x32xf32, #tpu.memory_space<vmem>>, %arg5: memref<128x32xf32, #tpu.memory_space<vmem>>, %arg6: memref<1x1x32xf32, #tpu.memory_space<vmem>>, %arg7: memref<1x1x32xf32, #tpu.memory_space<vmem>>, %arg8: memref<1x32x96xbf16, #tpu.memory_space<vmem>>, %arg9: memref<1x1x96xf32, #tpu.memory_space<vmem>>, %arg10: memref<1x32x32xbf16, #tpu.memory_space<vmem>>, %arg11: memref<1x1x32xf32, #tpu.memory_space<vmem>>, %arg12: memref<1x1x32xf32, #tpu.memory_space<vmem>>, %arg13: memref<1x1x32xf32, #tpu.memory_space<vmem>>, %arg14: memref<1x32x128xbf16, #tpu.memory_space<vmem>>, %arg15: memref<1x1x128xf32, #tpu.memory_space<vmem>>, %arg16: memref<1x128x32xbf16, #tpu.memory_space<vmem>>, %arg17: memref<1x1x32xf32, #tpu.memory_space<vmem>>, %arg18: memref<1x64xf32, #tpu.memory_space<vmem>>, %arg19: memref<1x64xf32, #tpu.memory_space<vmem>>, %arg20: memref<64x10xbf16, #tpu.memory_space<vmem>>, %arg21: memref<1x10xf32, #tpu.memory_space<vmem>>, %arg22: memref<1x2x10xf32, #tpu.memory_space<vmem>>, %arg23: memref<128x32xf32, #tpu.memory_space<vmem>>, %arg24: memref<128x32xf32, #tpu.memory_space<vmem>>) attributes {dimension_semantics = [#tpu.dimension_semantics<parallel>, #tpu.dimension_semantics<arbitrary>], iteration_bounds = array<i64: 1, 2>, scalar_prefetch = 0 : i64, scratch_operands = 2 : i64, tpu.core_type = #tpu.core_type<tc>, window_params = [{transform_indices = @transform_0, window_bounds = array<i64: 1, 128, 128>}, {pipeline_mode = #tpu.pipeline_mode<synchronous>, transform_indices = @transform_1, window_bounds = array<i64: 128, 32>}, {pipeline_mode = #tpu.pipeline_mode<synchronous>, transform_indices = @transform_2, window_bounds = array<i64: 1, 32>}, {pipeline_mode = #tpu.pipeline_mode<synchronous>, transform_indices = @transform_3, window_bounds = array<i64: 128, 32>}, {transform_indices = @transform_4, window_bounds = array<i64: 1, 1, 32>}, {transform_indices = @transform_5, window_bounds = array<i64: 1, 1, 32>}, {transform_indices = @transform_6, window_bounds = array<i64: 1, 32, 96>}, {transform_indices = @transform_7, window_bounds = array<i64: 1, 1, 96>}, {transform_indices = @transform_8, window_bounds = array<i64: 1, 32, 32>}, {transform_indices = @transform_9, window_bounds = array<i64: 1, 1, 32>}, {transform_indices = @transform_10, window_bounds = array<i64: 1, 1, 32>}, {transform_indices = @transform_11, window_bounds = array<i64: 1, 1, 32>}, {transform_indices = @transform_12, window_bounds = array<i64: 1, 32, 128>}, {transform_indices = @transform_13, window_bounds = array<i64: 1, 1, 128>}, {transform_indices = @transform_14, window_bounds = array<i64: 1, 128, 32>}, {transform_indices = @transform_15, window_bounds = array<i64: 1, 1, 32>}, {pipeline_mode = #tpu.pipeline_mode<synchronous>, transform_indices = @transform_16, window_bounds = array<i64: 1, 64>}, {pipeline_mode = #tpu.pipeline_mode<synchronous>, transform_indices = @transform_17, window_bounds = array<i64: 1, 64>}, {pipeline_mode = #tpu.pipeline_mode<synchronous>, transform_indices = @transform_18, window_bounds = array<i64: 64, 10>}, {pipeline_mode = #tpu.pipeline_mode<synchronous>, transform_indices = @transform_19, window_bounds = array<i64: 1, 10>}, {transform_indices = @transform_20, window_bounds = array<i64: 1, 2, 10>}]} {
    %c0_i32 = arith.constant 0 : i32
    %0 = arith.cmpi eq, %arg1, %c0_i32 : i32
    %1 = arith.extui %0 : i1 to i32
    %c0_i32_0 = arith.constant 0 : i32
    %2 = arith.cmpi ne, %1, %c0_i32_0 : i32
    scf.if %2 {
      %c0_101 = arith.constant 0 : index
      %c0_102 = arith.constant 0 : index
      %c0_103 = arith.constant 0 : index
      %275 = vector.load %arg2[%c0_101, %c0_102, %c0_103] : memref<1x128x128xbf16, #tpu.memory_space<vmem>>, vector<1x128x128xbf16>
      %276 = vector.shape_cast %275 : vector<1x128x128xbf16> to vector<128x128xbf16>
      %c0_104 = arith.constant 0 : index
      %c0_105 = arith.constant 0 : index
      %277 = vector.load %arg3[%c0_104, %c0_105] : memref<128x32xbf16, #tpu.memory_space<vmem>>, vector<128x32xbf16>
      %cst_106 = arith.constant dense<0.000000e+00> : vector<128x32xf32>
      %278 = tpu.matmul %276, %277, %cst_106 {dimension_numbers = #tpu.dot_dimension_numbers<[1], [0], [0], [1], [0, 0, 1, 1], [], []>} : vector<128x128xbf16>, vector<128x32xbf16>, vector<128x32xf32> -> vector<128x32xf32>
      %c0_107 = arith.constant 0 : index
      %c0_108 = arith.constant 0 : index
      %279 = vector.load %arg4[%c0_107, %c0_108] : memref<1x32xf32, #tpu.memory_space<vmem>>, vector<1x32xf32>
      %280 = vector.broadcast %279 : vector<1x32xf32> to vector<128x32xf32>
      %281 = arith.addf %278, %280 : vector<128x32xf32>
      %c0_109 = arith.constant 0 : index
      %c0_110 = arith.constant 0 : index
      %282 = vector.load %arg5[%c0_109, %c0_110] : memref<128x32xf32, #tpu.memory_space<vmem>>, vector<128x32xf32>
      %283 = arith.addf %281, %282 : vector<128x32xf32>
      %c0_111 = arith.constant 0 : index
      %c0_112 = arith.constant 0 : index
      %284 = vector.load %arg23[%c0_111, %c0_112] : memref<128x32xf32, #tpu.memory_space<vmem>>, vector<128x32xf32>
      tpu.vector_store %arg23[%c0_111, %c0_112], %283 {strides = array<i32>} : memref<128x32xf32, #tpu.memory_space<vmem>>, vector<128x32xf32>,
      %c0_113 = arith.constant 0 : index
      %c0_114 = arith.constant 0 : index
      %285 = vector.load %arg24[%c0_113, %c0_114] : memref<128x32xf32, #tpu.memory_space<vmem>>, vector<128x32xf32>
      tpu.vector_store %arg24[%c0_113, %c0_114], %283 {strides = array<i32>} : memref<128x32xf32, #tpu.memory_space<vmem>>, vector<128x32xf32>,
    } else {
    }
    %c0 = arith.constant 0 : index
    %c0_1 = arith.constant 0 : index
    %3 = vector.load %arg23[%c0, %c0_1] : memref<128x32xf32, #tpu.memory_space<vmem>>, vector<128x32xf32>
    %c0_2 = arith.constant 0 : index
    %c0_3 = arith.constant 0 : index
    %4 = vector.load %arg24[%c0_2, %c0_3] : memref<128x32xf32, #tpu.memory_space<vmem>>, vector<128x32xf32>
    %c0_4 = arith.constant 0 : index
    %c0_5 = arith.constant 0 : index
    %c0_6 = arith.constant 0 : index
    %5 = vector.load %arg6[%c0_4, %c0_5, %c0_6] : memref<1x1x32xf32, #tpu.memory_space<vmem>>, vector<1x1x32xf32>
    %6 = vector.shape_cast %5 : vector<1x1x32xf32> to vector<1x32xf32>
    %c0_7 = arith.constant 0 : index
    %c0_8 = arith.constant 0 : index
    %c0_9 = arith.constant 0 : index
    %7 = vector.load %arg7[%c0_7, %c0_8, %c0_9] : memref<1x1x32xf32, #tpu.memory_space<vmem>>, vector<1x1x32xf32>
    %8 = vector.shape_cast %7 : vector<1x1x32xf32> to vector<1x32xf32>
    %cst = arith.constant dense<0.000000e+00> : vector<128xf32>
    %9 = vector.multi_reduction <add>, %4, %cst [1] : vector<128x32xf32> to vector<128xf32>
    %10 = vector.shape_cast %9 : vector<128xf32> to vector<128x1xf32>
    %cst_10 = arith.constant 3.200000e+01 : f32
    %11 = vector.broadcast %cst_10 : f32 to vector<128x1xf32>
    %12 = arith.divf %10, %11 : vector<128x1xf32>
    %13 = vector.broadcast %12 : vector<128x1xf32> to vector<128x32xf32>
    %14 = arith.subf %4, %13 : vector<128x32xf32>
    %15 = arith.mulf %14, %14 : vector<128x32xf32>
    %cst_11 = arith.constant dense<0.000000e+00> : vector<128xf32>
    %16 = vector.multi_reduction <add>, %15, %cst_11 [1] : vector<128x32xf32> to vector<128xf32>
    %17 = vector.shape_cast %16 : vector<128xf32> to vector<128x1xf32>
    %cst_12 = arith.constant 3.200000e+01 : f32
    %18 = vector.broadcast %cst_12 : f32 to vector<128x1xf32>
    %19 = arith.divf %17, %18 : vector<128x1xf32>
    %20 = vector.broadcast %12 : vector<128x1xf32> to vector<128x32xf32>
    %21 = arith.subf %4, %20 : vector<128x32xf32>
    %cst_13 = arith.constant 9.99999997E-7 : f32
    %22 = vector.broadcast %cst_13 : f32 to vector<128x1xf32>
    %23 = arith.addf %19, %22 : vector<128x1xf32>
    %24 = math.rsqrt %23 : vector<128x1xf32>
    %25 = vector.broadcast %24 : vector<128x1xf32> to vector<128x32xf32>
    %26 = arith.mulf %21, %25 : vector<128x32xf32>
    %27 = vector.broadcast %6 : vector<1x32xf32> to vector<128x32xf32>
    %28 = arith.mulf %26, %27 : vector<128x32xf32>
    %29 = vector.broadcast %8 : vector<1x32xf32> to vector<128x32xf32>
    %30 = arith.addf %28, %29 : vector<128x32xf32>
    %31 = arith.truncf %30 : vector<128x32xf32> to vector<128x32xbf16>
    %c0_14 = arith.constant 0 : index
    %c0_15 = arith.constant 0 : index
    %c0_16 = arith.constant 0 : index
    %32 = vector.load %arg8[%c0_14, %c0_15, %c0_16] : memref<1x32x96xbf16, #tpu.memory_space<vmem>>, vector<1x32x96xbf16>
    %33 = vector.shape_cast %32 : vector<1x32x96xbf16> to vector<32x96xbf16>
    %cst_17 = arith.constant dense<0.000000e+00> : vector<128x96xf32>
    %34 = tpu.matmul %31, %33, %cst_17 {dimension_numbers = #tpu.dot_dimension_numbers<[1], [0], [0], [1], [0, 0, 1, 1], [], []>} : vector<128x32xbf16>, vector<32x96xbf16>, vector<128x96xf32> -> vector<128x96xf32>
    %c0_18 = arith.constant 0 : index
    %c0_19 = arith.constant 0 : index
    %c0_20 = arith.constant 0 : index
    %35 = vector.load %arg9[%c0_18, %c0_19, %c0_20] : memref<1x1x96xf32, #tpu.memory_space<vmem>>, vector<1x1x96xf32>
    %36 = vector.shape_cast %35 : vector<1x1x96xf32> to vector<1x96xf32>
    %37 = vector.broadcast %36 : vector<1x96xf32> to vector<128x96xf32>
    %38 = arith.addf %34, %37 : vector<128x96xf32>
    %39 = vector.extract_strided_slice %38 {offsets = [0, 0], sizes = [64, 8], strides = [1, 1]} : vector<128x96xf32> to vector<64x8xf32>
    %cst_21 = arith.constant 0.353553385 : f32
    %40 = vector.broadcast %cst_21 : f32 to vector<64x8xf32>
    %41 = arith.mulf %39, %40 : vector<64x8xf32>
    %42 = arith.truncf %41 : vector<64x8xf32> to vector<64x8xbf16>
    %43 = vector.extract_strided_slice %38 {offsets = [0, 32], sizes = [64, 8], strides = [1, 1]} : vector<128x96xf32> to vector<64x8xf32>
    %44 = arith.truncf %43 : vector<64x8xf32> to vector<64x8xbf16>
    %45 = vector.extract_strided_slice %38 {offsets = [0, 64], sizes = [64, 8], strides = [1, 1]} : vector<128x96xf32> to vector<64x8xf32>
    %46 = arith.truncf %45 : vector<64x8xf32> to vector<64x8xbf16>
    "tpu.trace_start"() <{level = 10 : i32, message = "qe,ke->qk"}> : () -> ()
    %cst_22 = arith.constant dense<0.000000e+00> : vector<64x64xf32>
    %47 = tpu.matmul %42, %44, %cst_22 {dimension_numbers = #tpu.dot_dimension_numbers<[1], [1], [0], [0], [0, 0, 1, 0], [], []>} : vector<64x8xbf16>, vector<64x8xbf16>, vector<64x64xf32> -> vector<64x64xf32>
    "tpu.trace_stop"() : () -> ()
    %cst_23 = arith.constant dense<0xFF800000> : vector<64xf32>
    %48 = vector.multi_reduction <maximumf>, %47, %cst_23 [1] : vector<64x64xf32> to vector<64xf32>
    %49 = vector.shape_cast %48 : vector<64xf32> to vector<64x1xf32>
    %50 = vector.broadcast %49 : vector<64x1xf32> to vector<64x64xf32>
    %51 = arith.subf %47, %50 : vector<64x64xf32>
    %52 = math.exp %51 : vector<64x64xf32>
    %cst_24 = arith.constant dense<0.000000e+00> : vector<64xf32>
    %53 = vector.multi_reduction <add>, %52, %cst_24 [1] : vector<64x64xf32> to vector<64xf32>
    %54 = vector.shape_cast %53 : vector<64xf32> to vector<64x1xf32>
    %55 = tpu.reciprocal %54 {approx = true} : vector<64x1xf32> -> vector<64x1xf32>
    %56 = vector.broadcast %55 : vector<64x1xf32> to vector<64x64xf32>
    %57 = arith.mulf %52, %56 : vector<64x64xf32>
    %58 = arith.truncf %57 : vector<64x64xf32> to vector<64x64xbf16>
    %cst_25 = arith.constant dense<0.000000e+00> : vector<64x8xf32>
    %59 = tpu.matmul %58, %46, %cst_25 {dimension_numbers = #tpu.dot_dimension_numbers<[1], [0], [0], [1], [0, 0, 1, 1], [], []>} : vector<64x64xbf16>, vector<64x8xbf16>, vector<64x8xf32> -> vector<64x8xf32>
    %60 = vector.extract_strided_slice %38 {offsets = [0, 8], sizes = [64, 8], strides = [1, 1]} : vector<128x96xf32> to vector<64x8xf32>
    %cst_26 = arith.constant 0.353553385 : f32
    %61 = vector.broadcast %cst_26 : f32 to vector<64x8xf32>
    %62 = arith.mulf %60, %61 : vector<64x8xf32>
    %63 = arith.truncf %62 : vector<64x8xf32> to vector<64x8xbf16>
    %64 = vector.extract_strided_slice %38 {offsets = [0, 40], sizes = [64, 8], strides = [1, 1]} : vector<128x96xf32> to vector<64x8xf32>
    %65 = arith.truncf %64 : vector<64x8xf32> to vector<64x8xbf16>
    %66 = vector.extract_strided_slice %38 {offsets = [0, 72], sizes = [64, 8], strides = [1, 1]} : vector<128x96xf32> to vector<64x8xf32>
    %67 = arith.truncf %66 : vector<64x8xf32> to vector<64x8xbf16>
    "tpu.trace_start"() <{level = 10 : i32, message = "qe,ke->qk"}> : () -> ()
    %cst_27 = arith.constant dense<0.000000e+00> : vector<64x64xf32>
    %68 = tpu.matmul %63, %65, %cst_27 {dimension_numbers = #tpu.dot_dimension_numbers<[1], [1], [0], [0], [0, 0, 1, 0], [], []>} : vector<64x8xbf16>, vector<64x8xbf16>, vector<64x64xf32> -> vector<64x64xf32>
    "tpu.trace_stop"() : () -> ()
    %cst_28 = arith.constant dense<0xFF800000> : vector<64xf32>
    %69 = vector.multi_reduction <maximumf>, %68, %cst_28 [1] : vector<64x64xf32> to vector<64xf32>
    %70 = vector.shape_cast %69 : vector<64xf32> to vector<64x1xf32>
    %71 = vector.broadcast %70 : vector<64x1xf32> to vector<64x64xf32>
    %72 = arith.subf %68, %71 : vector<64x64xf32>
    %73 = math.exp %72 : vector<64x64xf32>
    %cst_29 = arith.constant dense<0.000000e+00> : vector<64xf32>
    %74 = vector.multi_reduction <add>, %73, %cst_29 [1] : vector<64x64xf32> to vector<64xf32>
    %75 = vector.shape_cast %74 : vector<64xf32> to vector<64x1xf32>
    %76 = tpu.reciprocal %75 {approx = true} : vector<64x1xf32> -> vector<64x1xf32>
    %77 = vector.broadcast %76 : vector<64x1xf32> to vector<64x64xf32>
    %78 = arith.mulf %73, %77 : vector<64x64xf32>
    %79 = arith.truncf %78 : vector<64x64xf32> to vector<64x64xbf16>
    %cst_30 = arith.constant dense<0.000000e+00> : vector<64x8xf32>
    %80 = tpu.matmul %79, %67, %cst_30 {dimension_numbers = #tpu.dot_dimension_numbers<[1], [0], [0], [1], [0, 0, 1, 1], [], []>} : vector<64x64xbf16>, vector<64x8xbf16>, vector<64x8xf32> -> vector<64x8xf32>
    %81 = vector.extract_strided_slice %38 {offsets = [0, 16], sizes = [64, 8], strides = [1, 1]} : vector<128x96xf32> to vector<64x8xf32>
    %cst_31 = arith.constant 0.353553385 : f32
    %82 = vector.broadcast %cst_31 : f32 to vector<64x8xf32>
    %83 = arith.mulf %81, %82 : vector<64x8xf32>
    %84 = arith.truncf %83 : vector<64x8xf32> to vector<64x8xbf16>
    %85 = vector.extract_strided_slice %38 {offsets = [0, 48], sizes = [64, 8], strides = [1, 1]} : vector<128x96xf32> to vector<64x8xf32>
    %86 = arith.truncf %85 : vector<64x8xf32> to vector<64x8xbf16>
    %87 = vector.extract_strided_slice %38 {offsets = [0, 80], sizes = [64, 8], strides = [1, 1]} : vector<128x96xf32> to vector<64x8xf32>
    %88 = arith.truncf %87 : vector<64x8xf32> to vector<64x8xbf16>
    "tpu.trace_start"() <{level = 10 : i32, message = "qe,ke->qk"}> : () -> ()
    %cst_32 = arith.constant dense<0.000000e+00> : vector<64x64xf32>
    %89 = tpu.matmul %84, %86, %cst_32 {dimension_numbers = #tpu.dot_dimension_numbers<[1], [1], [0], [0], [0, 0, 1, 0], [], []>} : vector<64x8xbf16>, vector<64x8xbf16>, vector<64x64xf32> -> vector<64x64xf32>
    "tpu.trace_stop"() : () -> ()
    %cst_33 = arith.constant dense<0xFF800000> : vector<64xf32>
    %90 = vector.multi_reduction <maximumf>, %89, %cst_33 [1] : vector<64x64xf32> to vector<64xf32>
    %91 = vector.shape_cast %90 : vector<64xf32> to vector<64x1xf32>
    %92 = vector.broadcast %91 : vector<64x1xf32> to vector<64x64xf32>
    %93 = arith.subf %89, %92 : vector<64x64xf32>
    %94 = math.exp %93 : vector<64x64xf32>
    %cst_34 = arith.constant dense<0.000000e+00> : vector<64xf32>
    %95 = vector.multi_reduction <add>, %94, %cst_34 [1] : vector<64x64xf32> to vector<64xf32>
    %96 = vector.shape_cast %95 : vector<64xf32> to vector<64x1xf32>
    %97 = tpu.reciprocal %96 {approx = true} : vector<64x1xf32> -> vector<64x1xf32>
    %98 = vector.broadcast %97 : vector<64x1xf32> to vector<64x64xf32>
    %99 = arith.mulf %94, %98 : vector<64x64xf32>
    %100 = arith.truncf %99 : vector<64x64xf32> to vector<64x64xbf16>
    %cst_35 = arith.constant dense<0.000000e+00> : vector<64x8xf32>
    %101 = tpu.matmul %100, %88, %cst_35 {dimension_numbers = #tpu.dot_dimension_numbers<[1], [0], [0], [1], [0, 0, 1, 1], [], []>} : vector<64x64xbf16>, vector<64x8xbf16>, vector<64x8xf32> -> vector<64x8xf32>
    %102 = vector.extract_strided_slice %38 {offsets = [0, 24], sizes = [64, 8], strides = [1, 1]} : vector<128x96xf32> to vector<64x8xf32>
    %cst_36 = arith.constant 0.353553385 : f32
    %103 = vector.broadcast %cst_36 : f32 to vector<64x8xf32>
    %104 = arith.mulf %102, %103 : vector<64x8xf32>
    %105 = arith.truncf %104 : vector<64x8xf32> to vector<64x8xbf16>
    %106 = vector.extract_strided_slice %38 {offsets = [0, 56], sizes = [64, 8], strides = [1, 1]} : vector<128x96xf32> to vector<64x8xf32>
    %107 = arith.truncf %106 : vector<64x8xf32> to vector<64x8xbf16>
    %108 = vector.extract_strided_slice %38 {offsets = [0, 88], sizes = [64, 8], strides = [1, 1]} : vector<128x96xf32> to vector<64x8xf32>
    %109 = arith.truncf %108 : vector<64x8xf32> to vector<64x8xbf16>
    "tpu.trace_start"() <{level = 10 : i32, message = "qe,ke->qk"}> : () -> ()
    %cst_37 = arith.constant dense<0.000000e+00> : vector<64x64xf32>
    %110 = tpu.matmul %105, %107, %cst_37 {dimension_numbers = #tpu.dot_dimension_numbers<[1], [1], [0], [0], [0, 0, 1, 0], [], []>} : vector<64x8xbf16>, vector<64x8xbf16>, vector<64x64xf32> -> vector<64x64xf32>
    "tpu.trace_stop"() : () -> ()
    %cst_38 = arith.constant dense<0xFF800000> : vector<64xf32>
    %111 = vector.multi_reduction <maximumf>, %110, %cst_38 [1] : vector<64x64xf32> to vector<64xf32>
    %112 = vector.shape_cast %111 : vector<64xf32> to vector<64x1xf32>
    %113 = vector.broadcast %112 : vector<64x1xf32> to vector<64x64xf32>
    %114 = arith.subf %110, %113 : vector<64x64xf32>
    %115 = math.exp %114 : vector<64x64xf32>
    %cst_39 = arith.constant dense<0.000000e+00> : vector<64xf32>
    %116 = vector.multi_reduction <add>, %115, %cst_39 [1] : vector<64x64xf32> to vector<64xf32>
    %117 = vector.shape_cast %116 : vector<64xf32> to vector<64x1xf32>
    %118 = tpu.reciprocal %117 {approx = true} : vector<64x1xf32> -> vector<64x1xf32>
    %119 = vector.broadcast %118 : vector<64x1xf32> to vector<64x64xf32>
    %120 = arith.mulf %115, %119 : vector<64x64xf32>
    %121 = arith.truncf %120 : vector<64x64xf32> to vector<64x64xbf16>
    %cst_40 = arith.constant dense<0.000000e+00> : vector<64x8xf32>
    %122 = tpu.matmul %121, %109, %cst_40 {dimension_numbers = #tpu.dot_dimension_numbers<[1], [0], [0], [1], [0, 0, 1, 1], [], []>} : vector<64x64xbf16>, vector<64x8xbf16>, vector<64x8xf32> -> vector<64x8xf32>
    %123 = tpu.concatenate %59, %80, %101, %122 in 1 : vector<64x8xf32>, vector<64x8xf32>, vector<64x8xf32>, vector<64x8xf32> -> vector<64x32xf32>
    %124 = vector.extract_strided_slice %38 {offsets = [64, 0], sizes = [64, 8], strides = [1, 1]} : vector<128x96xf32> to vector<64x8xf32>
    %cst_41 = arith.constant 0.353553385 : f32
    %125 = vector.broadcast %cst_41 : f32 to vector<64x8xf32>
    %126 = arith.mulf %124, %125 : vector<64x8xf32>
    %127 = arith.truncf %126 : vector<64x8xf32> to vector<64x8xbf16>
    %128 = vector.extract_strided_slice %38 {offsets = [64, 32], sizes = [64, 8], strides = [1, 1]} : vector<128x96xf32> to vector<64x8xf32>
    %129 = arith.truncf %128 : vector<64x8xf32> to vector<64x8xbf16>
    %130 = vector.extract_strided_slice %38 {offsets = [64, 64], sizes = [64, 8], strides = [1, 1]} : vector<128x96xf32> to vector<64x8xf32>
    %131 = arith.truncf %130 : vector<64x8xf32> to vector<64x8xbf16>
    "tpu.trace_start"() <{level = 10 : i32, message = "qe,ke->qk"}> : () -> ()
    %cst_42 = arith.constant dense<0.000000e+00> : vector<64x64xf32>
    %132 = tpu.matmul %127, %129, %cst_42 {dimension_numbers = #tpu.dot_dimension_numbers<[1], [1], [0], [0], [0, 0, 1, 0], [], []>} : vector<64x8xbf16>, vector<64x8xbf16>, vector<64x64xf32> -> vector<64x64xf32>
    "tpu.trace_stop"() : () -> ()
    %cst_43 = arith.constant dense<0xFF800000> : vector<64xf32>
    %133 = vector.multi_reduction <maximumf>, %132, %cst_43 [1] : vector<64x64xf32> to vector<64xf32>
    %134 = vector.shape_cast %133 : vector<64xf32> to vector<64x1xf32>
    %135 = vector.broadcast %134 : vector<64x1xf32> to vector<64x64xf32>
    %136 = arith.subf %132, %135 : vector<64x64xf32>
    %137 = math.exp %136 : vector<64x64xf32>
    %cst_44 = arith.constant dense<0.000000e+00> : vector<64xf32>
    %138 = vector.multi_reduction <add>, %137, %cst_44 [1] : vector<64x64xf32> to vector<64xf32>
    %139 = vector.shape_cast %138 : vector<64xf32> to vector<64x1xf32>
    %140 = tpu.reciprocal %139 {approx = true} : vector<64x1xf32> -> vector<64x1xf32>
    %141 = vector.broadcast %140 : vector<64x1xf32> to vector<64x64xf32>
    %142 = arith.mulf %137, %141 : vector<64x64xf32>
    %143 = arith.truncf %142 : vector<64x64xf32> to vector<64x64xbf16>
    %cst_45 = arith.constant dense<0.000000e+00> : vector<64x8xf32>
    %144 = tpu.matmul %143, %131, %cst_45 {dimension_numbers = #tpu.dot_dimension_numbers<[1], [0], [0], [1], [0, 0, 1, 1], [], []>} : vector<64x64xbf16>, vector<64x8xbf16>, vector<64x8xf32> -> vector<64x8xf32>
    %145 = vector.extract_strided_slice %38 {offsets = [64, 8], sizes = [64, 8], strides = [1, 1]} : vector<128x96xf32> to vector<64x8xf32>
    %cst_46 = arith.constant 0.353553385 : f32
    %146 = vector.broadcast %cst_46 : f32 to vector<64x8xf32>
    %147 = arith.mulf %145, %146 : vector<64x8xf32>
    %148 = arith.truncf %147 : vector<64x8xf32> to vector<64x8xbf16>
    %149 = vector.extract_strided_slice %38 {offsets = [64, 40], sizes = [64, 8], strides = [1, 1]} : vector<128x96xf32> to vector<64x8xf32>
    %150 = arith.truncf %149 : vector<64x8xf32> to vector<64x8xbf16>
    %151 = vector.extract_strided_slice %38 {offsets = [64, 72], sizes = [64, 8], strides = [1, 1]} : vector<128x96xf32> to vector<64x8xf32>
    %152 = arith.truncf %151 : vector<64x8xf32> to vector<64x8xbf16>
    "tpu.trace_start"() <{level = 10 : i32, message = "qe,ke->qk"}> : () -> ()
    %cst_47 = arith.constant dense<0.000000e+00> : vector<64x64xf32>
    %153 = tpu.matmul %148, %150, %cst_47 {dimension_numbers = #tpu.dot_dimension_numbers<[1], [1], [0], [0], [0, 0, 1, 0], [], []>} : vector<64x8xbf16>, vector<64x8xbf16>, vector<64x64xf32> -> vector<64x64xf32>
    "tpu.trace_stop"() : () -> ()
    %cst_48 = arith.constant dense<0xFF800000> : vector<64xf32>
    %154 = vector.multi_reduction <maximumf>, %153, %cst_48 [1] : vector<64x64xf32> to vector<64xf32>
    %155 = vector.shape_cast %154 : vector<64xf32> to vector<64x1xf32>
    %156 = vector.broadcast %155 : vector<64x1xf32> to vector<64x64xf32>
    %157 = arith.subf %153, %156 : vector<64x64xf32>
    %158 = math.exp %157 : vector<64x64xf32>
    %cst_49 = arith.constant dense<0.000000e+00> : vector<64xf32>
    %159 = vector.multi_reduction <add>, %158, %cst_49 [1] : vector<64x64xf32> to vector<64xf32>
    %160 = vector.shape_cast %159 : vector<64xf32> to vector<64x1xf32>
    %161 = tpu.reciprocal %160 {approx = true} : vector<64x1xf32> -> vector<64x1xf32>
    %162 = vector.broadcast %161 : vector<64x1xf32> to vector<64x64xf32>
    %163 = arith.mulf %158, %162 : vector<64x64xf32>
    %164 = arith.truncf %163 : vector<64x64xf32> to vector<64x64xbf16>
    %cst_50 = arith.constant dense<0.000000e+00> : vector<64x8xf32>
    %165 = tpu.matmul %164, %152, %cst_50 {dimension_numbers = #tpu.dot_dimension_numbers<[1], [0], [0], [1], [0, 0, 1, 1], [], []>} : vector<64x64xbf16>, vector<64x8xbf16>, vector<64x8xf32> -> vector<64x8xf32>
    %166 = vector.extract_strided_slice %38 {offsets = [64, 16], sizes = [64, 8], strides = [1, 1]} : vector<128x96xf32> to vector<64x8xf32>
    %cst_51 = arith.constant 0.353553385 : f32
    %167 = vector.broadcast %cst_51 : f32 to vector<64x8xf32>
    %168 = arith.mulf %166, %167 : vector<64x8xf32>
    %169 = arith.truncf %168 : vector<64x8xf32> to vector<64x8xbf16>
    %170 = vector.extract_strided_slice %38 {offsets = [64, 48], sizes = [64, 8], strides = [1, 1]} : vector<128x96xf32> to vector<64x8xf32>
    %171 = arith.truncf %170 : vector<64x8xf32> to vector<64x8xbf16>
    %172 = vector.extract_strided_slice %38 {offsets = [64, 80], sizes = [64, 8], strides = [1, 1]} : vector<128x96xf32> to vector<64x8xf32>
    %173 = arith.truncf %172 : vector<64x8xf32> to vector<64x8xbf16>
    "tpu.trace_start"() <{level = 10 : i32, message = "qe,ke->qk"}> : () -> ()
    %cst_52 = arith.constant dense<0.000000e+00> : vector<64x64xf32>
    %174 = tpu.matmul %169, %171, %cst_52 {dimension_numbers = #tpu.dot_dimension_numbers<[1], [1], [0], [0], [0, 0, 1, 0], [], []>} : vector<64x8xbf16>, vector<64x8xbf16>, vector<64x64xf32> -> vector<64x64xf32>
    "tpu.trace_stop"() : () -> ()
    %cst_53 = arith.constant dense<0xFF800000> : vector<64xf32>
    %175 = vector.multi_reduction <maximumf>, %174, %cst_53 [1] : vector<64x64xf32> to vector<64xf32>
    %176 = vector.shape_cast %175 : vector<64xf32> to vector<64x1xf32>
    %177 = vector.broadcast %176 : vector<64x1xf32> to vector<64x64xf32>
    %178 = arith.subf %174, %177 : vector<64x64xf32>
    %179 = math.exp %178 : vector<64x64xf32>
    %cst_54 = arith.constant dense<0.000000e+00> : vector<64xf32>
    %180 = vector.multi_reduction <add>, %179, %cst_54 [1] : vector<64x64xf32> to vector<64xf32>
    %181 = vector.shape_cast %180 : vector<64xf32> to vector<64x1xf32>
    %182 = tpu.reciprocal %181 {approx = true} : vector<64x1xf32> -> vector<64x1xf32>
    %183 = vector.broadcast %182 : vector<64x1xf32> to vector<64x64xf32>
    %184 = arith.mulf %179, %183 : vector<64x64xf32>
    %185 = arith.truncf %184 : vector<64x64xf32> to vector<64x64xbf16>
    %cst_55 = arith.constant dense<0.000000e+00> : vector<64x8xf32>
    %186 = tpu.matmul %185, %173, %cst_55 {dimension_numbers = #tpu.dot_dimension_numbers<[1], [0], [0], [1], [0, 0, 1, 1], [], []>} : vector<64x64xbf16>, vector<64x8xbf16>, vector<64x8xf32> -> vector<64x8xf32>
    %187 = vector.extract_strided_slice %38 {offsets = [64, 24], sizes = [64, 8], strides = [1, 1]} : vector<128x96xf32> to vector<64x8xf32>
    %cst_56 = arith.constant 0.353553385 : f32
    %188 = vector.broadcast %cst_56 : f32 to vector<64x8xf32>
    %189 = arith.mulf %187, %188 : vector<64x8xf32>
    %190 = arith.truncf %189 : vector<64x8xf32> to vector<64x8xbf16>
    %191 = vector.extract_strided_slice %38 {offsets = [64, 56], sizes = [64, 8], strides = [1, 1]} : vector<128x96xf32> to vector<64x8xf32>
    %192 = arith.truncf %191 : vector<64x8xf32> to vector<64x8xbf16>
    %193 = vector.extract_strided_slice %38 {offsets = [64, 88], sizes = [64, 8], strides = [1, 1]} : vector<128x96xf32> to vector<64x8xf32>
    %194 = arith.truncf %193 : vector<64x8xf32> to vector<64x8xbf16>
    "tpu.trace_start"() <{level = 10 : i32, message = "qe,ke->qk"}> : () -> ()
    %cst_57 = arith.constant dense<0.000000e+00> : vector<64x64xf32>
    %195 = tpu.matmul %190, %192, %cst_57 {dimension_numbers = #tpu.dot_dimension_numbers<[1], [1], [0], [0], [0, 0, 1, 0], [], []>} : vector<64x8xbf16>, vector<64x8xbf16>, vector<64x64xf32> -> vector<64x64xf32>
    "tpu.trace_stop"() : () -> ()
    %cst_58 = arith.constant dense<0xFF800000> : vector<64xf32>
    %196 = vector.multi_reduction <maximumf>, %195, %cst_58 [1] : vector<64x64xf32> to vector<64xf32>
    %197 = vector.shape_cast %196 : vector<64xf32> to vector<64x1xf32>
    %198 = vector.broadcast %197 : vector<64x1xf32> to vector<64x64xf32>
    %199 = arith.subf %195, %198 : vector<64x64xf32>
    %200 = math.exp %199 : vector<64x64xf32>
    %cst_59 = arith.constant dense<0.000000e+00> : vector<64xf32>
    %201 = vector.multi_reduction <add>, %200, %cst_59 [1] : vector<64x64xf32> to vector<64xf32>
    %202 = vector.shape_cast %201 : vector<64xf32> to vector<64x1xf32>
    %203 = tpu.reciprocal %202 {approx = true} : vector<64x1xf32> -> vector<64x1xf32>
    %204 = vector.broadcast %203 : vector<64x1xf32> to vector<64x64xf32>
    %205 = arith.mulf %200, %204 : vector<64x64xf32>
    %206 = arith.truncf %205 : vector<64x64xf32> to vector<64x64xbf16>
    %cst_60 = arith.constant dense<0.000000e+00> : vector<64x8xf32>
    %207 = tpu.matmul %206, %194, %cst_60 {dimension_numbers = #tpu.dot_dimension_numbers<[1], [0], [0], [1], [0, 0, 1, 1], [], []>} : vector<64x64xbf16>, vector<64x8xbf16>, vector<64x8xf32> -> vector<64x8xf32>
    %208 = tpu.concatenate %144, %165, %186, %207 in 1 : vector<64x8xf32>, vector<64x8xf32>, vector<64x8xf32>, vector<64x8xf32> -> vector<64x32xf32>
    %209 = tpu.concatenate %123, %208 in 0 : vector<64x32xf32>, vector<64x32xf32> -> vector<128x32xf32>
    %210 = arith.truncf %209 : vector<128x32xf32> to vector<128x32xbf16>
    %c0_61 = arith.constant 0 : index
    %c0_62 = arith.constant 0 : index
    %c0_63 = arith.constant 0 : index
    %211 = vector.load %arg10[%c0_61, %c0_62, %c0_63] : memref<1x32x32xbf16, #tpu.memory_space<vmem>>, vector<1x32x32xbf16>
    %212 = vector.shape_cast %211 : vector<1x32x32xbf16> to vector<32x32xbf16>
    %cst_64 = arith.constant dense<0.000000e+00> : vector<128x32xf32>
    %213 = tpu.matmul %210, %212, %cst_64 {dimension_numbers = #tpu.dot_dimension_numbers<[1], [0], [0], [1], [0, 0, 1, 1], [], []>} : vector<128x32xbf16>, vector<32x32xbf16>, vector<128x32xf32> -> vector<128x32xf32>
    %c0_65 = arith.constant 0 : index
    %c0_66 = arith.constant 0 : index
    %c0_67 = arith.constant 0 : index
    %214 = vector.load %arg11[%c0_65, %c0_66, %c0_67] : memref<1x1x32xf32, #tpu.memory_space<vmem>>, vector<1x1x32xf32>
    %215 = vector.shape_cast %214 : vector<1x1x32xf32> to vector<1x32xf32>
    %216 = vector.broadcast %215 : vector<1x32xf32> to vector<128x32xf32>
    %217 = arith.addf %213, %216 : vector<128x32xf32>
    %218 = arith.addf %3, %217 : vector<128x32xf32>
    %c0_68 = arith.constant 0 : index
    %c0_69 = arith.constant 0 : index
    %c0_70 = arith.constant 0 : index
    %219 = vector.load %arg12[%c0_68, %c0_69, %c0_70] : memref<1x1x32xf32, #tpu.memory_space<vmem>>, vector<1x1x32xf32>
    %220 = vector.shape_cast %219 : vector<1x1x32xf32> to vector<1x32xf32>
    %c0_71 = arith.constant 0 : index
    %c0_72 = arith.constant 0 : index
    %c0_73 = arith.constant 0 : index
    %221 = vector.load %arg13[%c0_71, %c0_72, %c0_73] : memref<1x1x32xf32, #tpu.memory_space<vmem>>, vector<1x1x32xf32>
    %222 = vector.shape_cast %221 : vector<1x1x32xf32> to vector<1x32xf32>
    %cst_74 = arith.constant dense<0.000000e+00> : vector<128xf32>
    %223 = vector.multi_reduction <add>, %218, %cst_74 [1] : vector<128x32xf32> to vector<128xf32>
    %224 = vector.shape_cast %223 : vector<128xf32> to vector<128x1xf32>
    %cst_75 = arith.constant 3.200000e+01 : f32
    %225 = vector.broadcast %cst_75 : f32 to vector<128x1xf32>
    %226 = arith.divf %224, %225 : vector<128x1xf32>
    %227 = vector.broadcast %226 : vector<128x1xf32> to vector<128x32xf32>
    %228 = arith.subf %218, %227 : vector<128x32xf32>
    %229 = arith.mulf %228, %228 : vector<128x32xf32>
    %cst_76 = arith.constant dense<0.000000e+00> : vector<128xf32>
    %230 = vector.multi_reduction <add>, %229, %cst_76 [1] : vector<128x32xf32> to vector<128xf32>
    %231 = vector.shape_cast %230 : vector<128xf32> to vector<128x1xf32>
    %cst_77 = arith.constant 3.200000e+01 : f32
    %232 = vector.broadcast %cst_77 : f32 to vector<128x1xf32>
    %233 = arith.divf %231, %232 : vector<128x1xf32>
    %234 = vector.broadcast %226 : vector<128x1xf32> to vector<128x32xf32>
    %235 = arith.subf %218, %234 : vector<128x32xf32>
    %cst_78 = arith.constant 9.99999974E-6 : f32
    %236 = vector.broadcast %cst_78 : f32 to vector<128x1xf32>
    %237 = arith.addf %233, %236 : vector<128x1xf32>
    %238 = math.rsqrt %237 : vector<128x1xf32>
    %239 = vector.broadcast %238 : vector<128x1xf32> to vector<128x32xf32>
    %240 = arith.mulf %235, %239 : vector<128x32xf32>
    %241 = vector.broadcast %220 : vector<1x32xf32> to vector<128x32xf32>
    %242 = arith.mulf %240, %241 : vector<128x32xf32>
    %243 = vector.broadcast %222 : vector<1x32xf32> to vector<128x32xf32>
    %244 = arith.addf %242, %243 : vector<128x32xf32>
    %245 = arith.truncf %244 : vector<128x32xf32> to vector<128x32xbf16>
    %c0_79 = arith.constant 0 : index
    %c0_80 = arith.constant 0 : index
    %c0_81 = arith.constant 0 : index
    %246 = vector.load %arg14[%c0_79, %c0_80, %c0_81] : memref<1x32x128xbf16, #tpu.memory_space<vmem>>, vector<1x32x128xbf16>
    %247 = vector.shape_cast %246 : vector<1x32x128xbf16> to vector<32x128xbf16>
    %cst_82 = arith.constant dense<0.000000e+00> : vector<128x128xf32>
    %248 = tpu.matmul %245, %247, %cst_82 {dimension_numbers = #tpu.dot_dimension_numbers<[1], [0], [0], [1], [0, 0, 1, 1], [], []>} : vector<128x32xbf16>, vector<32x128xbf16>, vector<128x128xf32> -> vector<128x128xf32>
    %c0_83 = arith.constant 0 : index
    %c0_84 = arith.constant 0 : index
    %c0_85 = arith.constant 0 : index
    %249 = vector.load %arg15[%c0_83, %c0_84, %c0_85] : memref<1x1x128xf32, #tpu.memory_space<vmem>>, vector<1x1x128xf32>
    %250 = vector.shape_cast %249 : vector<1x1x128xf32> to vector<1x128xf32>
    %251 = vector.broadcast %250 : vector<1x128xf32> to vector<128x128xf32>
    %252 = arith.addf %248, %251 : vector<128x128xf32>
    %cst_86 = arith.constant 5.000000e-01 : f32
    %253 = vector.broadcast %cst_86 : f32 to vector<128x128xf32>
    %254 = arith.mulf %253, %252 : vector<128x128xf32>
    %cst_87 = arith.constant 0.707106769 : f32
    %255 = vector.broadcast %cst_87 : f32 to vector<128x128xf32>
    %256 = arith.mulf %252, %255 : vector<128x128xf32>
    %257 = math.erf %256 : vector<128x128xf32>
    %cst_88 = arith.constant 1.000000e+00 : f32
    %258 = vector.broadcast %cst_88 : f32 to vector<128x128xf32>
    %259 = arith.addf %258, %257 : vector<128x128xf32>
    %260 = arith.mulf %254, %259 : vector<128x128xf32>
    %261 = arith.truncf %260 : vector<128x128xf32> to vector<128x128xbf16>
    %c0_89 = arith.constant 0 : index
    %c0_90 = arith.constant 0 : index
    %c0_91 = arith.constant 0 : index
    %262 = vector.load %arg16[%c0_89, %c0_90, %c0_91] : memref<1x128x32xbf16, #tpu.memory_space<vmem>>, vector<1x128x32xbf16>
    %263 = vector.shape_cast %262 : vector<1x128x32xbf16> to vector<128x32xbf16>
    %cst_92 = arith.constant dense<0.000000e+00> : vector<128x32xf32>
    %264 = tpu.matmul %261, %263, %cst_92 {dimension_numbers = #tpu.dot_dimension_numbers<[1], [0], [0], [1], [0, 0, 1, 1], [], []>} : vector<128x128xbf16>, vector<128x32xbf16>, vector<128x32xf32> -> vector<128x32xf32>
    %c0_93 = arith.constant 0 : index
    %c0_94 = arith.constant 0 : index
    %c0_95 = arith.constant 0 : index
    %265 = vector.load %arg17[%c0_93, %c0_94, %c0_95] : memref<1x1x32xf32, #tpu.memory_space<vmem>>, vector<1x1x32xf32>
    %266 = vector.shape_cast %265 : vector<1x1x32xf32> to vector<1x32xf32>
    %267 = vector.broadcast %266 : vector<1x32xf32> to vector<128x32xf32>
    %268 = arith.addf %264, %267 : vector<128x32xf32>
    %269 = arith.addf %4, %268 : vector<128x32xf32>
    %c0_96 = arith.constant 0 : index
    %c0_97 = arith.constant 0 : index
    %270 = vector.load %arg23[%c0_96, %c0_97] : memref<128x32xf32, #tpu.memory_space<vmem>>, vector<128x32xf32>
    tpu.vector_store %arg23[%c0_96, %c0_97], %218 {strides = array<i32>} : memref<128x32xf32, #tpu.memory_space<vmem>>, vector<128x32xf32>,
    %c0_98 = arith.constant 0 : index
    %c0_99 = arith.constant 0 : index
    %271 = vector.load %arg24[%c0_98, %c0_99] : memref<128x32xf32, #tpu.memory_space<vmem>>, vector<128x32xf32>
    tpu.vector_store %arg24[%c0_98, %c0_99], %269 {strides = array<i32>} : memref<128x32xf32, #tpu.memory_space<vmem>>, vector<128x32xf32>,
    %c1_i32 = arith.constant 1 : i32
    %272 = arith.cmpi eq, %arg1, %c1_i32 : i32
    %273 = arith.extui %272 : i1 to i32
    %c0_i32_100 = arith.constant 0 : i32
    %274 = arith.cmpi ne, %273, %c0_i32_100 : i32
    scf.if %274 {
      %275 = vector.extract_strided_slice %218 {offsets = [0, 0], sizes = [64, 32], strides = [1, 1]} : vector<128x32xf32> to vector<64x32xf32>
      %cst_101 = arith.constant dense<0.000000e+00> : vector<32xf32>
      %276 = vector.multi_reduction <add>, %275, %cst_101 [0] : vector<64x32xf32> to vector<32xf32>
      %277 = vector.shape_cast %276 : vector<32xf32> to vector<1x32xf32>
      %cst_102 = arith.constant 6.400000e+01 : f32
      %278 = vector.broadcast %cst_102 : f32 to vector<1x32xf32>
      %279 = arith.divf %277, %278 : vector<1x32xf32>
      %280 = vector.extract_strided_slice %269 {offsets = [0, 0], sizes = [64, 32], strides = [1, 1]} : vector<128x32xf32> to vector<64x32xf32>
      %cst_103 = arith.constant dense<0.000000e+00> : vector<32xf32>
      %281 = vector.multi_reduction <add>, %280, %cst_103 [0] : vector<64x32xf32> to vector<32xf32>
      %282 = vector.shape_cast %281 : vector<32xf32> to vector<1x32xf32>
      %cst_104 = arith.constant 6.400000e+01 : f32
      %283 = vector.broadcast %cst_104 : f32 to vector<1x32xf32>
      %284 = arith.divf %282, %283 : vector<1x32xf32>
      %285 = tpu.concatenate %279, %284 in 1 : vector<1x32xf32>, vector<1x32xf32> -> vector<1x64xf32>
      %286 = vector.extract_strided_slice %218 {offsets = [64, 0], sizes = [64, 32], strides = [1, 1]} : vector<128x32xf32> to vector<64x32xf32>
      %cst_105 = arith.constant dense<0.000000e+00> : vector<32xf32>
      %287 = vector.multi_reduction <add>, %286, %cst_105 [0] : vector<64x32xf32> to vector<32xf32>
      %288 = vector.shape_cast %287 : vector<32xf32> to vector<1x32xf32>
      %cst_106 = arith.constant 6.400000e+01 : f32
      %289 = vector.broadcast %cst_106 : f32 to vector<1x32xf32>
      %290 = arith.divf %288, %289 : vector<1x32xf32>
      %291 = vector.extract_strided_slice %269 {offsets = [64, 0], sizes = [64, 32], strides = [1, 1]} : vector<128x32xf32> to vector<64x32xf32>
      %cst_107 = arith.constant dense<0.000000e+00> : vector<32xf32>
      %292 = vector.multi_reduction <add>, %291, %cst_107 [0] : vector<64x32xf32> to vector<32xf32>
      %293 = vector.shape_cast %292 : vector<32xf32> to vector<1x32xf32>
      %cst_108 = arith.constant 6.400000e+01 : f32
      %294 = vector.broadcast %cst_108 : f32 to vector<1x32xf32>
      %295 = arith.divf %293, %294 : vector<1x32xf32>
      %296 = tpu.concatenate %290, %295 in 1 : vector<1x32xf32>, vector<1x32xf32> -> vector<1x64xf32>
      %297 = tpu.concatenate %285, %296 in 0 : vector<1x64xf32>, vector<1x64xf32> -> vector<2x64xf32>
      %c0_109 = arith.constant 0 : index
      %c0_110 = arith.constant 0 : index
      %298 = vector.load %arg18[%c0_109, %c0_110] : memref<1x64xf32, #tpu.memory_space<vmem>>, vector<1x64xf32>
      %c0_111 = arith.constant 0 : index
      %c0_112 = arith.constant 0 : index
      %299 = vector.load %arg19[%c0_111, %c0_112] : memref<1x64xf32, #tpu.memory_space<vmem>>, vector<1x64xf32>
      %cst_113 = arith.constant dense<0.000000e+00> : vector<2xf32>
      %300 = vector.multi_reduction <add>, %297, %cst_113 [1] : vector<2x64xf32> to vector<2xf32>
      %301 = vector.shape_cast %300 : vector<2xf32> to vector<2x1xf32>
      %cst_114 = arith.constant 6.400000e+01 : f32
      %302 = vector.broadcast %cst_114 : f32 to vector<2x1xf32>
      %303 = arith.divf %301, %302 : vector<2x1xf32>
      %304 = vector.broadcast %303 : vector<2x1xf32> to vector<2x64xf32>
      %305 = arith.subf %297, %304 : vector<2x64xf32>
      %306 = arith.mulf %305, %305 : vector<2x64xf32>
      %cst_115 = arith.constant dense<0.000000e+00> : vector<2xf32>
      %307 = vector.multi_reduction <add>, %306, %cst_115 [1] : vector<2x64xf32> to vector<2xf32>
      %308 = vector.shape_cast %307 : vector<2xf32> to vector<2x1xf32>
      %cst_116 = arith.constant 6.400000e+01 : f32
      %309 = vector.broadcast %cst_116 : f32 to vector<2x1xf32>
      %310 = arith.divf %308, %309 : vector<2x1xf32>
      %311 = vector.broadcast %303 : vector<2x1xf32> to vector<2x64xf32>
      %312 = arith.subf %297, %311 : vector<2x64xf32>
      %cst_117 = arith.constant 9.99999974E-6 : f32
      %313 = vector.broadcast %cst_117 : f32 to vector<2x1xf32>
      %314 = arith.addf %310, %313 : vector<2x1xf32>
      %315 = math.rsqrt %314 : vector<2x1xf32>
      %316 = vector.broadcast %315 : vector<2x1xf32> to vector<2x64xf32>
      %317 = arith.mulf %312, %316 : vector<2x64xf32>
      %318 = vector.broadcast %298 : vector<1x64xf32> to vector<2x64xf32>
      %319 = arith.mulf %317, %318 : vector<2x64xf32>
      %320 = vector.broadcast %299 : vector<1x64xf32> to vector<2x64xf32>
      %321 = arith.addf %319, %320 : vector<2x64xf32>
      %322 = arith.truncf %321 : vector<2x64xf32> to vector<2x64xbf16>
      %c0_118 = arith.constant 0 : index
      %c0_119 = arith.constant 0 : index
      %323 = vector.load %arg20[%c0_118, %c0_119] : memref<64x10xbf16, #tpu.memory_space<vmem>>, vector<64x10xbf16>
      %cst_120 = arith.constant dense<0.000000e+00> : vector<2x10xf32>
      %324 = tpu.matmul %322, %323, %cst_120 {dimension_numbers = #tpu.dot_dimension_numbers<[1], [0], [0], [1], [0, 0, 1, 1], [], []>} : vector<2x64xbf16>, vector<64x10xbf16>, vector<2x10xf32> -> vector<2x10xf32>
      %c0_121 = arith.constant 0 : index
      %c0_122 = arith.constant 0 : index
      %325 = vector.load %arg21[%c0_121, %c0_122] : memref<1x10xf32, #tpu.memory_space<vmem>>, vector<1x10xf32>
      %326 = vector.broadcast %325 : vector<1x10xf32> to vector<2x10xf32>
      %327 = arith.addf %324, %326 : vector<2x10xf32>
      %c0_123 = arith.constant 0 : index
      %c0_124 = arith.constant 0 : index
      %c0_125 = arith.constant 0 : index
      %328 = vector.load %arg22[%c0_123, %c0_124, %c0_125] : memref<1x2x10xf32, #tpu.memory_space<vmem>>, vector<1x2x10xf32>
      %329 = vector.shape_cast %328 : vector<1x2x10xf32> to vector<2x10xf32>
      %330 = vector.shape_cast %327 : vector<2x10xf32> to vector<1x2x10xf32>
      tpu.vector_store %arg22[%c0_123, %c0_124, %c0_125], %330 {strides = array<i32>} : memref<1x2x10xf32, #tpu.memory_space<vmem>>, vector<1x2x10xf32>,
    } else {
    }
    return
  }
  func.func @transform_0(%arg0: i32, %arg1: i32) -> (i32, i32, i32) {
    %c0_i32 = arith.constant 0 : i32
    %c0_i32_0 = arith.constant 0 : i32
    %c0_i32_1 = arith.constant 0 : i32
    return %arg0, %c0_i32, %c0_i32_0 : i32, i32, i32
  }
  func.func @transform_1(%arg0: i32, %arg1: i32) -> (i32, i32) {
    %c0_i32 = arith.constant 0 : i32
    %c0_i32_0 = arith.constant 0 : i32
    %c0_i32_1 = arith.constant 0 : i32
    return %c0_i32, %c0_i32_0 : i32, i32
  }
  func.func @transform_2(%arg0: i32, %arg1: i32) -> (i32, i32) {
    %c0_i32 = arith.constant 0 : i32
    %c0_i32_0 = arith.constant 0 : i32
    %c0_i32_1 = arith.constant 0 : i32
    return %c0_i32, %c0_i32_0 : i32, i32
  }
  func.func @transform_3(%arg0: i32, %arg1: i32) -> (i32, i32) {
    %c0_i32 = arith.constant 0 : i32
    %c0_i32_0 = arith.constant 0 : i32
    %c0_i32_1 = arith.constant 0 : i32
    return %c0_i32, %c0_i32_0 : i32, i32
  }
  func.func @transform_4(%arg0: i32, %arg1: i32) -> (i32, i32, i32) {
    %c0_i32 = arith.constant 0 : i32
    %c0_i32_0 = arith.constant 0 : i32
    %c0_i32_1 = arith.constant 0 : i32
    return %arg1, %c0_i32, %c0_i32_0 : i32, i32, i32
  }
  func.func @transform_5(%arg0: i32, %arg1: i32) -> (i32, i32, i32) {
    %c0_i32 = arith.constant 0 : i32
    %c0_i32_0 = arith.constant 0 : i32
    %c0_i32_1 = arith.constant 0 : i32
    return %arg1, %c0_i32, %c0_i32_0 : i32, i32, i32
  }
  func.func @transform_6(%arg0: i32, %arg1: i32) -> (i32, i32, i32) {
    %c0_i32 = arith.constant 0 : i32
    %c0_i32_0 = arith.constant 0 : i32
    %c0_i32_1 = arith.constant 0 : i32
    return %arg1, %c0_i32, %c0_i32_0 : i32, i32, i32
  }
  func.func @transform_7(%arg0: i32, %arg1: i32) -> (i32, i32, i32) {
    %c0_i32 = arith.constant 0 : i32
    %c0_i32_0 = arith.constant 0 : i32
    %c0_i32_1 = arith.constant 0 : i32
    return %arg1, %c0_i32, %c0_i32_0 : i32, i32, i32
  }
  func.func @transform_8(%arg0: i32, %arg1: i32) -> (i32, i32, i32) {
    %c0_i32 = arith.constant 0 : i32
    %c0_i32_0 = arith.constant 0 : i32
    %c0_i32_1 = arith.constant 0 : i32
    return %arg1, %c0_i32, %c0_i32_0 : i32, i32, i32
  }
  func.func @transform_9(%arg0: i32, %arg1: i32) -> (i32, i32, i32) {
    %c0_i32 = arith.constant 0 : i32
    %c0_i32_0 = arith.constant 0 : i32
    %c0_i32_1 = arith.constant 0 : i32
    return %arg1, %c0_i32, %c0_i32_0 : i32, i32, i32
  }
  func.func @transform_10(%arg0: i32, %arg1: i32) -> (i32, i32, i32) {
    %c0_i32 = arith.constant 0 : i32
    %c0_i32_0 = arith.constant 0 : i32
    %c0_i32_1 = arith.constant 0 : i32
    return %arg1, %c0_i32, %c0_i32_0 : i32, i32, i32
  }
  func.func @transform_11(%arg0: i32, %arg1: i32) -> (i32, i32, i32) {
    %c0_i32 = arith.constant 0 : i32
    %c0_i32_0 = arith.constant 0 : i32
    %c0_i32_1 = arith.constant 0 : i32
    return %arg1, %c0_i32, %c0_i32_0 : i32, i32, i32
  }
  func.func @transform_12(%arg0: i32, %arg1: i32) -> (i32, i32, i32) {
    %c0_i32 = arith.constant 0 : i32
    %c0_i32_0 = arith.constant 0 : i32
    %c0_i32_1 = arith.constant 0 : i32
    return %arg1, %c0_i32, %c0_i32_0 : i32, i32, i32
  }
  func.func @transform_13(%arg0: i32, %arg1: i32) -> (i32, i32, i32) {
    %c0_i32 = arith.constant 0 : i32
    %c0_i32_0 = arith.constant 0 : i32
    %c0_i32_1 = arith.constant 0 : i32
    return %arg1, %c0_i32, %c0_i32_0 : i32, i32, i32
  }
  func.func @transform_14(%arg0: i32, %arg1: i32) -> (i32, i32, i32) {
    %c0_i32 = arith.constant 0 : i32
    %c0_i32_0 = arith.constant 0 : i32
    %c0_i32_1 = arith.constant 0 : i32
    return %arg1, %c0_i32, %c0_i32_0 : i32, i32, i32
  }
  func.func @transform_15(%arg0: i32, %arg1: i32) -> (i32, i32, i32) {
    %c0_i32 = arith.constant 0 : i32
    %c0_i32_0 = arith.constant 0 : i32
    %c0_i32_1 = arith.constant 0 : i32
    return %arg1, %c0_i32, %c0_i32_0 : i32, i32, i32
  }
  func.func @transform_16(%arg0: i32, %arg1: i32) -> (i32, i32) {
    %c0_i32 = arith.constant 0 : i32
    %c0_i32_0 = arith.constant 0 : i32
    %c0_i32_1 = arith.constant 0 : i32
    return %c0_i32, %c0_i32_0 : i32, i32
  }
  func.func @transform_17(%arg0: i32, %arg1: i32) -> (i32, i32) {
    %c0_i32 = arith.constant 0 : i32
    %c0_i32_0 = arith.constant 0 : i32
    %c0_i32_1 = arith.constant 0 : i32
    return %c0_i32, %c0_i32_0 : i32, i32
  }
  func.func @transform_18(%arg0: i32, %arg1: i32) -> (i32, i32) {
    %c0_i32 = arith.constant 0 : i32
    %c0_i32_0 = arith.constant 0 : i32
    %c0_i32_1 = arith.constant 0 : i32
    return %c0_i32, %c0_i32_0 : i32, i32
  }
  func.func @transform_19(%arg0: i32, %arg1: i32) -> (i32, i32) {
    %c0_i32 = arith.constant 0 : i32
    %c0_i32_0 = arith.constant 0 : i32
    %c0_i32_1 = arith.constant 0 : i32
    return %c0_i32, %c0_i32_0 : i32, i32
  }
  func.func @transform_20(%arg0: i32, %arg1: i32) -> (i32, i32, i32) {
    %c0_i32 = arith.constant 0 : i32
    %c0_i32_0 = arith.constant 0 : i32
    %c0_i32_1 = arith.constant 0 : i32
    return %arg0, %c0_i32, %c0_i32_0 : i32, i32, i32
  }
}

</mosaic_0001>

<llo_original>
// kernel: tpu_custom_call.1
$region0: #{tpu_custom_call.1}
  #allocation0 [shape = 'u32[]', space=smem, size = 0x4, offset = 0x4, fixed_abs, tag = 'smem constant byte address 0x4 - core index']
  #allocation1 [shape = 'u32[144,128]{1,0:T(1,128)}', space=vmem, size = 0x12000, scoped, tag = 'internal scratch']
  #allocation2 [shape = 'f32[128,32]{1,0:T(8,128)}', space=vmem, size = 0x10000, scoped, tag = 'scratch operand']
  #allocation3 [shape = 'f32[128,32]{1,0:T(8,128)}', space=vmem, size = 0x10000, scoped, tag = 'scratch operand']
  %s0 = inlined_call_operand.vmem [shape: bf16[1,128,128], index: 0, kind: input, shape index: {}]
  %s1 = inlined_call_operand.vmem [shape: bf16[128,32], index: 1, kind: input, shape index: {}]
  %s2 = inlined_call_operand.vmem [shape: f32[1,32], index: 2, kind: input, shape index: {}]
  %s3 = inlined_call_operand.vmem [shape: f32[128,32], index: 3, kind: input, shape index: {}]
  %s4 = inlined_call_operand.vmem [shape: f32[2,1,32], index: 4, kind: input, shape index: {}]
  %s5 = inlined_call_operand.vmem [shape: f32[2,1,32], index: 5, kind: input, shape index: {}]
  %s6 = inlined_call_operand.vmem [shape: bf16[2,32,96], index: 6, kind: input, shape index: {}]
  %s7 = inlined_call_operand.vmem [shape: f32[2,1,96], index: 7, kind: input, shape index: {}]
  %s8 = inlined_call_operand.vmem [shape: bf16[2,32,32], index: 8, kind: input, shape index: {}]
  %s9 = inlined_call_operand.vmem [shape: f32[2,1,32], index: 9, kind: input, shape index: {}]
  %s10 = inlined_call_operand.vmem [shape: f32[2,1,32], index: 10, kind: input, shape index: {}]
  %s11 = inlined_call_operand.vmem [shape: f32[2,1,32], index: 11, kind: input, shape index: {}]
  %s12 = inlined_call_operand.vmem [shape: bf16[2,32,128], index: 12, kind: input, shape index: {}]
  %s13 = inlined_call_operand.vmem [shape: f32[2,1,128], index: 13, kind: input, shape index: {}]
  %s14 = inlined_call_operand.vmem [shape: bf16[2,128,32], index: 14, kind: input, shape index: {}]
  %s15 = inlined_call_operand.vmem [shape: f32[2,1,32], index: 15, kind: input, shape index: {}]
  %s16 = inlined_call_operand.vmem [shape: f32[1,64], index: 16, kind: input, shape index: {}]
  %s17 = inlined_call_operand.vmem [shape: f32[1,64], index: 17, kind: input, shape index: {}]
  %s18 = inlined_call_operand.vmem [shape: bf16[64,10], index: 18, kind: input, shape index: {}]
  %s19 = inlined_call_operand.vmem [shape: f32[1,10], index: 19, kind: input, shape index: {}]
  %s20 = inlined_call_operand.hbm [shape: f32[1,2,10], index: 20, kind: output, shape index: {}]
  %s21 = sld [smem:[#allocation0]]
  $region121: #{tpu_custom_call.1} parent=0
    _
  %s23 = ssub.s32 1, %s21
  %s24 = scalar_select 0, %s23, %s21
  $region1: #{tpu_custom_call.1} parent=0
    #allocation4 [shape = 'u8[1024]{0}', space=vmem, size = 0x400, scoped, tag = 'output window, operand 0, single buffered']
    #allocation5 [shape = 's32[2]{0}', space=sflag, size = 0x8, scoped, tag = 'scoped memory for tpu_custom_call.1']
    %25 = vsyncpa [#allocation5], 0
    loop: start=0, step=1, limit=4
    $region2: #{tpu_custom_call.1} parent=1 // loop_pre_header
      _
    $region3: #{tpu_custom_call.1} parent=1 // loop_header
      %s27 = sphi 0, %s31
      %p28 = scmp.ge.s32.totalorder %s27, 4
      %s34 = sphi 0, %s46
      %s35 = sphi 0, %s42
      %s36 = sphi 0, %s34
      %s37 = sphi 0, %s35
      %s38 = sphi 0, %s36
      %s39 = sphi 0, %s37
      %s49 = sphi 0, %s51
      %s52 = sphi 0, %s49
      %s53 = sphi 0, %s52
      %s69 = sphi 0, %s53
      %s73 = sphi 0, %s73
      %s75 = sphi 0, %s73
      %s76 = sphi 0, %s75
      %s90 = sphi 0, %s76
      %s94 = sphi 0, %s94
      %s96 = sphi 0, %s94
      %s97 = sphi 0, %s96
      %s111 = sphi 0, %s97
      %s115 = sphi 0, %s115
      %s117 = sphi 0, %s115
      %s118 = sphi 0, %s117
      %s132 = sphi 0, %s118
      %s138 = sphi 0, %s140
      %s141 = sphi 0, %s138
      %s142 = sphi 0, %s141
      %s158 = sphi 0, %s142
      %s164 = sphi 0, %s166
      %s167 = sphi 0, %s164
      %s168 = sphi 0, %s167
      %s184 = sphi 0, %s168
      %s190 = sphi 0, %s192
      %s193 = sphi 0, %s190
      %s194 = sphi 0, %s193
      %s210 = sphi 0, %s194
      %s216 = sphi 0, %s218
      %s219 = sphi 0, %s216
      %s220 = sphi 0, %s219
      %s236 = sphi 0, %s220
      %s242 = sphi 0, %s244
      %s245 = sphi 0, %s242
      %s246 = sphi 0, %s245
      %s262 = sphi 0, %s246
      %s268 = sphi 0, %s270
      %s271 = sphi 0, %s268
      %s272 = sphi 0, %s271
      %s288 = sphi 0, %s272
      %s294 = sphi 0, %s296
      %s297 = sphi 0, %s294
      %s298 = sphi 0, %s297
      %s314 = sphi 0, %s298
      %s320 = sphi 0, %s322
      %s323 = sphi 0, %s320
      %s324 = sphi 0, %s323
      %s340 = sphi 0, %s324
      %s346 = sphi 0, %s348
      %s349 = sphi 0, %s346
      %s350 = sphi 0, %s349
      %s366 = sphi 0, %s350
      %s372 = sphi 0, %s374
      %s375 = sphi 0, %s372
      %s376 = sphi 0, %s375
      %s392 = sphi 0, %s376
      %s398 = sphi 0, %s400
      %s401 = sphi 0, %s398
      %s402 = sphi 0, %s401
      %s418 = sphi 0, %s402
      %s424 = sphi 0, %s426
      %s427 = sphi 0, %s424
      %s428 = sphi 0, %s427
      %s444 = sphi 0, %s428
      %s448 = sphi 0, %s448
      %s450 = sphi 0, %s448
      %s451 = sphi 0, %s450
      %s465 = sphi 0, %s451
      %s469 = sphi 0, %s469
      %s471 = sphi 0, %s469
      %s472 = sphi 0, %s471
      %s486 = sphi 0, %s472
      %s490 = sphi 0, %s490
      %s492 = sphi 0, %s490
      %s493 = sphi 0, %s492
      %s507 = sphi 0, %s493
      %s511 = sphi 0, %s511
      %s513 = sphi 0, %s511
      %s514 = sphi 0, %s513
      %s528 = sphi 0, %s514
      %s534 = sphi 0, %s536
      %s537 = sphi 0, %s534
      %s538 = sphi 0, %s537
      %s554 = sphi 0, %s538
    $region4: #{tpu_custom_call.1} parent=1 // loop_header_branch
      %30 = sbr.rel (%p28) target = $region8
    $region5: #{tpu_custom_call.1} parent=1 // loop_body
      %s32 = ssub.s32 %s27, 1
      %s33 = ssub.s32 %s27, 2
      %s40 = sadd.s32 1, %s35
      %p41 = scmp.ge.s32.totalorder %s40, 2
      %s42 = scalar_select %p41, 0, %s40
      %s43 = sadd.s32 1, %s34
      %s44 = scalar_select %p41, %s43, %s34
      %p45 = scmp.ge.s32.totalorder %s44, 1
      %s46 = scalar_select %p45, 0, %s44
      %s47 = ssub.s32 %s34, %s46
      %p48 = scmp.eq.s32.totalorder %s47, 0
      %s50 = sadd.s32 %s49, 1
      %s51 = scalar_select %p48, %s49, %s50
      %p54 = pneg %p48
      %p55 = scmp.eq.s32.totalorder %s27, 1
      %p56 = por %p54, %p55
      %p57 = scmp.ne.s32.totalorder %s49, %s52
      %p58 = scmp.eq.s32.totalorder %s27, 0
      %p59 = por %p57, %p58
      %p60 = scmp.ne.s32.totalorder %s49, %s52
      %p61 = scmp.eq.s32.totalorder %s32, 1
      %p62 = por %p60, %p61
      %p63 = scmp.ne.s32.totalorder %s52, %s53
      %p64 = scmp.eq.s32.totalorder %s32, 0
      %p65 = por %p63, %p64
      %p66 = scmp.ne.s32.totalorder %s52, %s53
      %p67 = scmp.eq.s32.totalorder %s33, 1
      %p68 = por %p66, %p67
      %p70 = scmp.ne.s32.totalorder %s53, %s69
      %p71 = scmp.eq.s32.totalorder %s33, 0
      %p72 = por %p70, %p71
      %s74 = sadd.s32 %s73, 1
      %p77 = scmp.eq.s32.totalorder %s27, 1
      %p78 = scmp.ne.s32.totalorder %s73, %s75
      %p79 = scmp.eq.s32.totalorder %s27, 0
      %p80 = por %p78, %p79
      %p81 = scmp.ne.s32.totalorder %s73, %s75
      %p82 = scmp.eq.s32.totalorder %s32, 1
      %p83 = por %p81, %p82
      %p84 = scmp.ne.s32.totalorder %s75, %s76
      %p85 = scmp.eq.s32.totalorder %s32, 0
      %p86 = por %p84, %p85
      %p87 = scmp.ne.s32.totalorder %s75, %s76
      %p88 = scmp.eq.s32.totalorder %s33, 1
      %p89 = por %p87, %p88
      %p91 = scmp.ne.s32.totalorder %s76, %s90
      %p92 = scmp.eq.s32.totalorder %s33, 0
      %p93 = por %p91, %p92
      %s95 = sadd.s32 %s94, 1
      %p98 = scmp.eq.s32.totalorder %s27, 1
      %p99 = scmp.ne.s32.totalorder %s94, %s96
      %p100 = scmp.eq.s32.totalorder %s27, 0
      %p101 = por %p99, %p100
      %p102 = scmp.ne.s32.totalorder %s94, %s96
      %p103 = scmp.eq.s32.totalorder %s32, 1
      %p104 = por %p102, %p103
      %p105 = scmp.ne.s32.totalorder %s96, %s97
      %p106 = scmp.eq.s32.totalorder %s32, 0
      %p107 = por %p105, %p106
      %p108 = scmp.ne.s32.totalorder %s96, %s97
      %p109 = scmp.eq.s32.totalorder %s33, 1
      %p110 = por %p108, %p109
      %p112 = scmp.ne.s32.totalorder %s97, %s111
      %p113 = scmp.eq.s32.totalorder %s33, 0
      %p114 = por %p112, %p113
      %s116 = sadd.s32 %s115, 1
      %p119 = scmp.eq.s32.totalorder %s27, 1
      %p120 = scmp.ne.s32.totalorder %s115, %s117
      %p121 = scmp.eq.s32.totalorder %s27, 0
      %p122 = por %p120, %p121
      %p123 = scmp.ne.s32.totalorder %s115, %s117
      %p124 = scmp.eq.s32.totalorder %s32, 1
      %p125 = por %p123, %p124
      %p126 = scmp.ne.s32.totalorder %s117, %s118
      %p127 = scmp.eq.s32.totalorder %s32, 0
      %p128 = por %p126, %p127
      %p129 = scmp.ne.s32.totalorder %s117, %s118
      %p130 = scmp.eq.s32.totalorder %s33, 1
      %p131 = por %p129, %p130
      %p133 = scmp.ne.s32.totalorder %s118, %s132
      %p134 = scmp.eq.s32.totalorder %s33, 0
      %p135 = por %p133, %p134
      %s136 = ssub.s32 %s35, %s42
      %p137 = scmp.eq.s32.totalorder %s136, 0
      %s139 = sadd.s32 %s138, 1
      %s140 = scalar_select %p137, %s138, %s139
      %p143 = pneg %p137
      %p144 = scmp.eq.s32.totalorder %s27, 1
      %p145 = por %p143, %p144
      %p146 = scmp.ne.s32.totalorder %s138, %s141
      %p147 = scmp.eq.s32.totalorder %s27, 0
      %p148 = por %p146, %p147
      %p149 = scmp.ne.s32.totalorder %s138, %s141
      %p150 = scmp.eq.s32.totalorder %s32, 1
      %p151 = por %p149, %p150
      %p152 = scmp.ne.s32.totalorder %s141, %s142
      %p153 = scmp.eq.s32.totalorder %s32, 0
      %p154 = por %p152, %p153
      %p155 = scmp.ne.s32.totalorder %s141, %s142
      %p156 = scmp.eq.s32.totalorder %s33, 1
      %p157 = por %p155, %p156
      %p159 = scmp.ne.s32.totalorder %s142, %s158
      %p160 = scmp.eq.s32.totalorder %s33, 0
      %p161 = por %p159, %p160
      %s162 = ssub.s32 %s35, %s42
      %p163 = scmp.eq.s32.totalorder %s162, 0
      %s165 = sadd.s32 %s164, 1
      %s166 = scalar_select %p163, %s164, %s165
      %p169 = pneg %p163
      %p170 = scmp.eq.s32.totalorder %s27, 1
      %p171 = por %p169, %p170
      %p172 = scmp.ne.s32.totalorder %s164, %s167
      %p173 = scmp.eq.s32.totalorder %s27, 0
      %p174 = por %p172, %p173
      %p175 = scmp.ne.s32.totalorder %s164, %s167
      %p176 = scmp.eq.s32.totalorder %s32, 1
      %p177 = por %p175, %p176
      %p178 = scmp.ne.s32.totalorder %s167, %s168
      %p179 = scmp.eq.s32.totalorder %s32, 0
      %p180 = por %p178, %p179
      %p181 = scmp.ne.s32.totalorder %s167, %s168
      %p182 = scmp.eq.s32.totalorder %s33, 1
      %p183 = por %p181, %p182
      %p185 = scmp.ne.s32.totalorder %s168, %s184
      %p186 = scmp.eq.s32.totalorder %s33, 0
      %p187 = por %p185, %p186
      %s188 = ssub.s32 %s35, %s42
      %p189 = scmp.eq.s32.totalorder %s188, 0
      %s191 = sadd.s32 %s190, 1
      %s192 = scalar_select %p189, %s190, %s191
      %p195 = pneg %p189
      %p196 = scmp.eq.s32.totalorder %s27, 1
      %p197 = por %p195, %p196
      %p198 = scmp.ne.s32.totalorder %s190, %s193
      %p199 = scmp.eq.s32.totalorder %s27, 0
      %p200 = por %p198, %p199
      %p201 = scmp.ne.s32.totalorder %s190, %s193
      %p202 = scmp.eq.s32.totalorder %s32, 1
      %p203 = por %p201, %p202
      %p204 = scmp.ne.s32.totalorder %s193, %s194
      %p205 = scmp.eq.s32.totalorder %s32, 0
      %p206 = por %p204, %p205
      %p207 = scmp.ne.s32.totalorder %s193, %s194
      %p208 = scmp.eq.s32.totalorder %s33, 1
      %p209 = por %p207, %p208
      %p211 = scmp.ne.s32.totalorder %s194, %s210
      %p212 = scmp.eq.s32.totalorder %s33, 0
      %p213 = por %p211, %p212
      %s214 = ssub.s32 %s35, %s42
      %p215 = scmp.eq.s32.totalorder %s214, 0
      %s217 = sadd.s32 %s216, 1
      %s218 = scalar_select %p215, %s216, %s217
      %p221 = pneg %p215
      %p222 = scmp.eq.s32.totalorder %s27, 1
      %p223 = por %p221, %p222
      %p224 = scmp.ne.s32.totalorder %s216, %s219
      %p225 = scmp.eq.s32.totalorder %s27, 0
      %p226 = por %p224, %p225
      %p227 = scmp.ne.s32.totalorder %s216, %s219
      %p228 = scmp.eq.s32.totalorder %s32, 1
      %p229 = por %p227, %p228
      %p230 = scmp.ne.s32.totalorder %s219, %s220
      %p231 = scmp.eq.s32.totalorder %s32, 0
      %p232 = por %p230, %p231
      %p233 = scmp.ne.s32.totalorder %s219, %s220
      %p234 = scmp.eq.s32.totalorder %s33, 1
      %p235 = por %p233, %p234
      %p237 = scmp.ne.s32.totalorder %s220, %s236
      %p238 = scmp.eq.s32.totalorder %s33, 0
      %p239 = por %p237, %p238
      %s240 = ssub.s32 %s35, %s42
      %p241 = scmp.eq.s32.totalorder %s240, 0
      %s243 = sadd.s32 %s242, 1
      %s244 = scalar_select %p241, %s242, %s243
      %p247 = pneg %p241
      %p248 = scmp.eq.s32.totalorder %s27, 1
      %p249 = por %p247, %p248
      %p250 = scmp.ne.s32.totalorder %s242, %s245
      %p251 = scmp.eq.s32.totalorder %s27, 0
      %p252 = por %p250, %p251
      %p253 = scmp.ne.s32.totalorder %s242, %s245
      %p254 = scmp.eq.s32.totalorder %s32, 1
      %p255 = por %p253, %p254
      %p256 = scmp.ne.s32.totalorder %s245, %s246
      %p257 = scmp.eq.s32.totalorder %s32, 0
      %p258 = por %p256, %p257
      %p259 = scmp.ne.s32.totalorder %s245, %s246
      %p260 = scmp.eq.s32.totalorder %s33, 1
      %p261 = por %p259, %p260
      %p263 = scmp.ne.s32.totalorder %s246, %s262
      %p264 = scmp.eq.s32.totalorder %s33, 0
      %p265 = por %p263, %p264
      %s266 = ssub.s32 %s35, %s42
      %p267 = scmp.eq.s32.totalorder %s266, 0
      %s269 = sadd.s32 %s268, 1
      %s270 = scalar_select %p267, %s268, %s269
      %p273 = pneg %p267
      %p274 = scmp.eq.s32.totalorder %s27, 1
      %p275 = por %p273, %p274
      %p276 = scmp.ne.s32.totalorder %s268, %s271
      %p277 = scmp.eq.s32.totalorder %s27, 0
      %p278 = por %p276, %p277
      %p279 = scmp.ne.s32.totalorder %s268, %s271
      %p280 = scmp.eq.s32.totalorder %s32, 1
      %p281 = por %p279, %p280
      %p282 = scmp.ne.s32.totalorder %s271, %s272
      %p283 = scmp.eq.s32.totalorder %s32, 0
      %p284 = por %p282, %p283
      %p285 = scmp.ne.s32.totalorder %s271, %s272
      %p286 = scmp.eq.s32.totalorder %s33, 1
      %p287 = por %p285, %p286
      %p289 = scmp.ne.s32.totalorder %s272, %s288
      %p290 = scmp.eq.s32.totalorder %s33, 0
      %p291 = por %p289, %p290
      %s292 = ssub.s32 %s35, %s42
      %p293 = scmp.eq.s32.totalorder %s292, 0
      %s295 = sadd.s32 %s294, 1
      %s296 = scalar_select %p293, %s294, %s295
      %p299 = pneg %p293
      %p300 = scmp.eq.s32.totalorder %s27, 1
      %p301 = por %p299, %p300
      %p302 = scmp.ne.s32.totalorder %s294, %s297
      %p303 = scmp.eq.s32.totalorder %s27, 0
      %p304 = por %p302, %p303
      %p305 = scmp.ne.s32.totalorder %s294, %s297
      %p306 = scmp.eq.s32.totalorder %s32, 1
      %p307 = por %p305, %p306
      %p308 = scmp.ne.s32.totalorder %s297, %s298
      %p309 = scmp.eq.s32.totalorder %s32, 0
      %p310 = por %p308, %p309
      %p311 = scmp.ne.s32.totalorder %s297, %s298
      %p312 = scmp.eq.s32.totalorder %s33, 1
      %p313 = por %p311, %p312
      %p315 = scmp.ne.s32.totalorder %s298, %s314
      %p316 = scmp.eq.s32.totalorder %s33, 0
      %p317 = por %p315, %p316
      %s318 = ssub.s32 %s35, %s42
      %p319 = scmp.eq.s32.totalorder %s318, 0
      %s321 = sadd.s32 %s320, 1
      %s322 = scalar_select %p319, %s320, %s321
      %p325 = pneg %p319
      %p326 = scmp.eq.s32.totalorder %s27, 1
      %p327 = por %p325, %p326
      %p328 = scmp.ne.s32.totalorder %s320, %s323
      %p329 = scmp.eq.s32.totalorder %s27, 0
      %p330 = por %p328, %p329
      %p331 = scmp.ne.s32.totalorder %s320, %s323
      %p332 = scmp.eq.s32.totalorder %s32, 1
      %p333 = por %p331, %p332
      %p334 = scmp.ne.s32.totalorder %s323, %s324
      %p335 = scmp.eq.s32.totalorder %s32, 0
      %p336 = por %p334, %p335
      %p337 = scmp.ne.s32.totalorder %s323, %s324
      %p338 = scmp.eq.s32.totalorder %s33, 1
      %p339 = por %p337, %p338
      %p341 = scmp.ne.s32.totalorder %s324, %s340
      %p342 = scmp.eq.s32.totalorder %s33, 0
      %p343 = por %p341, %p342
      %s344 = ssub.s32 %s35, %s42
      %p345 = scmp.eq.s32.totalorder %s344, 0
      %s347 = sadd.s32 %s346, 1
      %s348 = scalar_select %p345, %s346, %s347
      %p351 = pneg %p345
      %p352 = scmp.eq.s32.totalorder %s27, 1
      %p353 = por %p351, %p352
      %p354 = scmp.ne.s32.totalorder %s346, %s349
      %p355 = scmp.eq.s32.totalorder %s27, 0
      %p356 = por %p354, %p355
      %p357 = scmp.ne.s32.totalorder %s346, %s349
      %p358 = scmp.eq.s32.totalorder %s32, 1
      %p359 = por %p357, %p358
      %p360 = scmp.ne.s32.totalorder %s349, %s350
      %p361 = scmp.eq.s32.totalorder %s32, 0
      %p362 = por %p360, %p361
      %p363 = scmp.ne.s32.totalorder %s349, %s350
      %p364 = scmp.eq.s32.totalorder %s33, 1
      %p365 = por %p363, %p364
      %p367 = scmp.ne.s32.totalorder %s350, %s366
      %p368 = scmp.eq.s32.totalorder %s33, 0
      %p369 = por %p367, %p368
      %s370 = ssub.s32 %s35, %s42
      %p371 = scmp.eq.s32.totalorder %s370, 0
      %s373 = sadd.s32 %s372, 1
      %s374 = scalar_select %p371, %s372, %s373
      %p377 = pneg %p371
      %p378 = scmp.eq.s32.totalorder %s27, 1
      %p379 = por %p377, %p378
      %p380 = scmp.ne.s32.totalorder %s372, %s375
      %p381 = scmp.eq.s32.totalorder %s27, 0
      %p382 = por %p380, %p381
      %p383 = scmp.ne.s32.totalorder %s372, %s375
      %p384 = scmp.eq.s32.totalorder %s32, 1
      %p385 = por %p383, %p384
      %p386 = scmp.ne.s32.totalorder %s375, %s376
      %p387 = scmp.eq.s32.totalorder %s32, 0
      %p388 = por %p386, %p387
      %p389 = scmp.ne.s32.totalorder %s375, %s376
      %p390 = scmp.eq.s32.totalorder %s33, 1
      %p391 = por %p389, %p390
      %p393 = scmp.ne.s32.totalorder %s376, %s392
      %p394 = scmp.eq.s32.totalorder %s33, 0
      %p395 = por %p393, %p394
      %s396 = ssub.s32 %s35, %s42
      %p397 = scmp.eq.s32.totalorder %s396, 0
      %s399 = sadd.s32 %s398, 1
      %s400 = scalar_select %p397, %s398, %s399
      %p403 = pneg %p397
      %p404 = scmp.eq.s32.totalorder %s27, 1
      %p405 = por %p403, %p404
      %p406 = scmp.ne.s32.totalorder %s398, %s401
      %p407 = scmp.eq.s32.totalorder %s27, 0
      %p408 = por %p406, %p407
      %p409 = scmp.ne.s32.totalorder %s398, %s401
      %p410 = scmp.eq.s32.totalorder %s32, 1
      %p411 = por %p409, %p410
      %p412 = scmp.ne.s32.totalorder %s401, %s402
      %p413 = scmp.eq.s32.totalorder %s32, 0
      %p414 = por %p412, %p413
      %p415 = scmp.ne.s32.totalorder %s401, %s402
      %p416 = scmp.eq.s32.totalorder %s33, 1
      %p417 = por %p415, %p416
      %p419 = scmp.ne.s32.totalorder %s402, %s418
      %p420 = scmp.eq.s32.totalorder %s33, 0
      %p421 = por %p419, %p420
      %s422 = ssub.s32 %s35, %s42
      %p423 = scmp.eq.s32.totalorder %s422, 0
      %s425 = sadd.s32 %s424, 1
      %s426 = scalar_select %p423, %s424, %s425
      %p429 = pneg %p423
      %p430 = scmp.eq.s32.totalorder %s27, 1
      %p431 = por %p429, %p430
      %p432 = scmp.ne.s32.totalorder %s424, %s427
      %p433 = scmp.eq.s32.totalorder %s27, 0
      %p434 = por %p432, %p433
      %p435 = scmp.ne.s32.totalorder %s424, %s427
      %p436 = scmp.eq.s32.totalorder %s32, 1
      %p437 = por %p435, %p436
      %p438 = scmp.ne.s32.totalorder %s427, %s428
      %p439 = scmp.eq.s32.totalorder %s32, 0
      %p440 = por %p438, %p439
      %p441 = scmp.ne.s32.totalorder %s427, %s428
      %p442 = scmp.eq.s32.totalorder %s33, 1
      %p443 = por %p441, %p442
      %p445 = scmp.ne.s32.totalorder %s428, %s444
      %p446 = scmp.eq.s32.totalorder %s33, 0
      %p447 = por %p445, %p446
      %s449 = sadd.s32 %s448, 1
      %p452 = scmp.eq.s32.totalorder %s27, 1
      %p453 = scmp.ne.s32.totalorder %s448, %s450
      %p454 = scmp.eq.s32.totalorder %s27, 0
      %p455 = por %p453, %p454
      %p456 = scmp.ne.s32.totalorder %s448, %s450
      %p457 = scmp.eq.s32.totalorder %s32, 1
      %p458 = por %p456, %p457
      %p459 = scmp.ne.s32.totalorder %s450, %s451
      %p460 = scmp.eq.s32.totalorder %s32, 0
      %p461 = por %p459, %p460
      %p462 = scmp.ne.s32.totalorder %s450, %s451
      %p463 = scmp.eq.s32.totalorder %s33, 1
      %p464 = por %p462, %p463
      %p466 = scmp.ne.s32.totalorder %s451, %s465
      %p467 = scmp.eq.s32.totalorder %s33, 0
      %p468 = por %p466, %p467
      %s470 = sadd.s32 %s469, 1
      %p473 = scmp.eq.s32.totalorder %s27, 1
      %p474 = scmp.ne.s32.totalorder %s469, %s471
      %p475 = scmp.eq.s32.totalorder %s27, 0
      %p476 = por %p474, %p475
      %p477 = scmp.ne.s32.totalorder %s469, %s471
      %p478 = scmp.eq.s32.totalorder %s32, 1
      %p479 = por %p477, %p478
      %p480 = scmp.ne.s32.totalorder %s471, %s472
      %p481 = scmp.eq.s32.totalorder %s32, 0
      %p482 = por %p480, %p481
      %p483 = scmp.ne.s32.totalorder %s471, %s472
      %p484 = scmp.eq.s32.totalorder %s33, 1
      %p485 = por %p483, %p484
      %p487 = scmp.ne.s32.totalorder %s472, %s486
      %p488 = scmp.eq.s32.totalorder %s33, 0
      %p489 = por %p487, %p488
      %s491 = sadd.s32 %s490, 1
      %p494 = scmp.eq.s32.totalorder %s27, 1
      %p495 = scmp.ne.s32.totalorder %s490, %s492
      %p496 = scmp.eq.s32.totalorder %s27, 0
      %p497 = por %p495, %p496
      %p498 = scmp.ne.s32.totalorder %s490, %s492
      %p499 = scmp.eq.s32.totalorder %s32, 1
      %p500 = por %p498, %p499
      %p501 = scmp.ne.s32.totalorder %s492, %s493
      %p502 = scmp.eq.s32.totalorder %s32, 0
      %p503 = por %p501, %p502
      %p504 = scmp.ne.s32.totalorder %s492, %s493
      %p505 = scmp.eq.s32.totalorder %s33, 1
      %p506 = por %p504, %p505
      %p508 = scmp.ne.s32.totalorder %s493, %s507
      %p509 = scmp.eq.s32.totalorder %s33, 0
      %p510 = por %p508, %p509
      %s512 = sadd.s32 %s511, 1
      %p515 = scmp.eq.s32.totalorder %s27, 1
      %p516 = scmp.ne.s32.totalorder %s511, %s513
      %p517 = scmp.eq.s32.totalorder %s27, 0
      %p518 = por %p516, %p517
      %p519 = scmp.ne.s32.totalorder %s511, %s513
      %p520 = scmp.eq.s32.totalorder %s32, 1
      %p521 = por %p519, %p520
      %p522 = scmp.ne.s32.totalorder %s513, %s514
      %p523 = scmp.eq.s32.totalorder %s32, 0
      %p524 = por %p522, %p523
      %p525 = scmp.ne.s32.totalorder %s513, %s514
      %p526 = scmp.eq.s32.totalorder %s33, 1
      %p527 = por %p525, %p526
      %p529 = scmp.ne.s32.totalorder %s514, %s528
      %p530 = scmp.eq.s32.totalorder %s33, 0
      %p531 = por %p529, %p530
      %s532 = ssub.s32 %s34, %s46
      %p533 = scmp.eq.s32.totalorder %s532, 0
      %s535 = sadd.s32 %s534, 1
      %s536 = scalar_select %p533, %s534, %s535
      %p539 = pneg %p533
      %p540 = scmp.eq.s32.totalorder %s27, 1
      %p541 = por %p539, %p540
      %p542 = scmp.ne.s32.totalorder %s534, %s537
      %p543 = scmp.eq.s32.totalorder %s27, 0
      %p544 = por %p542, %p543
      %p545 = scmp.ne.s32.totalorder %s534, %s537
      %p546 = scmp.eq.s32.totalorder %s32, 1
      %p547 = por %p545, %p546
      %p548 = scmp.ne.s32.totalorder %s537, %s538
      %p549 = scmp.eq.s32.totalorder %s32, 0
      %p550 = por %p548, %p549
      %p551 = scmp.ne.s32.totalorder %s537, %s538
      %p552 = scmp.eq.s32.totalorder %s33, 1
      %p553 = por %p551, %p552
      %p555 = scmp.ne.s32.totalorder %s538, %s554
      %p556 = scmp.eq.s32.totalorder %s33, 0
      %p557 = por %p555, %p556
      %p558 = scmp.le.s32.totalorder 1, %s27
      %p559 = scmp.lt.s32.totalorder %s27, 3
      %p560 = pnand %p558, %p559
      %p561 = pneg %p560
      // Predicated region
      $region9: #{tpu_custom_call.1} parent=5 // pred_check
        _
      $region10: #{tpu_custom_call.1} parent=5 // pred_check_branch
        %563 = sbr.rel (%p560) target = $region12
      $region11: #{tpu_custom_call.1} parent=5 // pred_region
        %s564 = ssub.s32 %s27, 1
        // Predicated region
        $region13: #{tpu_custom_call.1} parent=11 // pred_check
          %p565 = pneg %p65
        $region14: #{tpu_custom_call.1} parent=11 // pred_check_branch
          %567 = sbr.rel (%p565) target = $region16
        $region15: #{tpu_custom_call.1} parent=11 // pred_region
          %p568 = scmp.lt.s32.totalorder %s36, 0
          %s569 = scalar_select %p568, %s36, 0
          %s570 = smul.addr %s569, 16
          %s571 = smul.addr %s570, 4
          %s572 = scalar_lea.vmem %s0, %s571
        $region16: #{tpu_custom_call.1} parent=11 // pred_fallthru
          _
        // Predicated region
        $region17: #{tpu_custom_call.1} parent=11 // pred_check
          %p573 = pneg %p86
        $region18: #{tpu_custom_call.1} parent=11 // pred_check_branch
          %575 = sbr.rel (%p573) target = $region20
        $region19: #{tpu_custom_call.1} parent=11 // pred_region
          _
        $region20: #{tpu_custom_call.1} parent=11 // pred_fallthru
          _
        // Predicated region
        $region21: #{tpu_custom_call.1} parent=11 // pred_check
          %p576 = pneg %p107
        $region22: #{tpu_custom_call.1} parent=11 // pred_check_branch
          %578 = sbr.rel (%p576) target = $region24
        $region23: #{tpu_custom_call.1} parent=11 // pred_region
          _
        $region24: #{tpu_custom_call.1} parent=11 // pred_fallthru
          _
        // Predicated region
        $region25: #{tpu_custom_call.1} parent=11 // pred_check
          %p579 = pneg %p128
        $region26: #{tpu_custom_call.1} parent=11 // pred_check_branch
          %581 = sbr.rel (%p579) target = $region28
        $region27: #{tpu_custom_call.1} parent=11 // pred_region
          _
        $region28: #{tpu_custom_call.1} parent=11 // pred_fallthru
          _
        // Predicated region
        $region29: #{tpu_custom_call.1} parent=11 // pred_check
          %p582 = pneg %p461
        $region30: #{tpu_custom_call.1} parent=11 // pred_check_branch
          %584 = sbr.rel (%p582) target = $region32
        $region31: #{tpu_custom_call.1} parent=11 // pred_region
          _
        $region32: #{tpu_custom_call.1} parent=11 // pred_fallthru
          _
        // Predicated region
        $region33: #{tpu_custom_call.1} parent=11 // pred_check
          %p585 = pneg %p482
        $region34: #{tpu_custom_call.1} parent=11 // pred_check_branch
          %587 = sbr.rel (%p585) target = $region36
        $region35: #{tpu_custom_call.1} parent=11 // pred_region
          _
        $region36: #{tpu_custom_call.1} parent=11 // pred_fallthru
          _
        // Predicated region
        $region37: #{tpu_custom_call.1} parent=11 // pred_check
          %p588 = pneg %p503
        $region38: #{tpu_custom_call.1} parent=11 // pred_check_branch
          %590 = sbr.rel (%p588) target = $region40
        $region39: #{tpu_custom_call.1} parent=11 // pred_region
          _
        $region40: #{tpu_custom_call.1} parent=11 // pred_fallthru
          _
        // Predicated region
        $region41: #{tpu_custom_call.1} parent=11 // pred_check
          %p591 = pneg %p524
        $region42: #{tpu_custom_call.1} parent=11 // pred_check_branch
          %593 = sbr.rel (%p591) target = $region44
        $region43: #{tpu_custom_call.1} parent=11 // pred_region
          _
        $region44: #{tpu_custom_call.1} parent=11 // pred_fallthru
          _
      $region12: #{tpu_custom_call.1} parent=5 // pred_fallthru
        _
      %p594 = scmp.lt.s32.totalorder %s27, 2
      // Predicated region
      $region45: #{tpu_custom_call.1} parent=5 // pred_check
        %p595 = pneg %p594
      $region46: #{tpu_custom_call.1} parent=5 // pred_check_branch
        %597 = sbr.rel (%p595) target = $region48
      $region47: #{tpu_custom_call.1} parent=5 // pred_region
        // Predicated region
        $region49: #{tpu_custom_call.1} parent=47 // pred_check
          %p598 = pneg %p148
        $region50: #{tpu_custom_call.1} parent=47 // pred_check_branch
          %600 = sbr.rel (%p598) target = $region52
        $region51: #{tpu_custom_call.1} parent=47 // pred_region
          %p601 = scmp.lt.s32.totalorder %s35, 1
          %s602 = scalar_select %p601, %s35, 1
          %s603 = scalar_lea.vmem %s4, %s602
        $region52: #{tpu_custom_call.1} parent=47 // pred_fallthru
          _
        // Predicated region
        $region53: #{tpu_custom_call.1} parent=47 // pred_check
          %p604 = pneg %p174
        $region54: #{tpu_custom_call.1} parent=47 // pred_check_branch
          %606 = sbr.rel (%p604) target = $region56
        $region55: #{tpu_custom_call.1} parent=47 // pred_region
          %p607 = scmp.lt.s32.totalorder %s35, 1
          %s608 = scalar_select %p607, %s35, 1
          %s609 = scalar_lea.vmem %s5, %s608
        $region56: #{tpu_custom_call.1} parent=47 // pred_fallthru
          _
        // Predicated region
        $region57: #{tpu_custom_call.1} parent=47 // pred_check
          %p610 = pneg %p200
        $region58: #{tpu_custom_call.1} parent=47 // pred_check_branch
          %612 = sbr.rel (%p610) target = $region60
        $region59: #{tpu_custom_call.1} parent=47 // pred_region
          %p613 = scmp.lt.s32.totalorder %s35, 1
          %s614 = scalar_select %p613, %s35, 1
          %s615 = smul.addr %s614, 4
          %s616 = smul.addr %s615, 4
          %s617 = scalar_lea.vmem %s6, %s616
        $region60: #{tpu_custom_call.1} parent=47 // pred_fallthru
          _
        // Predicated region
        $region61: #{tpu_custom_call.1} parent=47 // pred_check
          %p618 = pneg %p226
        $region62: #{tpu_custom_call.1} parent=47 // pred_check_branch
          %620 = sbr.rel (%p618) target = $region64
        $region63: #{tpu_custom_call.1} parent=47 // pred_region
          %p621 = scmp.lt.s32.totalorder %s35, 1
          %s622 = scalar_select %p621, %s35, 1
          %s623 = scalar_lea.vmem %s7, %s622
        $region64: #{tpu_custom_call.1} parent=47 // pred_fallthru
          _
        // Predicated region
        $region65: #{tpu_custom_call.1} parent=47 // pred_check
          %p624 = pneg %p252
        $region66: #{tpu_custom_call.1} parent=47 // pred_check_branch
          %626 = sbr.rel (%p624) target = $region68
        $region67: #{tpu_custom_call.1} parent=47 // pred_region
          %p627 = scmp.lt.s32.totalorder %s35, 1
          %s628 = scalar_select %p627, %s35, 1
          %s629 = smul.addr %s628, 4
          %s630 = smul.addr %s629, 4
          %s631 = scalar_lea.vmem %s8, %s630
        $region68: #{tpu_custom_call.1} parent=47 // pred_fallthru
          _
        // Predicated region
        $region69: #{tpu_custom_call.1} parent=47 // pred_check
          %p632 = pneg %p278
        $region70: #{tpu_custom_call.1} parent=47 // pred_check_branch
          %634 = sbr.rel (%p632) target = $region72
        $region71: #{tpu_custom_call.1} parent=47 // pred_region
          %p635 = scmp.lt.s32.totalorder %s35, 1
          %s636 = scalar_select %p635, %s35, 1
          %s637 = scalar_lea.vmem %s9, %s636
        $region72: #{tpu_custom_call.1} parent=47 // pred_fallthru
          _
        // Predicated region
        $region73: #{tpu_custom_call.1} parent=47 // pred_check
          %p638 = pneg %p304
        $region74: #{tpu_custom_call.1} parent=47 // pred_check_branch
          %640 = sbr.rel (%p638) target = $region76
        $region75: #{tpu_custom_call.1} parent=47 // pred_region
          %p641 = scmp.lt.s32.totalorder %s35, 1
          %s642 = scalar_select %p641, %s35, 1
          %s643 = scalar_lea.vmem %s10, %s642
        $region76: #{tpu_custom_call.1} parent=47 // pred_fallthru
          _
        // Predicated region
        $region77: #{tpu_custom_call.1} parent=47 // pred_check
          %p644 = pneg %p330
        $region78: #{tpu_custom_call.1} parent=47 // pred_check_branch
          %646 = sbr.rel (%p644) target = $region80
        $region79: #{tpu_custom_call.1} parent=47 // pred_region
          %p647 = scmp.lt.s32.totalorder %s35, 1
          %s648 = scalar_select %p647, %s35, 1
          %s649 = scalar_lea.vmem %s11, %s648
        $region80: #{tpu_custom_call.1} parent=47 // pred_fallthru
          _
        // Predicated region
        $region81: #{tpu_custom_call.1} parent=47 // pred_check
          %p650 = pneg %p356
        $region82: #{tpu_custom_call.1} parent=47 // pred_check_branch
          %652 = sbr.rel (%p650) target = $region84
        $region83: #{tpu_custom_call.1} parent=47 // pred_region
          %p653 = scmp.lt.s32.totalorder %s35, 1
          %s654 = scalar_select %p653, %s35, 1
          %s655 = smul.addr %s654, 4
          %s656 = smul.addr %s655, 4
          %s657 = scalar_lea.vmem %s12, %s656
        $region84: #{tpu_custom_call.1} parent=47 // pred_fallthru
          _
        // Predicated region
        $region85: #{tpu_custom_call.1} parent=47 // pred_check
          %p658 = pneg %p382
        $region86: #{tpu_custom_call.1} parent=47 // pred_check_branch
          %660 = sbr.rel (%p658) target = $region88
        $region87: #{tpu_custom_call.1} parent=47 // pred_region
          %p661 = scmp.lt.s32.totalorder %s35, 1
          %s662 = scalar_select %p661, %s35, 1
          %s663 = scalar_lea.vmem %s13, %s662
        $region88: #{tpu_custom_call.1} parent=47 // pred_fallthru
          _
        // Predicated region
        $region89: #{tpu_custom_call.1} parent=47 // pred_check
          %p664 = pneg %p408
        $region90: #{tpu_custom_call.1} parent=47 // pred_check_branch
          %666 = sbr.rel (%p664) target = $region92
        $region91: #{tpu_custom_call.1} parent=47 // pred_region
          %p667 = scmp.lt.s32.totalorder %s35, 1
          %s668 = scalar_select %p667, %s35, 1
          %s669 = smul.addr %s668, 16
          %s670 = smul.addr %s669, 4
          %s671 = scalar_lea.vmem %s14, %s670
        $region92: #{tpu_custom_call.1} parent=47 // pred_fallthru
          _
        // Predicated region
        $region93: #{tpu_custom_call.1} parent=47 // pred_check
          %p672 = pneg %p434
        $region94: #{tpu_custom_call.1} parent=47 // pred_check_branch
          %674 = sbr.rel (%p672) target = $region96
        $region95: #{tpu_custom_call.1} parent=47 // pred_region
          %p675 = scmp.lt.s32.totalorder %s35, 1
          %s676 = scalar_select %p675, %s35, 1
          %s677 = scalar_lea.vmem %s15, %s676
        $region96: #{tpu_custom_call.1} parent=47 // pred_fallthru
          _
      $region48: #{tpu_custom_call.1} parent=5 // pred_fallthru
        _
      %p678 = scmp.le.s32.totalorder 1, %s27
      %p679 = scmp.lt.s32.totalorder %s27, 3
      %p680 = pnand %p678, %p679
      %p681 = pneg %p680
      // Predicated region
      $region97: #{tpu_custom_call.1} parent=5 // pred_check
        _
      $region98: #{tpu_custom_call.1} parent=5 // pred_check_branch
        %683 = sbr.rel (%p680) target = $region100
      $region99: #{tpu_custom_call.1} parent=5 // pred_region
        %s684 = ssub.s32 %s27, 1
        %p685 = scmp.lt.s32.totalorder %s36, 0
        %s686 = scalar_select %p685, %s36, 0
        %s687 = smul.addr %s686, 16
        %s688 = smul.addr %s687, 4
        %s689 = scalar_lea.vmem %s0, %s688
        %p690 = pneg %p65
        %p691 = pneg %p62
        %p692 = pneg %p86
        %p693 = pneg %p83
        %p694 = pneg %p107
        %p695 = pneg %p104
        %p696 = pneg %p128
        %p697 = pneg %p125
        %p698 = scmp.lt.s32.totalorder %s37, 1
        %s699 = scalar_select %p698, %s37, 1
        %s700 = scalar_lea.vmem %s4, %s699
        %p701 = pneg %p154
        %p702 = pneg %p151
        %p703 = scmp.lt.s32.totalorder %s37, 1
        %s704 = scalar_select %p703, %s37, 1
        %s705 = scalar_lea.vmem %s5, %s704
        %p706 = pneg %p180
        %p707 = pneg %p177
        %p708 = scmp.lt.s32.totalorder %s37, 1
        %s709 = scalar_select %p708, %s37, 1
        %s710 = smul.addr %s709, 4
        %s711 = smul.addr %s710, 4
        %s712 = scalar_lea.vmem %s6, %s711
        %p713 = pneg %p206
        %p714 = pneg %p203
        %p715 = scmp.lt.s32.totalorder %s37, 1
        %s716 = scalar_select %p715, %s37, 1
        %s717 = scalar_lea.vmem %s7, %s716
        %p718 = pneg %p232
        %p719 = pneg %p229
        %p720 = scmp.lt.s32.totalorder %s37, 1
        %s721 = scalar_select %p720, %s37, 1
        %s722 = smul.addr %s721, 4
        %s723 = smul.addr %s722, 4
        %s724 = scalar_lea.vmem %s8, %s723
        %p725 = pneg %p258
        %p726 = pneg %p255
        %p727 = scmp.lt.s32.totalorder %s37, 1
        %s728 = scalar_select %p727, %s37, 1
        %s729 = scalar_lea.vmem %s9, %s728
        %p730 = pneg %p284
        %p731 = pneg %p281
        %p732 = scmp.lt.s32.totalorder %s37, 1
        %s733 = scalar_select %p732, %s37, 1
        %s734 = scalar_lea.vmem %s10, %s733
        %p735 = pneg %p310
        %p736 = pneg %p307
        %p737 = scmp.lt.s32.totalorder %s37, 1
        %s738 = scalar_select %p737, %s37, 1
        %s739 = scalar_lea.vmem %s11, %s738
        %p740 = pneg %p336
        %p741 = pneg %p333
        %p742 = scmp.lt.s32.totalorder %s37, 1
        %s743 = scalar_select %p742, %s37, 1
        %s744 = smul.addr %s743, 4
        %s745 = smul.addr %s744, 4
        %s746 = scalar_lea.vmem %s12, %s745
        %p747 = pneg %p362
        %p748 = pneg %p359
        %p749 = scmp.lt.s32.totalorder %s37, 1
        %s750 = scalar_select %p749, %s37, 1
        %s751 = scalar_lea.vmem %s13, %s750
        %p752 = pneg %p388
        %p753 = pneg %p385
        %p754 = scmp.lt.s32.totalorder %s37, 1
        %s755 = scalar_select %p754, %s37, 1
        %s756 = smul.addr %s755, 16
        %s757 = smul.addr %s756, 4
        %s758 = scalar_lea.vmem %s14, %s757
        %p759 = pneg %p414
        %p760 = pneg %p411
        %p761 = scmp.lt.s32.totalorder %s37, 1
        %s762 = scalar_select %p761, %s37, 1
        %s763 = scalar_lea.vmem %s15, %s762
        %p764 = pneg %p440
        %p765 = pneg %p437
        %p766 = pneg %p461
        %p767 = pneg %p458
        %p768 = pneg %p482
        %p769 = pneg %p479
        %p770 = pneg %p503
        %p771 = pneg %p500
        %p772 = pneg %p524
        %p773 = pneg %p521
        %p774 = pneg %p550
        %p775 = pneg %p547
        %p776 = scmp.lt.s32.totalorder %s36, 0
        %s777 = scalar_select %p776, %s36, 0
        %s778 = smul.addr %s777, 16
        %s779 = smul.addr %s778, 4
        %s780 = scalar_lea.vmem %s0, %s779
        %p781 = scmp.lt.s32.totalorder %s37, 1
        %s782 = scalar_select %p781, %s37, 1
        %s783 = scalar_lea.vmem %s4, %s782
        %p784 = scmp.lt.s32.totalorder %s37, 1
        %s785 = scalar_select %p784, %s37, 1
        %s786 = scalar_lea.vmem %s5, %s785
        %p787 = scmp.lt.s32.totalorder %s37, 1
        %s788 = scalar_select %p787, %s37, 1
        %s789 = smul.addr %s788, 4
        %s790 = smul.addr %s789, 4
        %s791 = scalar_lea.vmem %s6, %s790
        %p792 = scmp.lt.s32.totalorder %s37, 1
        %s793 = scalar_select %p792, %s37, 1
        %s794 = scalar_lea.vmem %s7, %s793
        %p795 = scmp.lt.s32.totalorder %s37, 1
        %s796 = scalar_select %p795, %s37, 1
        %s797 = smul.addr %s796, 4
        %s798 = smul.addr %s797, 4
        %s799 = scalar_lea.vmem %s8, %s798
        %p800 = scmp.lt.s32.totalorder %s37, 1
        %s801 = scalar_select %p800, %s37, 1
        %s802 = scalar_lea.vmem %s9, %s801
        %p803 = scmp.lt.s32.totalorder %s37, 1
        %s804 = scalar_select %p803, %s37, 1
        %s805 = scalar_lea.vmem %s10, %s804
        %p806 = scmp.lt.s32.totalorder %s37, 1
        %s807 = scalar_select %p806, %s37, 1
        %s808 = scalar_lea.vmem %s11, %s807
        %p809 = scmp.lt.s32.totalorder %s37, 1
        %s810 = scalar_select %p809, %s37, 1
        %s811 = smul.addr %s810, 4
        %s812 = smul.addr %s811, 4
        %s813 = scalar_lea.vmem %s12, %s812
        %p814 = scmp.lt.s32.totalorder %s37, 1
        %s815 = scalar_select %p814, %s37, 1
        %s816 = scalar_lea.vmem %s13, %s815
        %p817 = scmp.lt.s32.totalorder %s37, 1
        %s818 = scalar_select %p817, %s37, 1
        %s819 = smul.addr %s818, 16
        %s820 = smul.addr %s819, 4
        %s821 = scalar_lea.vmem %s14, %s820
        %p822 = scmp.lt.s32.totalorder %s37, 1
        %s823 = scalar_select %p822, %s37, 1
        %s824 = scalar_lea.vmem %s15, %s823
        %p826 = scmp.eq.s32.totalorder %s37, 0
        // Predicated region
        $region101: #{tpu_custom_call.1} parent=99 // pred_check
          %p827 = pneg %p826
        $region102: #{tpu_custom_call.1} parent=99 // pred_check_branch
          %829 = sbr.rel (%p827) target = $region104
        $region103: #{tpu_custom_call.1} parent=99 // pred_region
          %v830 = vld [vmem:[%s780] sm:$0xf]
          %v831 = vld [vmem:[%s780 + $0x4] sm:$0xf]
          %v832 = vld [vmem:[%s780 + $0x8] sm:$0xf]
          %v833 = vld [vmem:[%s780 + $0xc] sm:$0xf]
          %v834 = vld [vmem:[%s780 + $0x10] sm:$0xf]
          %v835 = vld [vmem:[%s780 + $0x14] sm:$0xf]
          %v836 = vld [vmem:[%s780 + $0x18] sm:$0xf]
          %v837 = vld [vmem:[%s780 + $0x1c] sm:$0xf]
          %v838 = vld [vmem:[%s780 + $0x20] sm:$0xf]
          %v839 = vld [vmem:[%s780 + $0x24] sm:$0xf]
          %v840 = vld [vmem:[%s780 + $0x28] sm:$0xf]
          %v841 = vld [vmem:[%s780 + $0x2c] sm:$0xf]
          %v842 = vld [vmem:[%s780 + $0x30] sm:$0xf]
          %v843 = vld [vmem:[%s780 + $0x34] sm:$0xf]
          %v844 = vld [vmem:[%s780 + $0x38] sm:$0xf]
          %v845 = vld [vmem:[%s780 + $0x3c] sm:$0xf]
          %v846 = vld [vmem:[%s1] sm:$0xf]
          %v847 = vld [vmem:[%s1 + $0x4] sm:$0xf]
          %v848 = vld [vmem:[%s1 + $0x8] sm:$0xf]
          %v849 = vld [vmem:[%s1 + $0xc] sm:$0xf]
          %v850 = vld [vmem:[%s1 + $0x10] sm:$0xf]
          %v851 = vld [vmem:[%s1 + $0x14] sm:$0xf]
          %v852 = vld [vmem:[%s1 + $0x18] sm:$0xf]
          %v853 = vld [vmem:[%s1 + $0x1c] sm:$0xf]
          %v854 = vld [vmem:[%s1 + $0x20] sm:$0xf]
          %v855 = vld [vmem:[%s1 + $0x24] sm:$0xf]
          %v856 = vld [vmem:[%s1 + $0x28] sm:$0xf]
          %v857 = vld [vmem:[%s1 + $0x2c] sm:$0xf]
          %v858 = vld [vmem:[%s1 + $0x30] sm:$0xf]
          %v859 = vld [vmem:[%s1 + $0x34] sm:$0xf]
          %v860 = vld [vmem:[%s1 + $0x38] sm:$0xf]
          %v861 = vld [vmem:[%s1 + $0x3c] sm:$0xf]
          %v862 = vld [vmem:[%s2] sm:$0x1]
          %v864 = vlaneseq
          %v865 = vshrl.u32 %v864, 7
          %v866 = vsub.s32 0, %v865
          %v867 = vrot.slane %v862, %v866
          %v885 = vunpack.c.l.b16 %v830
          %v886 = vunpack.c.l.b16 %v831
          %v887 = vunpack.c.l.b16 %v832
          %v888 = vunpack.c.l.b16 %v833
          %v889 = vunpack.c.l.b16 %v834
          %v890 = vunpack.c.l.b16 %v835
          %v891 = vunpack.c.l.b16 %v836
          %v892 = vunpack.c.l.b16 %v837
          %v893 = vunpack.c.l.b16 %v838
          %v894 = vunpack.c.l.b16 %v839
          %v895 = vunpack.c.l.b16 %v840
          %v896 = vunpack.c.l.b16 %v841
          %v897 = vunpack.c.l.b16 %v842
          %v898 = vunpack.c.l.b16 %v843
          %v899 = vunpack.c.l.b16 %v844
          %v900 = vunpack.c.l.b16 %v845
          %v901 = vpack.c.b16 %v886, %v885
          %v902 = vpack.c.b16 %v888, %v887
          %v903 = vpack.c.b16 %v890, %v889
          %v904 = vpack.c.b16 %v892, %v891
          %v905 = vpack.c.b16 %v894, %v893
          %v906 = vpack.c.b16 %v896, %v895
          %v907 = vpack.c.b16 %v898, %v897
          %v908 = vpack.c.b16 %v900, %v899
          %v933 = vunpack.c.l.b16 %v846
          %v934 = vunpack.c.l.b16 %v847
          %v935 = vunpack.c.l.b16 %v848
          %v936 = vunpack.c.l.b16 %v849
          %v937 = vunpack.c.l.b16 %v850
          %v938 = vunpack.c.l.b16 %v851
          %v939 = vunpack.c.l.b16 %v852
          %v940 = vunpack.c.l.b16 %v853
          %v941 = vunpack.c.l.b16 %v854
          %v942 = vunpack.c.l.b16 %v855
          %v943 = vunpack.c.l.b16 %v856
          %v944 = vunpack.c.l.b16 %v857
          %v945 = vunpack.c.l.b16 %v858
          %v946 = vunpack.c.l.b16 %v859
          %v947 = vunpack.c.l.b16 %v860
          %v948 = vunpack.c.l.b16 %v861
          %v949 = vpack.c.b16 %v934, %v933
          %v950 = vpack.c.b16 %v936, %v935
          %v951 = vpack.c.b16 %v938, %v937
          %v952 = vpack.c.b16 %v940, %v939
          %v953 = vpack.c.b16 %v942, %v941
          %v954 = vpack.c.b16 %v944, %v943
          %v955 = vpack.c.b16 %v946, %v945
          %v956 = vpack.c.b16 %v948, %v947
          %965 = vmatprep.subr.bf16.mxu0 0
          %966 = vmatpush1.bf16.msra.mxu0 %v949
          %967 = vmatprep.subr.bf16.mxu0 0
          %968 = vmatpush1.bf16.msra.mxu0 %v950
          %969 = vmatprep.subr.bf16.mxu0 0
          %970 = vmatpush1.bf16.msra.mxu0 %v951
          %971 = vmatprep.subr.bf16.mxu0 0
          %972 = vmatpush1.bf16.msra.mxu0 %v952
          %973 = vmatprep.subr.bf16.mxu0 0
          %974 = vmatpush1.bf16.msra.mxu0 %v953
          %975 = vmatprep.subr.bf16.mxu0 0
          %976 = vmatpush1.bf16.msra.mxu0 %v954
          %977 = vmatprep.subr.bf16.mxu0 0
          %978 = vmatpush1.bf16.msra.mxu0 %v955
          %979 = vmatprep.subr.bf16.mxu0 0
          %980 = vmatpush1.bf16.msra.mxu0 %v956
          %981 = vmatprep.subr.bf16.mxu0 0
          %982 = vmatpush1.bf16.msra.mxu0 0
          %983 = vmatprep.subr.bf16.mxu0 0
          %984 = vmatpush1.bf16.msra.mxu0 0
          %985 = vmatprep.subr.bf16.mxu0 0
          %986 = vmatpush1.bf16.msra.mxu0 0
          %987 = vmatprep.subr.bf16.mxu0 0
          %988 = vmatpush1.bf16.msra.mxu0 0
          %989 = vmatprep.subr.bf16.mxu0 0
          %990 = vmatpush1.bf16.msra.mxu0 0
          %991 = vmatprep.subr.bf16.mxu0 0
          %992 = vmatpush1.bf16.msra.mxu0 0
          %993 = vmatprep.subr.bf16.mxu0 0
          %994 = vmatpush1.bf16.msra.mxu0 0
          %995 = vmatprep.subr.bf16.mxu0 0
          %996 = vmatpush1.bf16.msra.mxu0 0
          %997 = vmatprep.mubr.bf16.mxu0 0
          %998 = vmatmul.mubr.bf16.gmra.mrb[0].mxu0 %v901
          %v999 = vpop.f32.mrb[0].mxu0
          %v1000 = vadd.f32 %v867, %v999
          %v1001 = vpop.f32.mrb[0].mxu0
          %v1002 = vpop.f32.mrb[0].mxu0
          %v1003 = vadd.f32 %v867, %v1002
          %v1004 = vpop.f32.mrb[0].mxu0
          %1005 = vmatprep.mubr.bf16.mxu0 0
          %1006 = vmatmul.mubr.bf16.gmra.mrb[0].mxu0 %v902
          %v1007 = vpop.f32.mrb[0].mxu0
          %v1008 = vadd.f32 %v867, %v1007
          %v1009 = vpop.f32.mrb[0].mxu0
          %v1010 = vpop.f32.mrb[0].mxu0
          %v1011 = vadd.f32 %v867, %v1010
          %v1012 = vpop.f32.mrb[0].mxu0
          %1013 = vmatprep.mubr.bf16.mxu0 0
          %1014 = vmatmul.mubr.bf16.gmra.mrb[0].mxu0 %v903
          %v1015 = vpop.f32.mrb[0].mxu0
          %v1016 = vadd.f32 %v867, %v1015
          %v1017 = vpop.f32.mrb[0].mxu0
          %v1018 = vpop.f32.mrb[0].mxu0
          %v1019 = vadd.f32 %v867, %v1018
          %v1020 = vpop.f32.mrb[0].mxu0
          %1021 = vmatprep.mubr.bf16.mxu0 0
          %1022 = vmatmul.mubr.bf16.gmra.mrb[0].mxu0 %v904
          %v1023 = vpop.f32.mrb[0].mxu0
          %v1024 = vadd.f32 %v867, %v1023
          %v1025 = vpop.f32.mrb[0].mxu0
          %v1026 = vpop.f32.mrb[0].mxu0
          %v1027 = vadd.f32 %v867, %v1026
          %v1028 = vpop.f32.mrb[0].mxu0
          %1029 = vmatprep.mubr.bf16.mxu0 0
          %1030 = vmatmul.mubr.bf16.gmra.mrb[0].mxu0 %v905
          %v1031 = vpop.f32.mrb[0].mxu0
          %v1032 = vadd.f32 %v867, %v1031
          %v1033 = vpop.f32.mrb[0].mxu0
          %v1034 = vpop.f32.mrb[0].mxu0
          %v1035 = vadd.f32 %v867, %v1034
          %v1036 = vpop.f32.mrb[0].mxu0
          %1037 = vmatprep.mubr.bf16.mxu0 0
          %1038 = vmatmul.mubr.bf16.gmra.mrb[0].mxu0 %v906
          %v1039 = vpop.f32.mrb[0].mxu0
          %v1040 = vadd.f32 %v867, %v1039
          %v1041 = vpop.f32.mrb[0].mxu0
          %v1042 = vpop.f32.mrb[0].mxu0
          %v1043 = vadd.f32 %v867, %v1042
          %v1044 = vpop.f32.mrb[0].mxu0
          %1045 = vmatprep.mubr.bf16.mxu0 0
          %1046 = vmatmul.mubr.bf16.gmra.mrb[0].mxu0 %v907
          %v1047 = vpop.f32.mrb[0].mxu0
          %v1048 = vadd.f32 %v867, %v1047
          %v1049 = vpop.f32.mrb[0].mxu0
          %v1050 = vpop.f32.mrb[0].mxu0
          %v1051 = vadd.f32 %v867, %v1050
          %v1052 = vpop.f32.mrb[0].mxu0
          %1053 = vmatprep.mubr.bf16.mxu0 0
          %1054 = vmatmul.mubr.bf16.gmra.mrb[0].mxu0 %v908
          %v1055 = vpop.f32.mrb[0].mxu0
          %v1056 = vadd.f32 %v867, %v1055
          %v1057 = vpop.f32.mrb[0].mxu0
          %v1058 = vpop.f32.mrb[0].mxu0
          %v1059 = vadd.f32 %v867, %v1058
          %v1060 = vpop.f32.mrb[0].mxu0
          %1061 = vdwg.mxu0
          %v1062 = vld [vmem:[%s3] sm:$0xff]
          %v1063 = vld [vmem:[%s3 + $0x8] sm:$0xff]
          %v1064 = vld [vmem:[%s3 + $0x10] sm:$0xff]
          %v1065 = vld [vmem:[%s3 + $0x18] sm:$0xff]
          %v1066 = vld [vmem:[%s3 + $0x20] sm:$0xff]
          %v1067 = vld [vmem:[%s3 + $0x28] sm:$0xff]
          %v1068 = vld [vmem:[%s3 + $0x30] sm:$0xff]
          %v1069 = vld [vmem:[%s3 + $0x38] sm:$0xff]
          %v1070 = vld [vmem:[%s3 + $0x40] sm:$0xff]
          %v1071 = vld [vmem:[%s3 + $0x48] sm:$0xff]
          %v1072 = vld [vmem:[%s3 + $0x50] sm:$0xff]
          %v1073 = vld [vmem:[%s3 + $0x58] sm:$0xff]
          %v1074 = vld [vmem:[%s3 + $0x60] sm:$0xff]
          %v1075 = vld [vmem:[%s3 + $0x68] sm:$0xff]
          %v1076 = vld [vmem:[%s3 + $0x70] sm:$0xff]
          %v1077 = vld [vmem:[%s3 + $0x78] sm:$0xff]
          %v1078 = vadd.f32 %v1000, %v1062
          %v1079 = vadd.f32 %v1003, %v1063
          %v1080 = vadd.f32 %v1008, %v1064
          %v1081 = vadd.f32 %v1011, %v1065
          %v1082 = vadd.f32 %v1016, %v1066
          %v1083 = vadd.f32 %v1019, %v1067
          %v1084 = vadd.f32 %v1024, %v1068
          %v1085 = vadd.f32 %v1027, %v1069
          %v1086 = vadd.f32 %v1032, %v1070
          %v1087 = vadd.f32 %v1035, %v1071
          %v1088 = vadd.f32 %v1040, %v1072
          %v1089 = vadd.f32 %v1043, %v1073
          %v1090 = vadd.f32 %v1048, %v1074
          %v1091 = vadd.f32 %v1051, %v1075
          %v1092 = vadd.f32 %v1056, %v1076
          %v1093 = vadd.f32 %v1059, %v1077
          %vm1094 = vcmask 261120
          %1095 = vst.msk [vmem:[#allocation2] sm:$0xff] %vm1094, %v1078
          %1096 = vst.msk [vmem:[#allocation2 + $0x8] sm:$0xff] %vm1094, %v1079
          %1097 = vst.msk [vmem:[#allocation2 + $0x10] sm:$0xff] %vm1094, %v1080
          %1098 = vst.msk [vmem:[#allocation2 + $0x18] sm:$0xff] %vm1094, %v1081
          %1099 = vst.msk [vmem:[#allocation2 + $0x20] sm:$0xff] %vm1094, %v1082
          %1100 = vst.msk [vmem:[#allocation2 + $0x28] sm:$0xff] %vm1094, %v1083
          %1101 = vst.msk [vmem:[#allocation2 + $0x30] sm:$0xff] %vm1094, %v1084
          %1102 = vst.msk [vmem:[#allocation2 + $0x38] sm:$0xff] %vm1094, %v1085
          %1103 = vst.msk [vmem:[#allocation2 + $0x40] sm:$0xff] %vm1094, %v1086
          %1104 = vst.msk [vmem:[#allocation2 + $0x48] sm:$0xff] %vm1094, %v1087
          %1105 = vst.msk [vmem:[#allocation2 + $0x50] sm:$0xff] %vm1094, %v1088
          %1106 = vst.msk [vmem:[#allocation2 + $0x58] sm:$0xff] %vm1094, %v1089
          %1107 = vst.msk [vmem:[#allocation2 + $0x60] sm:$0xff] %vm1094, %v1090
          %1108 = vst.msk [vmem:[#allocation2 + $0x68] sm:$0xff] %vm1094, %v1091
          %1109 = vst.msk [vmem:[#allocation2 + $0x70] sm:$0xff] %vm1094, %v1092
          %1110 = vst.msk [vmem:[#allocation2 + $0x78] sm:$0xff] %vm1094, %v1093
          %1111 = vst.msk [vmem:[#allocation3] sm:$0xff] %vm1094, %v1078
          %1112 = vst.msk [vmem:[#allocation3 + $0x8] sm:$0xff] %vm1094, %v1079
          %1113 = vst.msk [vmem:[#allocation3 + $0x10] sm:$0xff] %vm1094, %v1080
          %1114 = vst.msk [vmem:[#allocation3 + $0x18] sm:$0xff] %vm1094, %v1081
          %1115 = vst.msk [vmem:[#allocation3 + $0x20] sm:$0xff] %vm1094, %v1082
          %1116 = vst.msk [vmem:[#allocation3 + $0x28] sm:$0xff] %vm1094, %v1083
          %1117 = vst.msk [vmem:[#allocation3 + $0x30] sm:$0xff] %vm1094, %v1084
          %1118 = vst.msk [vmem:[#allocation3 + $0x38] sm:$0xff] %vm1094, %v1085
          %1119 = vst.msk [vmem:[#allocation3 + $0x40] sm:$0xff] %vm1094, %v1086
          %1120 = vst.msk [vmem:[#allocation3 + $0x48] sm:$0xff] %vm1094, %v1087
          %1121 = vst.msk [vmem:[#allocation3 + $0x50] sm:$0xff] %vm1094, %v1088
          %1122 = vst.msk [vmem:[#allocation3 + $0x58] sm:$0xff] %vm1094, %v1089
          %1123 = vst.msk [vmem:[#allocation3 + $0x60] sm:$0xff] %vm1094, %v1090
          %1124 = vst.msk [vmem:[#allocation3 + $0x68] sm:$0xff] %vm1094, %v1091
          %1125 = vst.msk [vmem:[#allocation3 + $0x70] sm:$0xff] %vm1094, %v1092
          %1126 = vst.msk [vmem:[#allocation3 + $0x78] sm:$0xff] %vm1094, %v1093
        $region104: #{tpu_custom_call.1} parent=99 // pred_fallthru
          _
        %v1127 = vld [vmem:[#allocation2] sm:$0xff]
        %v1128 = vld [vmem:[#allocation2 + $0x8] sm:$0xff]
        %v1129 = vld [vmem:[#allocation2 + $0x10] sm:$0xff]
        %v1130 = vld [vmem:[#allocation2 + $0x18] sm:$0xff]
        %v1131 = vld [vmem:[#allocation2 + $0x20] sm:$0xff]
        %v1132 = vld [vmem:[#allocation2 + $0x28] sm:$0xff]
        %v1133 = vld [vmem:[#allocation2 + $0x30] sm:$0xff]
        %v1134 = vld [vmem:[#allocation2 + $0x38] sm:$0xff]
        %v1135 = vld [vmem:[#allocation2 + $0x40] sm:$0xff]
        %v1136 = vld [vmem:[#allocation2 + $0x48] sm:$0xff]
        %v1137 = vld [vmem:[#allocation2 + $0x50] sm:$0xff]
        %v1138 = vld [vmem:[#allocation2 + $0x58] sm:$0xff]
        %v1139 = vld [vmem:[#allocation2 + $0x60] sm:$0xff]
        %v1140 = vld [vmem:[#allocation2 + $0x68] sm:$0xff]
        %v1141 = vld [vmem:[#allocation2 + $0x70] sm:$0xff]
        %v1142 = vld [vmem:[#allocation2 + $0x78] sm:$0xff]
        %v1143 = vld [vmem:[#allocation3] sm:$0xff]
        %v1144 = vld [vmem:[#allocation3 + $0x8] sm:$0xff]
        %v1145 = vld [vmem:[#allocation3 + $0x10] sm:$0xff]
        %v1146 = vld [vmem:[#allocation3 + $0x18] sm:$0xff]
        %v1147 = vld [vmem:[#allocation3 + $0x20] sm:$0xff]
        %v1148 = vld [vmem:[#allocation3 + $0x28] sm:$0xff]
        %v1149 = vld [vmem:[#allocation3 + $0x30] sm:$0xff]
        %v1150 = vld [vmem:[#allocation3 + $0x38] sm:$0xff]
        %v1151 = vld [vmem:[#allocation3 + $0x40] sm:$0xff]
        %v1152 = vld [vmem:[#allocation3 + $0x48] sm:$0xff]
        %v1153 = vld [vmem:[#allocation3 + $0x50] sm:$0xff]
        %v1154 = vld [vmem:[#allocation3 + $0x58] sm:$0xff]
        %v1155 = vld [vmem:[#allocation3 + $0x60] sm:$0xff]
        %v1156 = vld [vmem:[#allocation3 + $0x68] sm:$0xff]
        %v1157 = vld [vmem:[#allocation3 + $0x70] sm:$0xff]
        %v1158 = vld [vmem:[#allocation3 + $0x78] sm:$0xff]
        %v1159 = vld [vmem:[%s783] sm:$0x1]
        %v1160 = vld [vmem:[%s786] sm:$0x1]
        %vm1161 = vcmask 261120
        %v1162 = vsel %vm1161, %v1143, 0.0
        %1163 = vadd.xlane.f32.xlu0 %v1162
        %v1164 = vpop.xlane.xlu0 %1163
        %v1165 = vsel %vm1161, %v1144, 0.0
        %1166 = vadd.xlane.f32.xlu0 %v1165
        %v1167 = vpop.xlane.xlu0 %1166
        %v1168 = vsel %vm1161, %v1145, 0.0
        %1169 = vadd.xlane.f32.xlu0 %v1168
        %v1170 = vpop.xlane.xlu0 %1169
        %v1171 = vsel %vm1161, %v1146, 0.0
        %1172 = vadd.xlane.f32.xlu0 %v1171
        %v1173 = vpop.xlane.xlu0 %1172
        %v1174 = vsel %vm1161, %v1147, 0.0
        %1175 = vadd.xlane.f32.xlu0 %v1174
        %v1176 = vpop.xlane.xlu0 %1175
        %v1177 = vsel %vm1161, %v1148, 0.0
        %1178 = vadd.xlane.f32.xlu0 %v1177
        %v1179 = vpop.xlane.xlu0 %1178
        %v1180 = vsel %vm1161, %v1149, 0.0
        %1181 = vadd.xlane.f32.xlu0 %v1180
        %v1182 = vpop.xlane.xlu0 %1181
        %v1183 = vsel %vm1161, %v1150, 0.0
        %1184 = vadd.xlane.f32.xlu0 %v1183
        %v1185 = vpop.xlane.xlu0 %1184
        %v1186 = vsel %vm1161, %v1151, 0.0
        %1187 = vadd.xlane.f32.xlu0 %v1186
        %v1188 = vpop.xlane.xlu0 %1187
        %v1189 = vsel %vm1161, %v1152, 0.0
        %1190 = vadd.xlane.f32.xlu0 %v1189
        %v1191 = vpop.xlane.xlu0 %1190
        %v1192 = vsel %vm1161, %v1153, 0.0
        %1193 = vadd.xlane.f32.xlu0 %v1192
        %v1194 = vpop.xlane.xlu0 %1193
        %v1195 = vsel %vm1161, %v1154, 0.0
        %1196 = vadd.xlane.f32.xlu0 %v1195
        %v1197 = vpop.xlane.xlu0 %1196
        %v1198 = vsel %vm1161, %v1155, 0.0
        %1199 = vadd.xlane.f32.xlu0 %v1198
        %v1200 = vpop.xlane.xlu0 %1199
        %v1201 = vsel %vm1161, %v1156, 0.0
        %1202 = vadd.xlane.f32.xlu0 %v1201
        %v1203 = vpop.xlane.xlu0 %1202
        %v1204 = vsel %vm1161, %v1157, 0.0
        %1205 = vadd.xlane.f32.xlu0 %v1204
        %v1206 = vpop.xlane.xlu0 %1205
        %v1207 = vsel %vm1161, %v1158, 0.0
        %1208 = vadd.xlane.f32.xlu0 %v1207
        %v1209 = vpop.xlane.xlu0 %1208
        %v1210 = vrcp.pop 32.0
        %v1211 = vmul.f32 %v1164, %v1210
        %v1212 = vmul.f32 %v1167, %v1210
        %v1213 = vmul.f32 %v1170, %v1210
        %v1214 = vmul.f32 %v1173, %v1210
        %v1215 = vmul.f32 %v1176, %v1210
        %v1216 = vmul.f32 %v1179, %v1210
        %v1217 = vmul.f32 %v1182, %v1210
        %v1218 = vmul.f32 %v1185, %v1210
        %v1219 = vmul.f32 %v1188, %v1210
        %v1220 = vmul.f32 %v1191, %v1210
        %v1221 = vmul.f32 %v1194, %v1210
        %v1222 = vmul.f32 %v1197, %v1210
        %v1223 = vmul.f32 %v1200, %v1210
        %v1224 = vmul.f32 %v1203, %v1210
        %v1225 = vmul.f32 %v1206, %v1210
        %v1226 = vmul.f32 %v1209, %v1210
        %v1227 = vsub.f32 %v1143, %v1211
        %v1228 = vsub.f32 %v1144, %v1212
        %v1229 = vsub.f32 %v1145, %v1213
        %v1230 = vsub.f32 %v1146, %v1214
        %v1231 = vsub.f32 %v1147, %v1215
        %v1232 = vsub.f32 %v1148, %v1216
        %v1233 = vsub.f32 %v1149, %v1217
        %v1234 = vsub.f32 %v1150, %v1218
        %v1235 = vsub.f32 %v1151, %v1219
        %v1236 = vsub.f32 %v1152, %v1220
        %v1237 = vsub.f32 %v1153, %v1221
        %v1238 = vsub.f32 %v1154, %v1222
        %v1239 = vsub.f32 %v1155, %v1223
        %v1240 = vsub.f32 %v1156, %v1224
        %v1241 = vsub.f32 %v1157, %v1225
        %v1242 = vsub.f32 %v1158, %v1226
        %v1243 = vmul.f32 %v1227, %v1227
        %v1244 = vmul.f32 %v1228, %v1228
        %v1245 = vmul.f32 %v1229, %v1229
        %v1246 = vmul.f32 %v1230, %v1230
        %v1247 = vmul.f32 %v1231, %v1231
        %v1248 = vmul.f32 %v1232, %v1232
        %v1249 = vmul.f32 %v1233, %v1233
        %v1250 = vmul.f32 %v1234, %v1234
        %v1251 = vmul.f32 %v1235, %v1235
        %v1252 = vmul.f32 %v1236, %v1236
        %v1253 = vmul.f32 %v1237, %v1237
        %v1254 = vmul.f32 %v1238, %v1238
        %v1255 = vmul.f32 %v1239, %v1239
        %v1256 = vmul.f32 %v1240, %v1240
        %v1257 = vmul.f32 %v1241, %v1241
        %v1258 = vmul.f32 %v1242, %v1242
        %v1259 = vsel %vm1161, %v1243, 0.0
        %1260 = vadd.xlane.f32.xlu0 %v1259
        %v1261 = vpop.xlane.xlu0 %1260
        %v1262 = vsel %vm1161, %v1244, 0.0
        %1263 = vadd.xlane.f32.xlu0 %v1262
        %v1264 = vpop.xlane.xlu0 %1263
        %v1265 = vsel %vm1161, %v1245, 0.0
        %1266 = vadd.xlane.f32.xlu0 %v1265
        %v1267 = vpop.xlane.xlu0 %1266
        %v1268 = vsel %vm1161, %v1246, 0.0
        %1269 = vadd.xlane.f32.xlu0 %v1268
        %v1270 = vpop.xlane.xlu0 %1269
        %v1271 = vsel %vm1161, %v1247, 0.0
        %1272 = vadd.xlane.f32.xlu0 %v1271
        %v1273 = vpop.xlane.xlu0 %1272
        %v1274 = vsel %vm1161, %v1248, 0.0
        %1275 = vadd.xlane.f32.xlu0 %v1274
        %v1276 = vpop.xlane.xlu0 %1275
        %v1277 = vsel %vm1161, %v1249, 0.0
        %1278 = vadd.xlane.f32.xlu0 %v1277
        %v1279 = vpop.xlane.xlu0 %1278
        %v1280 = vsel %vm1161, %v1250, 0.0
        %1281 = vadd.xlane.f32.xlu0 %v1280
        %v1282 = vpop.xlane.xlu0 %1281
        %v1283 = vsel %vm1161, %v1251, 0.0
        %1284 = vadd.xlane.f32.xlu0 %v1283
        %v1285 = vpop.xlane.xlu0 %1284
        %v1286 = vsel %vm1161, %v1252, 0.0
        %1287 = vadd.xlane.f32.xlu0 %v1286
        %v1288 = vpop.xlane.xlu0 %1287
        %v1289 = vsel %vm1161, %v1253, 0.0
        %1290 = vadd.xlane.f32.xlu0 %v1289
        %v1291 = vpop.xlane.xlu0 %1290
        %v1292 = vsel %vm1161, %v1254, 0.0
        %1293 = vadd.xlane.f32.xlu0 %v1292
        %v1294 = vpop.xlane.xlu0 %1293
        %v1295 = vsel %vm1161, %v1255, 0.0
        %1296 = vadd.xlane.f32.xlu0 %v1295
        %v1297 = vpop.xlane.xlu0 %1296
        %v1298 = vsel %vm1161, %v1256, 0.0
        %1299 = vadd.xlane.f32.xlu0 %v1298
        %v1300 = vpop.xlane.xlu0 %1299
        %v1301 = vsel %vm1161, %v1257, 0.0
        %1302 = vadd.xlane.f32.xlu0 %v1301
        %v1303 = vpop.xlane.xlu0 %1302
        %v1304 = vsel %vm1161, %v1258, 0.0
        %1305 = vadd.xlane.f32.xlu0 %v1304
        %v1306 = vpop.xlane.xlu0 %1305
        %v1307 = vmul.f32 %v1261, %v1210
        %v1308 = vmul.f32 %v1264, %v1210
        %v1309 = vmul.f32 %v1267, %v1210
        %v1310 = vmul.f32 %v1270, %v1210
        %v1311 = vmul.f32 %v1273, %v1210
        %v1312 = vmul.f32 %v1276, %v1210
        %v1313 = vmul.f32 %v1279, %v1210
        %v1314 = vmul.f32 %v1282, %v1210
        %v1315 = vmul.f32 %v1285, %v1210
        %v1316 = vmul.f32 %v1288, %v1210
        %v1317 = vmul.f32 %v1291, %v1210
        %v1318 = vmul.f32 %v1294, %v1210
        %v1319 = vmul.f32 %v1297, %v1210
        %v1320 = vmul.f32 %v1300, %v1210
        %v1321 = vmul.f32 %v1303, %v1210
        %v1322 = vmul.f32 %v1306, %v1210
        %v1323 = vadd.f32 %v1307, 1e-06
        %v1324 = vadd.f32 %v1308, 1e-06
        %v1325 = vadd.f32 %v1309, 1e-06
        %v1326 = vadd.f32 %v1310, 1e-06
        %v1327 = vadd.f32 %v1311, 1e-06
        %v1328 = vadd.f32 %v1312, 1e-06
        %v1329 = vadd.f32 %v1313, 1e-06
        %v1330 = vadd.f32 %v1314, 1e-06
        %v1331 = vadd.f32 %v1315, 1e-06
        %v1332 = vadd.f32 %v1316, 1e-06
        %v1333 = vadd.f32 %v1317, 1e-06
        %v1334 = vadd.f32 %v1318, 1e-06
        %v1335 = vadd.f32 %v1319, 1e-06
        %v1336 = vadd.f32 %v1320, 1e-06
        %v1337 = vadd.f32 %v1321, 1e-06
        %v1338 = vadd.f32 %v1322, 1e-06
        %v1339 = vrsqrt.pop %v1323
        %v1340 = vrsqrt.pop %v1324
        %v1341 = vrsqrt.pop %v1325
        %v1342 = vrsqrt.pop %v1326
        %v1343 = vrsqrt.pop %v1327
        %v1344 = vrsqrt.pop %v1328
        %v1345 = vrsqrt.pop %v1329
        %v1346 = vrsqrt.pop %v1330
        %v1347 = vrsqrt.pop %v1331
        %v1348 = vrsqrt.pop %v1332
        %v1349 = vrsqrt.pop %v1333
        %v1350 = vrsqrt.pop %v1334
        %v1351 = vrsqrt.pop %v1335
        %v1352 = vrsqrt.pop %v1336
        %v1353 = vrsqrt.pop %v1337
        %v1354 = vrsqrt.pop %v1338
        %v1355 = vmul.f32 %v1227, %v1339
        %v1356 = vmul.f32 %v1228, %v1340
        %v1357 = vmul.f32 %v1229, %v1341
        %v1358 = vmul.f32 %v1230, %v1342
        %v1359 = vmul.f32 %v1231, %v1343
        %v1360 = vmul.f32 %v1232, %v1344
        %v1361 = vmul.f32 %v1233, %v1345
        %v1362 = vmul.f32 %v1234, %v1346
        %v1363 = vmul.f32 %v1235, %v1347
        %v1364 = vmul.f32 %v1236, %v1348
        %v1365 = vmul.f32 %v1237, %v1349
        %v1366 = vmul.f32 %v1238, %v1350
        %v1367 = vmul.f32 %v1239, %v1351
        %v1368 = vmul.f32 %v1240, %v1352
        %v1369 = vmul.f32 %v1241, %v1353
        %v1370 = vmul.f32 %v1242, %v1354
        %v1372 = vlaneseq
        %v1373 = vshrl.u32 %v1372, 7
        %v1374 = vsub.s32 0, %v1373
        %v1375 = vrot.slane %v1159, %v1374
        %v1377 = vmul.f32 %v1355, %v1375
        %v1378 = vmul.f32 %v1356, %v1375
        %v1379 = vmul.f32 %v1357, %v1375
        %v1380 = vmul.f32 %v1358, %v1375
        %v1381 = vmul.f32 %v1359, %v1375
        %v1382 = vmul.f32 %v1360, %v1375
        %v1383 = vmul.f32 %v1361, %v1375
        %v1384 = vmul.f32 %v1362, %v1375
        %v1385 = vmul.f32 %v1363, %v1375
        %v1386 = vmul.f32 %v1364, %v1375
        %v1387 = vmul.f32 %v1365, %v1375
        %v1388 = vmul.f32 %v1366, %v1375
        %v1389 = vmul.f32 %v1367, %v1375
        %v1390 = vmul.f32 %v1368, %v1375
        %v1391 = vmul.f32 %v1369, %v1375
        %v1392 = vmul.f32 %v1370, %v1375
        %v1394 = vlaneseq
        %v1395 = vshrl.u32 %v1394, 7
        %v1396 = vsub.s32 0, %v1395
        %v1397 = vrot.slane %v1160, %v1396
        %v1399 = vadd.f32 %v1377, %v1397
        %v1400 = vadd.f32 %v1378, %v1397
        %v1401 = vadd.f32 %v1379, %v1397
        %v1402 = vadd.f32 %v1380, %v1397
        %v1403 = vadd.f32 %v1381, %v1397
        %v1404 = vadd.f32 %v1382, %v1397
        %v1405 = vadd.f32 %v1383, %v1397
        %v1406 = vadd.f32 %v1384, %v1397
        %v1407 = vadd.f32 %v1385, %v1397
        %v1408 = vadd.f32 %v1386, %v1397
        %v1409 = vadd.f32 %v1387, %v1397
        %v1410 = vadd.f32 %v1388, %v1397
        %v1411 = vadd.f32 %v1389, %v1397
        %v1412 = vadd.f32 %v1390, %v1397
        %v1413 = vadd.f32 %v1391, %v1397
        %v1414 = vadd.f32 %v1392, %v1397
        %v1415 = vpack.c.bf16 %v1400, %v1399
        %v1416 = vpack.c.bf16 %v1402, %v1401
        %v1417 = vpack.c.bf16 %v1404, %v1403
        %v1418 = vpack.c.bf16 %v1406, %v1405
        %v1419 = vpack.c.bf16 %v1408, %v1407
        %v1420 = vpack.c.bf16 %v1410, %v1409
        %v1421 = vpack.c.bf16 %v1412, %v1411
        %v1422 = vpack.c.bf16 %v1414, %v1413
        %v1423 = vld [vmem:[%s791] sm:$0xf]
        %v1424 = vld [vmem:[%s791 + $0x4] sm:$0xf]
        %v1425 = vld [vmem:[%s791 + $0x8] sm:$0xf]
        %v1426 = vld [vmem:[%s791 + $0xc] sm:$0xf]
        %v1427 = vld [vmem:[%s794] sm:$0x1]
        %v1429 = vlaneseq
        %v1430 = vshrl.u32 %v1429, 7
        %v1431 = vsub.s32 0, %v1430
        %v1432 = vrot.slane %v1427, %v1431
        %v1438 = vunpack.c.l.b16 %v1423
        %v1439 = vunpack.c.l.b16 %v1424
        %v1440 = vunpack.c.l.b16 %v1425
        %v1441 = vunpack.c.l.b16 %v1426
        %v1442 = vpack.c.b16 %v1439, %v1438
        %v1443 = vpack.c.b16 %v1441, %v1440
        %v1447 = vsel %vm1161, %v1415, 0
        %v1450 = vsel %vm1161, %v1416, 0
        %v1453 = vsel %vm1161, %v1417, 0
        %v1456 = vsel %vm1161, %v1418, 0
        %v1459 = vsel %vm1161, %v1419, 0
        %v1462 = vsel %vm1161, %v1420, 0
        %v1465 = vsel %vm1161, %v1421, 0
        %v1468 = vsel %vm1161, %v1422, 0
        %1470 = vmatprep.subr.bf16.mxu0 0
        %1471 = vmatpush1.bf16.msra.mxu0 %v1442
        %1472 = vmatprep.subr.bf16.mxu0 0
        %1473 = vmatpush1.bf16.msra.mxu0 %v1443
        %1474 = vmatprep.subr.bf16.mxu0 0
        %1475 = vmatpush1.bf16.msra.mxu0 0
        %1476 = vmatprep.subr.bf16.mxu0 0
        %1477 = vmatpush1.bf16.msra.mxu0 0
        %1478 = vmatprep.subr.bf16.mxu0 0
        %1479 = vmatpush1.bf16.msra.mxu0 0
        %1480 = vmatprep.subr.bf16.mxu0 0
        %1481 = vmatpush1.bf16.msra.mxu0 0
        %1482 = vmatprep.subr.bf16.mxu0 0
        %1483 = vmatpush1.bf16.msra.mxu0 0
        %1484 = vmatprep.subr.bf16.mxu0 0
        %1485 = vmatpush1.bf16.msra.mxu0 0
        %1486 = vmatprep.subr.bf16.mxu0 0
        %1487 = vmatpush1.bf16.msra.mxu0 0
        %1488 = vmatprep.subr.bf16.mxu0 0
        %1489 = vmatpush1.bf16.msra.mxu0 0
        %1490 = vmatprep.subr.bf16.mxu0 0
        %1491 = vmatpush1.bf16.msra.mxu0 0
        %1492 = vmatprep.subr.bf16.mxu0 0
        %1493 = vmatpush1.bf16.msra.mxu0 0
        %1494 = vmatprep.subr.bf16.mxu0 0
        %1495 = vmatpush1.bf16.msra.mxu0 0
        %1496 = vmatprep.subr.bf16.mxu0 0
        %1497 = vmatpush1.bf16.msra.mxu0 0
        %1498 = vmatprep.subr.bf16.mxu0 0
        %1499 = vmatpush1.bf16.msra.mxu0 0
        %1500 = vmatprep.subr.bf16.mxu0 0
        %1501 = vmatpush1.bf16.msra.mxu0 0
        %1502 = vmatprep.mubr.bf16.mxu0 0
        %1503 = vmatmul.mubr.bf16.gmra.mrb[0].mxu0 %v1447
        %v1504 = vpop.f32.mrb[0].mxu0
        %v1505 = vadd.f32 %v1432, %v1504
        %v1506 = vpop.f32.mrb[0].mxu0
        %v1507 = vpop.f32.mrb[0].mxu0
        %v1508 = vadd.f32 %v1432, %v1507
        %v1509 = vpop.f32.mrb[0].mxu0
        %1510 = vmatprep.mubr.bf16.mxu0 0
        %1511 = vmatmul.mubr.bf16.gmra.mrb[0].mxu0 %v1450
        %v1512 = vpop.f32.mrb[0].mxu0
        %v1513 = vadd.f32 %v1432, %v1512
        %v1514 = vpop.f32.mrb[0].mxu0
        %v1515 = vpop.f32.mrb[0].mxu0
        %v1516 = vadd.f32 %v1432, %v1515
        %v1517 = vpop.f32.mrb[0].mxu0
        %1518 = vmatprep.mubr.bf16.mxu0 0
        %1519 = vmatmul.mubr.bf16.gmra.mrb[0].mxu0 %v1453
        %v1520 = vpop.f32.mrb[0].mxu0
        %v1521 = vadd.f32 %v1432, %v1520
        %v1522 = vpop.f32.mrb[0].mxu0
        %v1523 = vpop.f32.mrb[0].mxu0
        %v1524 = vadd.f32 %v1432, %v1523
        %v1525 = vpop.f32.mrb[0].mxu0
        %1526 = vmatprep.mubr.bf16.mxu0 0
        %1527 = vmatmul.mubr.bf16.gmra.mrb[0].mxu0 %v1456
        %v1528 = vpop.f32.mrb[0].mxu0
        %v1529 = vadd.f32 %v1432, %v1528
        %v1530 = vpop.f32.mrb[0].mxu0
        %v1531 = vpop.f32.mrb[0].mxu0
        %v1532 = vadd.f32 %v1432, %v1531
        %v1533 = vpop.f32.mrb[0].mxu0
        %1534 = vmatprep.mubr.bf16.mxu0 0
        %1535 = vmatmul.mubr.bf16.gmra.mrb[0].mxu0 %v1459
        %v1536 = vpop.f32.mrb[0].mxu0
        %v1537 = vadd.f32 %v1432, %v1536
        %v1538 = vpop.f32.mrb[0].mxu0
        %v1539 = vpop.f32.mrb[0].mxu0
        %v1540 = vadd.f32 %v1432, %v1539
        %v1541 = vpop.f32.mrb[0].mxu0
        %1542 = vmatprep.mubr.bf16.mxu0 0
        %1543 = vmatmul.mubr.bf16.gmra.mrb[0].mxu0 %v1462
        %v1544 = vpop.f32.mrb[0].mxu0
        %v1545 = vadd.f32 %v1432, %v1544
        %v1546 = vpop.f32.mrb[0].mxu0
        %v1547 = vpop.f32.mrb[0].mxu0
        %v1548 = vadd.f32 %v1432, %v1547
        %v1549 = vpop.f32.mrb[0].mxu0
        %1550 = vmatprep.mubr.bf16.mxu0 0
        %1551 = vmatmul.mubr.bf16.gmra.mrb[0].mxu0 %v1465
        %v1552 = vpop.f32.mrb[0].mxu0
        %v1553 = vadd.f32 %v1432, %v1552
        %v1554 = vpop.f32.mrb[0].mxu0
        %v1555 = vpop.f32.mrb[0].mxu0
        %v1556 = vadd.f32 %v1432, %v1555
        %v1557 = vpop.f32.mrb[0].mxu0
        %1558 = vmatprep.mubr.bf16.mxu0 0
        %1559 = vmatmul.mubr.bf16.gmra.mrb[0].mxu0 %v1468
        %v1560 = vpop.f32.mrb[0].mxu0
        %v1561 = vadd.f32 %v1432, %v1560
        %v1562 = vpop.f32.mrb[0].mxu0
        %v1563 = vpop.f32.mrb[0].mxu0
        %v1564 = vadd.f32 %v1432, %v1563
        %v1565 = vpop.f32.mrb[0].mxu0
        %1566 = vdwg.mxu0
        %v1567 = vmul.f32 %v1505, 0.35355338
        %v1568 = vmul.f32 %v1508, 0.35355338
        %v1569 = vmul.f32 %v1513, 0.35355338
        %v1570 = vmul.f32 %v1516, 0.35355338
        %v1571 = vmul.f32 %v1521, 0.35355338
        %v1572 = vmul.f32 %v1524, 0.35355338
        %v1573 = vmul.f32 %v1529, 0.35355338
        %v1574 = vmul.f32 %v1532, 0.35355338
        %v1575 = vpack.c.bf16 %v1568, %v1567
        %v1576 = vpack.c.bf16 %v1570, %v1569
        %v1577 = vpack.c.bf16 %v1572, %v1571
        %v1578 = vpack.c.bf16 %v1574, %v1573
        %v1579 = vpack.c.bf16 %v1508, %v1505
        %v1580 = vpack.c.bf16 %v1516, %v1513
        %v1581 = vpack.c.bf16 %v1524, %v1521
        %v1582 = vpack.c.bf16 %v1532, %v1529
        %1587 = vrot.lane.b32.xlu0 %v1579, 96
        %v1588 = vpop.permute.xlu0 %1587
        %1589 = vrot.lane.b32.xlu0 %v1580, 96
        %v1590 = vpop.permute.xlu0 %1589
        %1591 = vrot.lane.b32.xlu0 %v1581, 96
        %v1592 = vpop.permute.xlu0 %1591
        %1593 = vrot.lane.b32.xlu0 %v1582, 96
        %v1594 = vpop.permute.xlu0 %1593
        %vm1595 = vcmask 64512
        %v1597 = vsel %vm1595, %v1575, 0
        %v1600 = vsel %vm1595, %v1576, 0
        %v1603 = vsel %vm1595, %v1577, 0
        %v1606 = vsel %vm1595, %v1578, 0
        %v1609 = vsel %vm1595, %v1588, 0
        %v1612 = vsel %vm1595, %v1590, 0
        %v1615 = vsel %vm1595, %v1592, 0
        %v1618 = vsel %vm1595, %v1594, 0
        %1620 = vmatprep.subr.bf16.mxu0 0
        %1621 = vmatpush1.bf16.xpose.msra.mxu0 %v1609
        %1622 = vmatprep.subr.bf16.mxu0 0
        %1623 = vmatpush1.bf16.xpose.msra.mxu0 %v1612
        %1624 = vmatprep.subr.bf16.mxu0 0
        %1625 = vmatpush1.bf16.xpose.msra.mxu0 %v1615
        %1626 = vmatprep.subr.bf16.mxu0 0
        %1627 = vmatpush1.bf16.xpose.msra.mxu0 %v1618
        %1628 = vmatprep.subr.bf16.mxu0 0
        %1629 = vmatpush1.bf16.xpose.msra.mxu0 0
        %1630 = vmatprep.subr.bf16.mxu0 0
        %1631 = vmatpush1.bf16.xpose.msra.mxu0 0
        %1632 = vmatprep.subr.bf16.mxu0 0
        %1633 = vmatpush1.bf16.xpose.msra.mxu0 0
        %1634 = vmatprep.subr.bf16.mxu0 0
        %1635 = vmatpush1.bf16.xpose.msra.mxu0 0
        %1636 = vmatprep.subr.bf16.mxu0 0
        %1637 = vmatpush1.bf16.xpose.msra.mxu0 0
        %1638 = vmatprep.subr.bf16.mxu0 0
        %1639 = vmatpush1.bf16.xpose.msra.mxu0 0
        %1640 = vmatprep.subr.bf16.mxu0 0
        %1641 = vmatpush1.bf16.xpose.msra.mxu0 0
        %1642 = vmatprep.subr.bf16.mxu0 0
        %1643 = vmatpush1.bf16.xpose.msra.mxu0 0
        %1644 = vmatprep.subr.bf16.mxu0 0
        %1645 = vmatpush1.bf16.xpose.msra.mxu0 0
        %1646 = vmatprep.subr.bf16.mxu0 0
        %1647 = vmatpush1.bf16.xpose.msra.mxu0 0
        %1648 = vmatprep.subr.bf16.mxu0 0
        %1649 = vmatpush1.bf16.xpose.msra.mxu0 0
        %1650 = vmatprep.subr.bf16.mxu0 0
        %1651 = vmatpush1.bf16.xpose.msra.mxu0 0
        %1652 = vmatprep.mubr.bf16.mxu0 0
        %1653 = vmatmul.mubr.bf16.gmra.mrb[0].mxu0 %v1597
        %v1654 = vpop.f32.mrb[0].mxu0
        %v1655 = vadd.f32 0.0, %v1654
        %v1656 = vpop.f32.mrb[0].mxu0
        %v1657 = vpop.f32.mrb[0].mxu0
        %v1658 = vadd.f32 0.0, %v1657
        %v1659 = vpop.f32.mrb[0].mxu0
        %1660 = vmatprep.mubr.bf16.mxu0 0
        %1661 = vmatmul.mubr.bf16.gmra.mrb[0].mxu0 %v1600
        %v1662 = vpop.f32.mrb[0].mxu0
        %v1663 = vadd.f32 0.0, %v1662
        %v1664 = vpop.f32.mrb[0].mxu0
        %v1665 = vpop.f32.mrb[0].mxu0
        %v1666 = vadd.f32 0.0, %v1665
        %v1667 = vpop.f32.mrb[0].mxu0
        %1668 = vmatprep.mubr.bf16.mxu0 0
        %1669 = vmatmul.mubr.bf16.gmra.mrb[0].mxu0 %v1603
        %v1670 = vpop.f32.mrb[0].mxu0
        %v1671 = vadd.f32 0.0, %v1670
        %v1672 = vpop.f32.mrb[0].mxu0
        %v1673 = vpop.f32.mrb[0].mxu0
        %v1674 = vadd.f32 0.0, %v1673
        %v1675 = vpop.f32.mrb[0].mxu0
        %1676 = vmatprep.mubr.bf16.mxu0 0
        %1677 = vmatmul.mubr.bf16.gmra.mrb[0].mxu0 %v1606
        %v1678 = vpop.f32.mrb[0].mxu0
        %v1679 = vadd.f32 0.0, %v1678
        %v1680 = vpop.f32.mrb[0].mxu0
        %v1681 = vpop.f32.mrb[0].mxu0
        %v1682 = vadd.f32 0.0, %v1681
        %v1683 = vpop.f32.mrb[0].mxu0
        %1684 = vdwg.mxu0
        %vm1685 = vcmask 523264
        %v1686 = vsel %vm1685, %v1655, -inf
        %1687 = vmax.xlane.f32.xlu0 %v1686
        %v1688 = vpop.xlane.xlu0 %1687
        %v1689 = vsel %vm1685, %v1658, -inf
        %1690 = vmax.xlane.f32.xlu0 %v1689
        %v1691 = vpop.xlane.xlu0 %1690
        %v1692 = vsel %vm1685, %v1663, -inf
        %1693 = vmax.xlane.f32.xlu0 %v1692
        %v1694 = vpop.xlane.xlu0 %1693
        %v1695 = vsel %vm1685, %v1666, -inf
        %1696 = vmax.xlane.f32.xlu0 %v1695
        %v1697 = vpop.xlane.xlu0 %1696
        %v1698 = vsel %vm1685, %v1671, -inf
        %1699 = vmax.xlane.f32.xlu0 %v1698
        %v1700 = vpop.xlane.xlu0 %1699
        %v1701 = vsel %vm1685, %v1674, -inf
        %1702 = vmax.xlane.f32.xlu0 %v1701
        %v1703 = vpop.xlane.xlu0 %1702
        %v1704 = vsel %vm1685, %v1679, -inf
        %1705 = vmax.xlane.f32.xlu0 %v1704
        %v1706 = vpop.xlane.xlu0 %1705
        %v1707 = vsel %vm1685, %v1682, -inf
        %1708 = vmax.xlane.f32.xlu0 %v1707
        %v1709 = vpop.xlane.xlu0 %1708
        %v1710 = vsub.f32 %v1655, %v1688
        %v1711 = vsub.f32 %v1658, %v1691
        %v1712 = vsub.f32 %v1663, %v1694
        %v1713 = vsub.f32 %v1666, %v1697
        %v1714 = vsub.f32 %v1671, %v1700
        %v1715 = vsub.f32 %v1674, %v1703
        %v1716 = vsub.f32 %v1679, %v1706
        %v1717 = vsub.f32 %v1682, %v1709
        %v1718 = vmul.f32 %v1710, 1.442695
        %v1719 = vpow.pop %v1718
        %v1720 = vmul.f32 %v1711, 1.442695
        %v1721 = vpow.pop %v1720
        %v1722 = vmul.f32 %v1712, 1.442695
        %v1723 = vpow.pop %v1722
        %v1724 = vmul.f32 %v1713, 1.442695
        %v1725 = vpow.pop %v1724
        %v1726 = vmul.f32 %v1714, 1.442695
        %v1727 = vpow.pop %v1726
        %v1728 = vmul.f32 %v1715, 1.442695
        %v1729 = vpow.pop %v1728
        %v1730 = vmul.f32 %v1716, 1.442695
        %v1731 = vpow.pop %v1730
        %v1732 = vmul.f32 %v1717, 1.442695
        %v1733 = vpow.pop %v1732
        %v1734 = vsel %vm1685, %v1719, 0.0
        %1735 = vadd.xlane.f32.xlu0 %v1734
        %v1736 = vpop.xlane.xlu0 %1735
        %v1737 = vsel %vm1685, %v1721, 0.0
        %1738 = vadd.xlane.f32.xlu0 %v1737
        %v1739 = vpop.xlane.xlu0 %1738
        %v1740 = vsel %vm1685, %v1723, 0.0
        %1741 = vadd.xlane.f32.xlu0 %v1740
        %v1742 = vpop.xlane.xlu0 %1741
        %v1743 = vsel %vm1685, %v1725, 0.0
        %1744 = vadd.xlane.f32.xlu0 %v1743
        %v1745 = vpop.xlane.xlu0 %1744
        %v1746 = vsel %vm1685, %v1727, 0.0
        %1747 = vadd.xlane.f32.xlu0 %v1746
        %v1748 = vpop.xlane.xlu0 %1747
        %v1749 = vsel %vm1685, %v1729, 0.0
        %1750 = vadd.xlane.f32.xlu0 %v1749
        %v1751 = vpop.xlane.xlu0 %1750
        %v1752 = vsel %vm1685, %v1731, 0.0
        %1753 = vadd.xlane.f32.xlu0 %v1752
        %v1754 = vpop.xlane.xlu0 %1753
        %v1755 = vsel %vm1685, %v1733, 0.0
        %1756 = vadd.xlane.f32.xlu0 %v1755
        %v1757 = vpop.xlane.xlu0 %1756
        %v1758 = vrcp.pop %v1736
        %v1759 = vrcp.pop %v1739
        %v1760 = vrcp.pop %v1742
        %v1761 = vrcp.pop %v1745
        %v1762 = vrcp.pop %v1748
        %v1763 = vrcp.pop %v1751
        %v1764 = vrcp.pop %v1754
        %v1765 = vrcp.pop %v1757
        %v1766 = vmul.f32 %v1719, %v1758
        %v1767 = vmul.f32 %v1721, %v1759
        %v1768 = vmul.f32 %v1723, %v1760
        %v1769 = vmul.f32 %v1725, %v1761
        %v1770 = vmul.f32 %v1727, %v1762
        %v1771 = vmul.f32 %v1729, %v1763
        %v1772 = vmul.f32 %v1731, %v1764
        %v1773 = vmul.f32 %v1733, %v1765
        %v1774 = vpack.c.bf16 %v1767, %v1766
        %v1775 = vpack.c.bf16 %v1769, %v1768
        %v1776 = vpack.c.bf16 %v1771, %v1770
        %v1777 = vpack.c.bf16 %v1773, %v1772
        %1778 = vrot.lane.b32.xlu0 %v1579, 64
        %v1779 = vpop.permute.xlu0 %1778
        %1780 = vrot.lane.b32.xlu0 %v1580, 64
        %v1781 = vpop.permute.xlu0 %1780
        %1782 = vrot.lane.b32.xlu0 %v1581, 64
        %v1783 = vpop.permute.xlu0 %1782
        %1784 = vrot.lane.b32.xlu0 %v1582, 64
        %v1785 = vpop.permute.xlu0 %1784
        %v1791 = vsel %vm1685, %v1774, 0
        %v1794 = vsel %vm1685, %v1775, 0
        %v1797 = vsel %vm1685, %v1776, 0
        %v1800 = vsel %vm1685, %v1777, 0
        %1802 = vmatprep.subr.bf16.mxu0 0
        %1803 = vmatpush1.bf16.msra.mxu0 %v1779
        %1804 = vmatprep.subr.bf16.mxu0 0
        %1805 = vmatpush1.bf16.msra.mxu0 %v1781
        %1806 = vmatprep.subr.bf16.mxu0 0
        %1807 = vmatpush1.bf16.msra.mxu0 %v1783
        %1808 = vmatprep.subr.bf16.mxu0 0
        %1809 = vmatpush1.bf16.msra.mxu0 %v1785
        %1810 = vmatprep.subr.bf16.mxu0 0
        %1811 = vmatpush1.bf16.msra.mxu0 0
        %1812 = vmatprep.subr.bf16.mxu0 0
        %1813 = vmatpush1.bf16.msra.mxu0 0
        %1814 = vmatprep.subr.bf16.mxu0 0
        %1815 = vmatpush1.bf16.msra.mxu0 0
        %1816 = vmatprep.subr.bf16.mxu0 0
        %1817 = vmatpush1.bf16.msra.mxu0 0
        %1818 = vmatprep.subr.bf16.mxu0 0
        %1819 = vmatpush1.bf16.msra.mxu0 0
        %1820 = vmatprep.subr.bf16.mxu0 0
        %1821 = vmatpush1.bf16.msra.mxu0 0
        %1822 = vmatprep.subr.bf16.mxu0 0
        %1823 = vmatpush1.bf16.msra.mxu0 0
        %1824 = vmatprep.subr.bf16.mxu0 0
        %1825 = vmatpush1.bf16.msra.mxu0 0
        %1826 = vmatprep.subr.bf16.mxu0 0
        %1827 = vmatpush1.bf16.msra.mxu0 0
        %1828 = vmatprep.subr.bf16.mxu0 0
        %1829 = vmatpush1.bf16.msra.mxu0 0
        %1830 = vmatprep.subr.bf16.mxu0 0
        %1831 = vmatpush1.bf16.msra.mxu0 0
        %1832 = vmatprep.subr.bf16.mxu0 0
        %1833 = vmatpush1.bf16.msra.mxu0 0
        %1834 = vmatprep.mubr.bf16.mxu0 0
        %1835 = vmatmul.mubr.bf16.gmra.mrb[0].mxu0 %v1791
        %v1836 = vpop.f32.mrb[0].mxu0
        %v1837 = vadd.f32 0.0, %v1836
        %v1838 = vpop.f32.mrb[0].mxu0
        %v1839 = vpop.f32.mrb[0].mxu0
        %v1840 = vadd.f32 0.0, %v1839
        %v1841 = vpop.f32.mrb[0].mxu0
        %1842 = vmatprep.mubr.bf16.mxu0 0
        %1843 = vmatmul.mubr.bf16.gmra.mrb[0].mxu0 %v1794
        %v1844 = vpop.f32.mrb[0].mxu0
        %v1845 = vadd.f32 0.0, %v1844
        %v1846 = vpop.f32.mrb[0].mxu0
        %v1847 = vpop.f32.mrb[0].mxu0
        %v1848 = vadd.f32 0.0, %v1847
        %v1849 = vpop.f32.mrb[0].mxu0
        %1850 = vmatprep.mubr.bf16.mxu0 0
        %1851 = vmatmul.mubr.bf16.gmra.mrb[0].mxu0 %v1797
        %v1852 = vpop.f32.mrb[0].mxu0
        %v1853 = vadd.f32 0.0, %v1852
        %v1854 = vpop.f32.mrb[0].mxu0
        %v1855 = vpop.f32.mrb[0].mxu0
        %v1856 = vadd.f32 0.0, %v1855
        %v1857 = vpop.f32.mrb[0].mxu0
        %1858 = vmatprep.mubr.bf16.mxu0 0
        %1859 = vmatmul.mubr.bf16.gmra.mrb[0].mxu0 %v1800
        %v1860 = vpop.f32.mrb[0].mxu0
        %v1861 = vadd.f32 0.0, %v1860
        %v1862 = vpop.f32.mrb[0].mxu0
        %v1863 = vpop.f32.mrb[0].mxu0
        %v1864 = vadd.f32 0.0, %v1863
        %v1865 = vpop.f32.mrb[0].mxu0
        %1866 = vdwg.mxu0
        %1871 = vrot.lane.b32.xlu0 %v1575, 120
        %v1872 = vpop.permute.xlu0 %1871
        %1873 = vrot.lane.b32.xlu0 %v1576, 120
        %v1874 = vpop.permute.xlu0 %1873
        %1875 = vrot.lane.b32.xlu0 %v1577, 120
        %v1876 = vpop.permute.xlu0 %1875
        %1877 = vrot.lane.b32.xlu0 %v1578, 120
        %v1878 = vpop.permute.xlu0 %1877
        %1879 = vrot.lane.b32.xlu0 %v1579, 88
        %v1880 = vpop.permute.xlu0 %1879
        %1881 = vrot.lane.b32.xlu0 %v1580, 88
        %v1882 = vpop.permute.xlu0 %1881
        %1883 = vrot.lane.b32.xlu0 %v1581, 88
        %v1884 = vpop.permute.xlu0 %1883
        %1885 = vrot.lane.b32.xlu0 %v1582, 88
        %v1886 = vpop.permute.xlu0 %1885
        %v1888 = vsel %vm1595, %v1872, 0
        %v1891 = vsel %vm1595, %v1874, 0
        %v1894 = vsel %vm1595, %v1876, 0
        %v1897 = vsel %vm1595, %v1878, 0
        %v1900 = vsel %vm1595, %v1880, 0
        %v1903 = vsel %vm1595, %v1882, 0
        %v1906 = vsel %vm1595, %v1884, 0
        %v1909 = vsel %vm1595, %v1886, 0
        %1911 = vmatprep.subr.bf16.mxu0 0
        %1912 = vmatpush1.bf16.xpose.msra.mxu0 %v1900
        %1913 = vmatprep.subr.bf16.mxu0 0
        %1914 = vmatpush1.bf16.xpose.msra.mxu0 %v1903
        %1915 = vmatprep.subr.bf16.mxu0 0
        %1916 = vmatpush1.bf16.xpose.msra.mxu0 %v1906
        %1917 = vmatprep.subr.bf16.mxu0 0
        %1918 = vmatpush1.bf16.xpose.msra.mxu0 %v1909
        %1919 = vmatprep.subr.bf16.mxu0 0
        %1920 = vmatpush1.bf16.xpose.msra.mxu0 0
        %1921 = vmatprep.subr.bf16.mxu0 0
        %1922 = vmatpush1.bf16.xpose.msra.mxu0 0
        %1923 = vmatprep.subr.bf16.mxu0 0
        %1924 = vmatpush1.bf16.xpose.msra.mxu0 0
        %1925 = vmatprep.subr.bf16.mxu0 0
        %1926 = vmatpush1.bf16.xpose.msra.mxu0 0
        %1927 = vmatprep.subr.bf16.mxu0 0
        %1928 = vmatpush1.bf16.xpose.msra.mxu0 0
        %1929 = vmatprep.subr.bf16.mxu0 0
        %1930 = vmatpush1.bf16.xpose.msra.mxu0 0
        %1931 = vmatprep.subr.bf16.mxu0 0
        %1932 = vmatpush1.bf16.xpose.msra.mxu0 0
        %1933 = vmatprep.subr.bf16.mxu0 0
        %1934 = vmatpush1.bf16.xpose.msra.mxu0 0
        %1935 = vmatprep.subr.bf16.mxu0 0
        %1936 = vmatpush1.bf16.xpose.msra.mxu0 0
        %1937 = vmatprep.subr.bf16.mxu0 0
        %1938 = vmatpush1.bf16.xpose.msra.mxu0 0
        %1939 = vmatprep.subr.bf16.mxu0 0
        %1940 = vmatpush1.bf16.xpose.msra.mxu0 0
        %1941 = vmatprep.subr.bf16.mxu0 0
        %1942 = vmatpush1.bf16.xpose.msra.mxu0 0
        %1943 = vmatprep.mubr.bf16.mxu0 0
        %1944 = vmatmul.mubr.bf16.gmra.mrb[0].mxu0 %v1888
        %v1945 = vpop.f32.mrb[0].mxu0
        %v1946 = vadd.f32 0.0, %v1945
        %v1947 = vpop.f32.mrb[0].mxu0
        %v1948 = vpop.f32.mrb[0].mxu0
        %v1949 = vadd.f32 0.0, %v1948
        %v1950 = vpop.f32.mrb[0].mxu0
        %1951 = vmatprep.mubr.bf16.mxu0 0
        %1952 = vmatmul.mubr.bf16.gmra.mrb[0].mxu0 %v1891
        %v1953 = vpop.f32.mrb[0].mxu0
        %v1954 = vadd.f32 0.0, %v1953
        %v1955 = vpop.f32.mrb[0].mxu0
        %v1956 = vpop.f32.mrb[0].mxu0
        %v1957 = vadd.f32 0.0, %v1956
        %v1958 = vpop.f32.mrb[0].mxu0
        %1959 = vmatprep.mubr.bf16.mxu0 0
        %1960 = vmatmul.mubr.bf16.gmra.mrb[0].mxu0 %v1894
        %v1961 = vpop.f32.mrb[0].mxu0
        %v1962 = vadd.f32 0.0, %v1961
        %v1963 = vpop.f32.mrb[0].mxu0
        %v1964 = vpop.f32.mrb[0].mxu0
        %v1965 = vadd.f32 0.0, %v1964
        %v1966 = vpop.f32.mrb[0].mxu0
        %1967 = vmatprep.mubr.bf16.mxu0 0
        %1968 = vmatmul.mubr.bf16.gmra.mrb[0].mxu0 %v1897
        %v1969 = vpop.f32.mrb[0].mxu0
        %v1970 = vadd.f32 0.0, %v1969
        %v1971 = vpop.f32.mrb[0].mxu0
        %v1972 = vpop.f32.mrb[0].mxu0
        %v1973 = vadd.f32 0.0, %v1972
        %v1974 = vpop.f32.mrb[0].mxu0
        %1975 = vdwg.mxu0
        %v1976 = vsel %vm1685, %v1946, -inf
        %1977 = vmax.xlane.f32.xlu0 %v1976
        %v1978 = vpop.xlane.xlu0 %1977
        %v1979 = vsel %vm1685, %v1949, -inf
        %1980 = vmax.xlane.f32.xlu0 %v1979
        %v1981 = vpop.xlane.xlu0 %1980
        %v1982 = vsel %vm1685, %v1954, -inf
        %1983 = vmax.xlane.f32.xlu0 %v1982
        %v1984 = vpop.xlane.xlu0 %1983
        %v1985 = vsel %vm1685, %v1957, -inf
        %1986 = vmax.xlane.f32.xlu0 %v1985
        %v1987 = vpop.xlane.xlu0 %1986
        %v1988 = vsel %vm1685, %v1962, -inf
        %1989 = vmax.xlane.f32.xlu0 %v1988
        %v1990 = vpop.xlane.xlu0 %1989
        %v1991 = vsel %vm1685, %v1965, -inf
        %1992 = vmax.xlane.f32.xlu0 %v1991
        %v1993 = vpop.xlane.xlu0 %1992
        %v1994 = vsel %vm1685, %v1970, -inf
        %1995 = vmax.xlane.f32.xlu0 %v1994
        %v1996 = vpop.xlane.xlu0 %1995
        %v1997 = vsel %vm1685, %v1973, -inf
        %1998 = vmax.xlane.f32.xlu0 %v1997
        %v1999 = vpop.xlane.xlu0 %1998
        %v2000 = vsub.f32 %v1946, %v1978
        %v2001 = vsub.f32 %v1949, %v1981
        %v2002 = vsub.f32 %v1954, %v1984
        %v2003 = vsub.f32 %v1957, %v1987
        %v2004 = vsub.f32 %v1962, %v1990
        %v2005 = vsub.f32 %v1965, %v1993
        %v2006 = vsub.f32 %v1970, %v1996
        %v2007 = vsub.f32 %v1973, %v1999
        %v2008 = vmul.f32 %v2000, 1.442695
        %v2009 = vpow.pop %v2008
        %v2010 = vmul.f32 %v2001, 1.442695
        %v2011 = vpow.pop %v2010
        %v2012 = vmul.f32 %v2002, 1.442695
        %v2013 = vpow.pop %v2012
        %v2014 = vmul.f32 %v2003, 1.442695
        %v2015 = vpow.pop %v2014
        %v2016 = vmul.f32 %v2004, 1.442695
        %v2017 = vpow.pop %v2016
        %v2018 = vmul.f32 %v2005, 1.442695
        %v2019 = vpow.pop %v2018
        %v2020 = vmul.f32 %v2006, 1.442695
        %v2021 = vpow.pop %v2020
        %v2022 = vmul.f32 %v2007, 1.442695
        %v2023 = vpow.pop %v2022
        %v2024 = vsel %vm1685, %v2009, 0.0
        %2025 = vadd.xlane.f32.xlu0 %v2024
        %v2026 = vpop.xlane.xlu0 %2025
        %v2027 = vsel %vm1685, %v2011, 0.0
        %2028 = vadd.xlane.f32.xlu0 %v2027
        %v2029 = vpop.xlane.xlu0 %2028
        %v2030 = vsel %vm1685, %v2013, 0.0
        %2031 = vadd.xlane.f32.xlu0 %v2030
        %v2032 = vpop.xlane.xlu0 %2031
        %v2033 = vsel %vm1685, %v2015, 0.0
        %2034 = vadd.xlane.f32.xlu0 %v2033
        %v2035 = vpop.xlane.xlu0 %2034
        %v2036 = vsel %vm1685, %v2017, 0.0
        %2037 = vadd.xlane.f32.xlu0 %v2036
        %v2038 = vpop.xlane.xlu0 %2037
        %v2039 = vsel %vm1685, %v2019, 0.0
        %2040 = vadd.xlane.f32.xlu0 %v2039
        %v2041 = vpop.xlane.xlu0 %2040
        %v2042 = vsel %vm1685, %v2021, 0.0
        %2043 = vadd.xlane.f32.xlu0 %v2042
        %v2044 = vpop.xlane.xlu0 %2043
        %v2045 = vsel %vm1685, %v2023, 0.0
        %2046 = vadd.xlane.f32.xlu0 %v2045
        %v2047 = vpop.xlane.xlu0 %2046
        %v2048 = vrcp.pop %v2026
        %v2049 = vrcp.pop %v2029
        %v2050 = vrcp.pop %v2032
        %v2051 = vrcp.pop %v2035
        %v2052 = vrcp.pop %v2038
        %v2053 = vrcp.pop %v2041
        %v2054 = vrcp.pop %v2044
        %v2055 = vrcp.pop %v2047
        %v2056 = vmul.f32 %v2009, %v2048
        %v2057 = vmul.f32 %v2011, %v2049
        %v2058 = vmul.f32 %v2013, %v2050
        %v2059 = vmul.f32 %v2015, %v2051
        %v2060 = vmul.f32 %v2017, %v2052
        %v2061 = vmul.f32 %v2019, %v2053
        %v2062 = vmul.f32 %v2021, %v2054
        %v2063 = vmul.f32 %v2023, %v2055
        %v2064 = vpack.c.bf16 %v2057, %v2056
        %v2065 = vpack.c.bf16 %v2059, %v2058
        %v2066 = vpack.c.bf16 %v2061, %v2060
        %v2067 = vpack.c.bf16 %v2063, %v2062
        %2068 = vrot.lane.b32.xlu0 %v1579, 56
        %v2069 = vpop.permute.xlu0 %2068
        %2070 = vrot.lane.b32.xlu0 %v1580, 56
        %v2071 = vpop.permute.xlu0 %2070
        %2072 = vrot.lane.b32.xlu0 %v1581, 56
        %v2073 = vpop.permute.xlu0 %2072
        %2074 = vrot.lane.b32.xlu0 %v1582, 56
        %v2075 = vpop.permute.xlu0 %2074
        %v2081 = vsel %vm1685, %v2064, 0
        %v2084 = vsel %vm1685, %v2065, 0
        %v2087 = vsel %vm1685, %v2066, 0
        %v2090 = vsel %vm1685, %v2067, 0
        %2092 = vmatprep.subr.bf16.mxu0 0
        %2093 = vmatpush1.bf16.msra.mxu0 %v2069
        %2094 = vmatprep.subr.bf16.mxu0 0
        %2095 = vmatpush1.bf16.msra.mxu0 %v2071
        %2096 = vmatprep.subr.bf16.mxu0 0
        %2097 = vmatpush1.bf16.msra.mxu0 %v2073
        %2098 = vmatprep.subr.bf16.mxu0 0
        %2099 = vmatpush1.bf16.msra.mxu0 %v2075
        %2100 = vmatprep.subr.bf16.mxu0 0
        %2101 = vmatpush1.bf16.msra.mxu0 0
        %2102 = vmatprep.subr.bf16.mxu0 0
        %2103 = vmatpush1.bf16.msra.mxu0 0
        %2104 = vmatprep.subr.bf16.mxu0 0
        %2105 = vmatpush1.bf16.msra.mxu0 0
        %2106 = vmatprep.subr.bf16.mxu0 0
        %2107 = vmatpush1.bf16.msra.mxu0 0
        %2108 = vmatprep.subr.bf16.mxu0 0
        %2109 = vmatpush1.bf16.msra.mxu0 0
        %2110 = vmatprep.subr.bf16.mxu0 0
        %2111 = vmatpush1.bf16.msra.mxu0 0
        %2112 = vmatprep.subr.bf16.mxu0 0
        %2113 = vmatpush1.bf16.msra.mxu0 0
        %2114 = vmatprep.subr.bf16.mxu0 0
        %2115 = vmatpush1.bf16.msra.mxu0 0
        %2116 = vmatprep.subr.bf16.mxu0 0
        %2117 = vmatpush1.bf16.msra.mxu0 0
        %2118 = vmatprep.subr.bf16.mxu0 0
        %2119 = vmatpush1.bf16.msra.mxu0 0
        %2120 = vmatprep.subr.bf16.mxu0 0
        %2121 = vmatpush1.bf16.msra.mxu0 0
        %2122 = vmatprep.subr.bf16.mxu0 0
        %2123 = vmatpush1.bf16.msra.mxu0 0
        %2124 = vmatprep.mubr.bf16.mxu0 0
        %2125 = vmatmul.mubr.bf16.gmra.mrb[0].mxu0 %v2081
        %v2126 = vpop.f32.mrb[0].mxu0
        %v2127 = vadd.f32 0.0, %v2126
        %v2128 = vpop.f32.mrb[0].mxu0
        %v2129 = vpop.f32.mrb[0].mxu0
        %v2130 = vadd.f32 0.0, %v2129
        %v2131 = vpop.f32.mrb[0].mxu0
        %2132 = vmatprep.mubr.bf16.mxu0 0
        %2133 = vmatmul.mubr.bf16.gmra.mrb[0].mxu0 %v2084
        %v2134 = vpop.f32.mrb[0].mxu0
        %v2135 = vadd.f32 0.0, %v2134
        %v2136 = vpop.f32.mrb[0].mxu0
        %v2137 = vpop.f32.mrb[0].mxu0
        %v2138 = vadd.f32 0.0, %v2137
        %v2139 = vpop.f32.mrb[0].mxu0
        %2140 = vmatprep.mubr.bf16.mxu0 0
        %2141 = vmatmul.mubr.bf16.gmra.mrb[0].mxu0 %v2087
        %v2142 = vpop.f32.mrb[0].mxu0
        %v2143 = vadd.f32 0.0, %v2142
        %v2144 = vpop.f32.mrb[0].mxu0
        %v2145 = vpop.f32.mrb[0].mxu0
        %v2146 = vadd.f32 0.0, %v2145
        %v2147 = vpop.f32.mrb[0].mxu0
        %2148 = vmatprep.mubr.bf16.mxu0 0
        %2149 = vmatmul.mubr.bf16.gmra.mrb[0].mxu0 %v2090
        %v2150 = vpop.f32.mrb[0].mxu0
        %v2151 = vadd.f32 0.0, %v2150
        %v2152 = vpop.f32.mrb[0].mxu0
        %v2153 = vpop.f32.mrb[0].mxu0
        %v2154 = vadd.f32 0.0, %v2153
        %v2155 = vpop.f32.mrb[0].mxu0
        %2156 = vdwg.mxu0
        %2157 = vrot.lane.b32.xlu0 %v1575, 112
        %v2158 = vpop.permute.xlu0 %2157
        %2159 = vrot.lane.b32.xlu0 %v1576, 112
        %v2160 = vpop.permute.xlu0 %2159
        %2161 = vrot.lane.b32.xlu0 %v1577, 112
        %v2162 = vpop.permute.xlu0 %2161
        %2163 = vrot.lane.b32.xlu0 %v1578, 112
        %v2164 = vpop.permute.xlu0 %2163
        %2165 = vrot.lane.b32.xlu0 %v1579, 80
        %v2166 = vpop.permute.xlu0 %2165
        %2167 = vrot.lane.b32.xlu0 %v1580, 80
        %v2168 = vpop.permute.xlu0 %2167
        %2169 = vrot.lane.b32.xlu0 %v1581, 80
        %v2170 = vpop.permute.xlu0 %2169
        %2171 = vrot.lane.b32.xlu0 %v1582, 80
        %v2172 = vpop.permute.xlu0 %2171
        %v2174 = vsel %vm1595, %v2158, 0
        %v2177 = vsel %vm1595, %v2160, 0
        %v2180 = vsel %vm1595, %v2162, 0
        %v2183 = vsel %vm1595, %v2164, 0
        %v2186 = vsel %vm1595, %v2166, 0
        %v2189 = vsel %vm1595, %v2168, 0
        %v2192 = vsel %vm1595, %v2170, 0
        %v2195 = vsel %vm1595, %v2172, 0
        %2197 = vmatprep.subr.bf16.mxu0 0
        %2198 = vmatpush1.bf16.xpose.msra.mxu0 %v2186
        %2199 = vmatprep.subr.bf16.mxu0 0
        %2200 = vmatpush1.bf16.xpose.msra.mxu0 %v2189
        %2201 = vmatprep.subr.bf16.mxu0 0
        %2202 = vmatpush1.bf16.xpose.msra.mxu0 %v2192
        %2203 = vmatprep.subr.bf16.mxu0 0
        %2204 = vmatpush1.bf16.xpose.msra.mxu0 %v2195
        %2205 = vmatprep.subr.bf16.mxu0 0
        %2206 = vmatpush1.bf16.xpose.msra.mxu0 0
        %2207 = vmatprep.subr.bf16.mxu0 0
        %2208 = vmatpush1.bf16.xpose.msra.mxu0 0
        %2209 = vmatprep.subr.bf16.mxu0 0
        %2210 = vmatpush1.bf16.xpose.msra.mxu0 0
        %2211 = vmatprep.subr.bf16.mxu0 0
        %2212 = vmatpush1.bf16.xpose.msra.mxu0 0
        %2213 = vmatprep.subr.bf16.mxu0 0
        %2214 = vmatpush1.bf16.xpose.msra.mxu0 0
        %2215 = vmatprep.subr.bf16.mxu0 0
        %2216 = vmatpush1.bf16.xpose.msra.mxu0 0
        %2217 = vmatprep.subr.bf16.mxu0 0
        %2218 = vmatpush1.bf16.xpose.msra.mxu0 0
        %2219 = vmatprep.subr.bf16.mxu0 0
        %2220 = vmatpush1.bf16.xpose.msra.mxu0 0
        %2221 = vmatprep.subr.bf16.mxu0 0
        %2222 = vmatpush1.bf16.xpose.msra.mxu0 0
        %2223 = vmatprep.subr.bf16.mxu0 0
        %2224 = vmatpush1.bf16.xpose.msra.mxu0 0
        %2225 = vmatprep.subr.bf16.mxu0 0
        %2226 = vmatpush1.bf16.xpose.msra.mxu0 0
        %2227 = vmatprep.subr.bf16.mxu0 0
        %2228 = vmatpush1.bf16.xpose.msra.mxu0 0
        %2229 = vmatprep.mubr.bf16.mxu0 0
        %2230 = vmatmul.mubr.bf16.gmra.mrb[0].mxu0 %v2174
        %v2231 = vpop.f32.mrb[0].mxu0
        %v2232 = vadd.f32 0.0, %v2231
        %v2233 = vpop.f32.mrb[0].mxu0
        %v2234 = vpop.f32.mrb[0].mxu0
        %v2235 = vadd.f32 0.0, %v2234
        %v2236 = vpop.f32.mrb[0].mxu0
        %2237 = vmatprep.mubr.bf16.mxu0 0
        %2238 = vmatmul.mubr.bf16.gmra.mrb[0].mxu0 %v2177
        %v2239 = vpop.f32.mrb[0].mxu0
        %v2240 = vadd.f32 0.0, %v2239
        %v2241 = vpop.f32.mrb[0].mxu0
        %v2242 = vpop.f32.mrb[0].mxu0
        %v2243 = vadd.f32 0.0, %v2242
        %v2244 = vpop.f32.mrb[0].mxu0
        %2245 = vmatprep.mubr.bf16.mxu0 0
        %2246 = vmatmul.mubr.bf16.gmra.mrb[0].mxu0 %v2180
        %v2247 = vpop.f32.mrb[0].mxu0
        %v2248 = vadd.f32 0.0, %v2247
        %v2249 = vpop.f32.mrb[0].mxu0
        %v2250 = vpop.f32.mrb[0].mxu0
        %v2251 = vadd.f32 0.0, %v2250
        %v2252 = vpop.f32.mrb[0].mxu0
        %2253 = vmatprep.mubr.bf16.mxu0 0
        %2254 = vmatmul.mubr.bf16.gmra.mrb[0].mxu0 %v2183
        %v2255 = vpop.f32.mrb[0].mxu0
        %v2256 = vadd.f32 0.0, %v2255
        %v2257 = vpop.f32.mrb[0].mxu0
        %v2258 = vpop.f32.mrb[0].mxu0
        %v2259 = vadd.f32 0.0, %v2258
        %v2260 = vpop.f32.mrb[0].mxu0
        %2261 = vdwg.mxu0
        %v2262 = vsel %vm1685, %v2232, -inf
        %2263 = vmax.xlane.f32.xlu0 %v2262
        %v2264 = vpop.xlane.xlu0 %2263
        %v2265 = vsel %vm1685, %v2235, -inf
        %2266 = vmax.xlane.f32.xlu0 %v2265
        %v2267 = vpop.xlane.xlu0 %2266
        %v2268 = vsel %vm1685, %v2240, -inf
        %2269 = vmax.xlane.f32.xlu0 %v2268
        %v2270 = vpop.xlane.xlu0 %2269
        %v2271 = vsel %vm1685, %v2243, -inf
        %2272 = vmax.xlane.f32.xlu0 %v2271
        %v2273 = vpop.xlane.xlu0 %2272
        %v2274 = vsel %vm1685, %v2248, -inf
        %2275 = vmax.xlane.f32.xlu0 %v2274
        %v2276 = vpop.xlane.xlu0 %2275
        %v2277 = vsel %vm1685, %v2251, -inf
        %2278 = vmax.xlane.f32.xlu0 %v2277
        %v2279 = vpop.xlane.xlu0 %2278
        %v2280 = vsel %vm1685, %v2256, -inf
        %2281 = vmax.xlane.f32.xlu0 %v2280
        %v2282 = vpop.xlane.xlu0 %2281
        %v2283 = vsel %vm1685, %v2259, -inf
        %2284 = vmax.xlane.f32.xlu0 %v2283
        %v2285 = vpop.xlane.xlu0 %2284
        %v2286 = vsub.f32 %v2232, %v2264
        %v2287 = vsub.f32 %v2235, %v2267
        %v2288 = vsub.f32 %v2240, %v2270
        %v2289 = vsub.f32 %v2243, %v2273
        %v2290 = vsub.f32 %v2248, %v2276
        %v2291 = vsub.f32 %v2251, %v2279
        %v2292 = vsub.f32 %v2256, %v2282
        %v2293 = vsub.f32 %v2259, %v2285
        %v2294 = vmul.f32 %v2286, 1.442695
        %v2295 = vpow.pop %v2294
        %v2296 = vmul.f32 %v2287, 1.442695
        %v2297 = vpow.pop %v2296
        %v2298 = vmul.f32 %v2288, 1.442695
        %v2299 = vpow.pop %v2298
        %v2300 = vmul.f32 %v2289, 1.442695
        %v2301 = vpow.pop %v2300
        %v2302 = vmul.f32 %v2290, 1.442695
        %v2303 = vpow.pop %v2302
        %v2304 = vmul.f32 %v2291, 1.442695
        %v2305 = vpow.pop %v2304
        %v2306 = vmul.f32 %v2292, 1.442695
        %v2307 = vpow.pop %v2306
        %v2308 = vmul.f32 %v2293, 1.442695
        %v2309 = vpow.pop %v2308
        %v2310 = vsel %vm1685, %v2295, 0.0
        %2311 = vadd.xlane.f32.xlu0 %v2310
        %v2312 = vpop.xlane.xlu0 %2311
        %v2313 = vsel %vm1685, %v2297, 0.0
        %2314 = vadd.xlane.f32.xlu0 %v2313
        %v2315 = vpop.xlane.xlu0 %2314
        %v2316 = vsel %vm1685, %v2299, 0.0
        %2317 = vadd.xlane.f32.xlu0 %v2316
        %v2318 = vpop.xlane.xlu0 %2317
        %v2319 = vsel %vm1685, %v2301, 0.0
        %2320 = vadd.xlane.f32.xlu0 %v2319
        %v2321 = vpop.xlane.xlu0 %2320
        %v2322 = vsel %vm1685, %v2303, 0.0
        %2323 = vadd.xlane.f32.xlu0 %v2322
        %v2324 = vpop.xlane.xlu0 %2323
        %v2325 = vsel %vm1685, %v2305, 0.0
        %2326 = vadd.xlane.f32.xlu0 %v2325
        %v2327 = vpop.xlane.xlu0 %2326
        %v2328 = vsel %vm1685, %v2307, 0.0
        %2329 = vadd.xlane.f32.xlu0 %v2328
        %v2330 = vpop.xlane.xlu0 %2329
        %v2331 = vsel %vm1685, %v2309, 0.0
        %2332 = vadd.xlane.f32.xlu0 %v2331
        %v2333 = vpop.xlane.xlu0 %2332
        %v2334 = vrcp.pop %v2312
        %v2335 = vrcp.pop %v2315
        %v2336 = vrcp.pop %v2318
        %v2337 = vrcp.pop %v2321
        %v2338 = vrcp.pop %v2324
        %v2339 = vrcp.pop %v2327
        %v2340 = vrcp.pop %v2330
        %v2341 = vrcp.pop %v2333
        %v2342 = vmul.f32 %v2295, %v2334
        %v2343 = vmul.f32 %v2297, %v2335
        %v2344 = vmul.f32 %v2299, %v2336
        %v2345 = vmul.f32 %v2301, %v2337
        %v2346 = vmul.f32 %v2303, %v2338
        %v2347 = vmul.f32 %v2305, %v2339
        %v2348 = vmul.f32 %v2307, %v2340
        %v2349 = vmul.f32 %v2309, %v2341
        %v2350 = vpack.c.bf16 %v2343, %v2342
        %v2351 = vpack.c.bf16 %v2345, %v2344
        %v2352 = vpack.c.bf16 %v2347, %v2346
        %v2353 = vpack.c.bf16 %v2349, %v2348
        %2354 = vrot.lane.b32.xlu0 %v1579, 48
        %v2355 = vpop.permute.xlu0 %2354
        %2356 = vrot.lane.b32.xlu0 %v1580, 48
        %v2357 = vpop.permute.xlu0 %2356
        %2358 = vrot.lane.b32.xlu0 %v1581, 48
        %v2359 = vpop.permute.xlu0 %2358
        %2360 = vrot.lane.b32.xlu0 %v1582, 48
        %v2361 = vpop.permute.xlu0 %2360
        %v2367 = vsel %vm1685, %v2350, 0
        %v2370 = vsel %vm1685, %v2351, 0
        %v2373 = vsel %vm1685, %v2352, 0
        %v2376 = vsel %vm1685, %v2353, 0
        %2378 = vmatprep.subr.bf16.mxu0 0
        %2379 = vmatpush1.bf16.msra.mxu0 %v2355
        %2380 = vmatprep.subr.bf16.mxu0 0
        %2381 = vmatpush1.bf16.msra.mxu0 %v2357
        %2382 = vmatprep.subr.bf16.mxu0 0
        %2383 = vmatpush1.bf16.msra.mxu0 %v2359
        %2384 = vmatprep.subr.bf16.mxu0 0
        %2385 = vmatpush1.bf16.msra.mxu0 %v2361
        %2386 = vmatprep.subr.bf16.mxu0 0
        %2387 = vmatpush1.bf16.msra.mxu0 0
        %2388 = vmatprep.subr.bf16.mxu0 0
        %2389 = vmatpush1.bf16.msra.mxu0 0
        %2390 = vmatprep.subr.bf16.mxu0 0
        %2391 = vmatpush1.bf16.msra.mxu0 0
        %2392 = vmatprep.subr.bf16.mxu0 0
        %2393 = vmatpush1.bf16.msra.mxu0 0
        %2394 = vmatprep.subr.bf16.mxu0 0
        %2395 = vmatpush1.bf16.msra.mxu0 0
        %2396 = vmatprep.subr.bf16.mxu0 0
        %2397 = vmatpush1.bf16.msra.mxu0 0
        %2398 = vmatprep.subr.bf16.mxu0 0
        %2399 = vmatpush1.bf16.msra.mxu0 0
        %2400 = vmatprep.subr.bf16.mxu0 0
        %2401 = vmatpush1.bf16.msra.mxu0 0
        %2402 = vmatprep.subr.bf16.mxu0 0
        %2403 = vmatpush1.bf16.msra.mxu0 0
        %2404 = vmatprep.subr.bf16.mxu0 0
        %2405 = vmatpush1.bf16.msra.mxu0 0
        %2406 = vmatprep.subr.bf16.mxu0 0
        %2407 = vmatpush1.bf16.msra.mxu0 0
        %2408 = vmatprep.subr.bf16.mxu0 0
        %2409 = vmatpush1.bf16.msra.mxu0 0
        %2410 = vmatprep.mubr.bf16.mxu0 0
        %2411 = vmatmul.mubr.bf16.gmra.mrb[0].mxu0 %v2367
        %v2412 = vpop.f32.mrb[0].mxu0
        %v2413 = vadd.f32 0.0, %v2412
        %v2414 = vpop.f32.mrb[0].mxu0
        %v2415 = vpop.f32.mrb[0].mxu0
        %v2416 = vadd.f32 0.0, %v2415
        %v2417 = vpop.f32.mrb[0].mxu0
        %2418 = vmatprep.mubr.bf16.mxu0 0
        %2419 = vmatmul.mubr.bf16.gmra.mrb[0].mxu0 %v2370
        %v2420 = vpop.f32.mrb[0].mxu0
        %v2421 = vadd.f32 0.0, %v2420
        %v2422 = vpop.f32.mrb[0].mxu0
        %v2423 = vpop.f32.mrb[0].mxu0
        %v2424 = vadd.f32 0.0, %v2423
        %v2425 = vpop.f32.mrb[0].mxu0
        %2426 = vmatprep.mubr.bf16.mxu0 0
        %2427 = vmatmul.mubr.bf16.gmra.mrb[0].mxu0 %v2373
        %v2428 = vpop.f32.mrb[0].mxu0
        %v2429 = vadd.f32 0.0, %v2428
        %v2430 = vpop.f32.mrb[0].mxu0
        %v2431 = vpop.f32.mrb[0].mxu0
        %v2432 = vadd.f32 0.0, %v2431
        %v2433 = vpop.f32.mrb[0].mxu0
        %2434 = vmatprep.mubr.bf16.mxu0 0
        %2435 = vmatmul.mubr.bf16.gmra.mrb[0].mxu0 %v2376
        %v2436 = vpop.f32.mrb[0].mxu0
        %v2437 = vadd.f32 0.0, %v2436
        %v2438 = vpop.f32.mrb[0].mxu0
        %v2439 = vpop.f32.mrb[0].mxu0
        %v2440 = vadd.f32 0.0, %v2439
        %v2441 = vpop.f32.mrb[0].mxu0
        %2442 = vdwg.mxu0
        %2443 = vrot.lane.b32.xlu0 %v1575, 104
        %v2444 = vpop.permute.xlu0 %2443
        %2445 = vrot.lane.b32.xlu0 %v1576, 104
        %v2446 = vpop.permute.xlu0 %2445
        %2447 = vrot.lane.b32.xlu0 %v1577, 104
        %v2448 = vpop.permute.xlu0 %2447
        %2449 = vrot.lane.b32.xlu0 %v1578, 104
        %v2450 = vpop.permute.xlu0 %2449
        %2451 = vrot.lane.b32.xlu0 %v1579, 72
        %v2452 = vpop.permute.xlu0 %2451
        %2453 = vrot.lane.b32.xlu0 %v1580, 72
        %v2454 = vpop.permute.xlu0 %2453
        %2455 = vrot.lane.b32.xlu0 %v1581, 72
        %v2456 = vpop.permute.xlu0 %2455
        %2457 = vrot.lane.b32.xlu0 %v1582, 72
        %v2458 = vpop.permute.xlu0 %2457
        %v2460 = vsel %vm1595, %v2444, 0
        %v2463 = vsel %vm1595, %v2446, 0
        %v2466 = vsel %vm1595, %v2448, 0
        %v2469 = vsel %vm1595, %v2450, 0
        %v2472 = vsel %vm1595, %v2452, 0
        %v2475 = vsel %vm1595, %v2454, 0
        %v2478 = vsel %vm1595, %v2456, 0
        %v2481 = vsel %vm1595, %v2458, 0
        %2483 = vmatprep.subr.bf16.mxu0 0
        %2484 = vmatpush1.bf16.xpose.msra.mxu0 %v2472
        %2485 = vmatprep.subr.bf16.mxu0 0
        %2486 = vmatpush1.bf16.xpose.msra.mxu0 %v2475
        %2487 = vmatprep.subr.bf16.mxu0 0
        %2488 = vmatpush1.bf16.xpose.msra.mxu0 %v2478
        %2489 = vmatprep.subr.bf16.mxu0 0
        %2490 = vmatpush1.bf16.xpose.msra.mxu0 %v2481
        %2491 = vmatprep.subr.bf16.mxu0 0
        %2492 = vmatpush1.bf16.xpose.msra.mxu0 0
        %2493 = vmatprep.subr.bf16.mxu0 0
        %2494 = vmatpush1.bf16.xpose.msra.mxu0 0
        %2495 = vmatprep.subr.bf16.mxu0 0
        %2496 = vmatpush1.bf16.xpose.msra.mxu0 0
        %2497 = vmatprep.subr.bf16.mxu0 0
        %2498 = vmatpush1.bf16.xpose.msra.mxu0 0
        %2499 = vmatprep.subr.bf16.mxu0 0
        %2500 = vmatpush1.bf16.xpose.msra.mxu0 0
        %2501 = vmatprep.subr.bf16.mxu0 0
        %2502 = vmatpush1.bf16.xpose.msra.mxu0 0
        %2503 = vmatprep.subr.bf16.mxu0 0
        %2504 = vmatpush1.bf16.xpose.msra.mxu0 0
        %2505 = vmatprep.subr.bf16.mxu0 0
        %2506 = vmatpush1.bf16.xpose.msra.mxu0 0
        %2507 = vmatprep.subr.bf16.mxu0 0
        %2508 = vmatpush1.bf16.xpose.msra.mxu0 0
        %2509 = vmatprep.subr.bf16.mxu0 0
        %2510 = vmatpush1.bf16.xpose.msra.mxu0 0
        %2511 = vmatprep.subr.bf16.mxu0 0
        %2512 = vmatpush1.bf16.xpose.msra.mxu0 0
        %2513 = vmatprep.subr.bf16.mxu0 0
        %2514 = vmatpush1.bf16.xpose.msra.mxu0 0
        %2515 = vmatprep.mubr.bf16.mxu0 0
        %2516 = vmatmul.mubr.bf16.gmra.mrb[0].mxu0 %v2460
        %v2517 = vpop.f32.mrb[0].mxu0
        %v2518 = vadd.f32 0.0, %v2517
        %v2519 = vpop.f32.mrb[0].mxu0
        %v2520 = vpop.f32.mrb[0].mxu0
        %v2521 = vadd.f32 0.0, %v2520
        %v2522 = vpop.f32.mrb[0].mxu0
        %2523 = vmatprep.mubr.bf16.mxu0 0
        %2524 = vmatmul.mubr.bf16.gmra.mrb[0].mxu0 %v2463
        %v2525 = vpop.f32.mrb[0].mxu0
        %v2526 = vadd.f32 0.0, %v2525
        %v2527 = vpop.f32.mrb[0].mxu0
        %v2528 = vpop.f32.mrb[0].mxu0
        %v2529 = vadd.f32 0.0, %v2528
        %v2530 = vpop.f32.mrb[0].mxu0
        %2531 = vmatprep.mubr.bf16.mxu0 0
        %2532 = vmatmul.mubr.bf16.gmra.mrb[0].mxu0 %v2466
        %v2533 = vpop.f32.mrb[0].mxu0
        %v2534 = vadd.f32 0.0, %v2533
        %v2535 = vpop.f32.mrb[0].mxu0
        %v2536 = vpop.f32.mrb[0].mxu0
        %v2537 = vadd.f32 0.0, %v2536
        %v2538 = vpop.f32.mrb[0].mxu0
        %2539 = vmatprep.mubr.bf16.mxu0 0
        %2540 = vmatmul.mubr.bf16.gmra.mrb[0].mxu0 %v2469
        %v2541 = vpop.f32.mrb[0].mxu0
        %v2542 = vadd.f32 0.0, %v2541
        %v2543 = vpop.f32.mrb[0].mxu0
        %v2544 = vpop.f32.mrb[0].mxu0
        %v2545 = vadd.f32 0.0, %v2544
        %v2546 = vpop.f32.mrb[0].mxu0
        %2547 = vdwg.mxu0
        %v2548 = vsel %vm1685, %v2518, -inf
        %2549 = vmax.xlane.f32.xlu0 %v2548
        %v2550 = vpop.xlane.xlu0 %2549
        %v2551 = vsel %vm1685, %v2521, -inf
        %2552 = vmax.xlane.f32.xlu0 %v2551
        %v2553 = vpop.xlane.xlu0 %2552
        %v2554 = vsel %vm1685, %v2526, -inf
        %2555 = vmax.xlane.f32.xlu0 %v2554
        %v2556 = vpop.xlane.xlu0 %2555
        %v2557 = vsel %vm1685, %v2529, -inf
        %2558 = vmax.xlane.f32.xlu0 %v2557
        %v2559 = vpop.xlane.xlu0 %2558
        %v2560 = vsel %vm1685, %v2534, -inf
        %2561 = vmax.xlane.f32.xlu0 %v2560
        %v2562 = vpop.xlane.xlu0 %2561
        %v2563 = vsel %vm1685, %v2537, -inf
        %2564 = vmax.xlane.f32.xlu0 %v2563
        %v2565 = vpop.xlane.xlu0 %2564
        %v2566 = vsel %vm1685, %v2542, -inf
        %2567 = vmax.xlane.f32.xlu0 %v2566
        %v2568 = vpop.xlane.xlu0 %2567
        %v2569 = vsel %vm1685, %v2545, -inf
        %2570 = vmax.xlane.f32.xlu0 %v2569
        %v2571 = vpop.xlane.xlu0 %2570
        %v2572 = vsub.f32 %v2518, %v2550
        %v2573 = vsub.f32 %v2521, %v2553
        %v2574 = vsub.f32 %v2526, %v2556
        %v2575 = vsub.f32 %v2529, %v2559
        %v2576 = vsub.f32 %v2534, %v2562
        %v2577 = vsub.f32 %v2537, %v2565
        %v2578 = vsub.f32 %v2542, %v2568
        %v2579 = vsub.f32 %v2545, %v2571
        %v2580 = vmul.f32 %v2572, 1.442695
        %v2581 = vpow.pop %v2580
        %v2582 = vmul.f32 %v2573, 1.442695
        %v2583 = vpow.pop %v2582
        %v2584 = vmul.f32 %v2574, 1.442695
        %v2585 = vpow.pop %v2584
        %v2586 = vmul.f32 %v2575, 1.442695
        %v2587 = vpow.pop %v2586
        %v2588 = vmul.f32 %v2576, 1.442695
        %v2589 = vpow.pop %v2588
        %v2590 = vmul.f32 %v2577, 1.442695
        %v2591 = vpow.pop %v2590
        %v2592 = vmul.f32 %v2578, 1.442695
        %v2593 = vpow.pop %v2592
        %v2594 = vmul.f32 %v2579, 1.442695
        %v2595 = vpow.pop %v2594
        %v2596 = vsel %vm1685, %v2581, 0.0
        %2597 = vadd.xlane.f32.xlu0 %v2596
        %v2598 = vpop.xlane.xlu0 %2597
        %v2599 = vsel %vm1685, %v2583, 0.0
        %2600 = vadd.xlane.f32.xlu0 %v2599
        %v2601 = vpop.xlane.xlu0 %2600
        %v2602 = vsel %vm1685, %v2585, 0.0
        %2603 = vadd.xlane.f32.xlu0 %v2602
        %v2604 = vpop.xlane.xlu0 %2603
        %v2605 = vsel %vm1685, %v2587, 0.0
        %2606 = vadd.xlane.f32.xlu0 %v2605
        %v2607 = vpop.xlane.xlu0 %2606
        %v2608 = vsel %vm1685, %v2589, 0.0
        %2609 = vadd.xlane.f32.xlu0 %v2608
        %v2610 = vpop.xlane.xlu0 %2609
        %v2611 = vsel %vm1685, %v2591, 0.0
        %2612 = vadd.xlane.f32.xlu0 %v2611
        %v2613 = vpop.xlane.xlu0 %2612
        %v2614 = vsel %vm1685, %v2593, 0.0
        %2615 = vadd.xlane.f32.xlu0 %v2614
        %v2616 = vpop.xlane.xlu0 %2615
        %v2617 = vsel %vm1685, %v2595, 0.0
        %2618 = vadd.xlane.f32.xlu0 %v2617
        %v2619 = vpop.xlane.xlu0 %2618
        %v2620 = vrcp.pop %v2598
        %v2621 = vrcp.pop %v2601
        %v2622 = vrcp.pop %v2604
        %v2623 = vrcp.pop %v2607
        %v2624 = vrcp.pop %v2610
        %v2625 = vrcp.pop %v2613
        %v2626 = vrcp.pop %v2616
        %v2627 = vrcp.pop %v2619
        %v2628 = vmul.f32 %v2581, %v2620
        %v2629 = vmul.f32 %v2583, %v2621
        %v2630 = vmul.f32 %v2585, %v2622
        %v2631 = vmul.f32 %v2587, %v2623
        %v2632 = vmul.f32 %v2589, %v2624
        %v2633 = vmul.f32 %v2591, %v2625
        %v2634 = vmul.f32 %v2593, %v2626
        %v2635 = vmul.f32 %v2595, %v2627
        %v2636 = vpack.c.bf16 %v2629, %v2628
        %v2637 = vpack.c.bf16 %v2631, %v2630
        %v2638 = vpack.c.bf16 %v2633, %v2632
        %v2639 = vpack.c.bf16 %v2635, %v2634
        %2640 = vrot.lane.b32.xlu0 %v1579, 40
        %v2641 = vpop.permute.xlu0 %2640
        %2642 = vrot.lane.b32.xlu0 %v1580, 40
        %v2643 = vpop.permute.xlu0 %2642
        %2644 = vrot.lane.b32.xlu0 %v1581, 40
        %v2645 = vpop.permute.xlu0 %2644
        %2646 = vrot.lane.b32.xlu0 %v1582, 40
        %v2647 = vpop.permute.xlu0 %2646
        %v2653 = vsel %vm1685, %v2636, 0
        %v2656 = vsel %vm1685, %v2637, 0
        %v2659 = vsel %vm1685, %v2638, 0
        %v2662 = vsel %vm1685, %v2639, 0
        %2664 = vmatprep.subr.bf16.mxu0 0
        %2665 = vmatpush1.bf16.msra.mxu0 %v2641
        %2666 = vmatprep.subr.bf16.mxu0 0
        %2667 = vmatpush1.bf16.msra.mxu0 %v2643
        %2668 = vmatprep.subr.bf16.mxu0 0
        %2669 = vmatpush1.bf16.msra.mxu0 %v2645
        %2670 = vmatprep.subr.bf16.mxu0 0
        %2671 = vmatpush1.bf16.msra.mxu0 %v2647
        %2672 = vmatprep.subr.bf16.mxu0 0
        %2673 = vmatpush1.bf16.msra.mxu0 0
        %2674 = vmatprep.subr.bf16.mxu0 0
        %2675 = vmatpush1.bf16.msra.mxu0 0
        %2676 = vmatprep.subr.bf16.mxu0 0
        %2677 = vmatpush1.bf16.msra.mxu0 0
        %2678 = vmatprep.subr.bf16.mxu0 0
        %2679 = vmatpush1.bf16.msra.mxu0 0
        %2680 = vmatprep.subr.bf16.mxu0 0
        %2681 = vmatpush1.bf16.msra.mxu0 0
        %2682 = vmatprep.subr.bf16.mxu0 0
        %2683 = vmatpush1.bf16.msra.mxu0 0
        %2684 = vmatprep.subr.bf16.mxu0 0
        %2685 = vmatpush1.bf16.msra.mxu0 0
        %2686 = vmatprep.subr.bf16.mxu0 0
        %2687 = vmatpush1.bf16.msra.mxu0 0
        %2688 = vmatprep.subr.bf16.mxu0 0
        %2689 = vmatpush1.bf16.msra.mxu0 0
        %2690 = vmatprep.subr.bf16.mxu0 0
        %2691 = vmatpush1.bf16.msra.mxu0 0
        %2692 = vmatprep.subr.bf16.mxu0 0
        %2693 = vmatpush1.bf16.msra.mxu0 0
        %2694 = vmatprep.subr.bf16.mxu0 0
        %2695 = vmatpush1.bf16.msra.mxu0 0
        %2696 = vmatprep.mubr.bf16.mxu0 0
        %2697 = vmatmul.mubr.bf16.gmra.mrb[0].mxu0 %v2653
        %v2698 = vpop.f32.mrb[0].mxu0
        %v2699 = vadd.f32 0.0, %v2698
        %v2700 = vpop.f32.mrb[0].mxu0
        %v2701 = vpop.f32.mrb[0].mxu0
        %v2702 = vadd.f32 0.0, %v2701
        %v2703 = vpop.f32.mrb[0].mxu0
        %2704 = vmatprep.mubr.bf16.mxu0 0
        %2705 = vmatmul.mubr.bf16.gmra.mrb[0].mxu0 %v2656
        %v2706 = vpop.f32.mrb[0].mxu0
        %v2707 = vadd.f32 0.0, %v2706
        %v2708 = vpop.f32.mrb[0].mxu0
        %v2709 = vpop.f32.mrb[0].mxu0
        %v2710 = vadd.f32 0.0, %v2709
        %v2711 = vpop.f32.mrb[0].mxu0
        %2712 = vmatprep.mubr.bf16.mxu0 0
        %2713 = vmatmul.mubr.bf16.gmra.mrb[0].mxu0 %v2659
        %v2714 = vpop.f32.mrb[0].mxu0
        %v2715 = vadd.f32 0.0, %v2714
        %v2716 = vpop.f32.mrb[0].mxu0
        %v2717 = vpop.f32.mrb[0].mxu0
        %v2718 = vadd.f32 0.0, %v2717
        %v2719 = vpop.f32.mrb[0].mxu0
        %2720 = vmatprep.mubr.bf16.mxu0 0
        %2721 = vmatmul.mubr.bf16.gmra.mrb[0].mxu0 %v2662
        %v2722 = vpop.f32.mrb[0].mxu0
        %v2723 = vadd.f32 0.0, %v2722
        %v2724 = vpop.f32.mrb[0].mxu0
        %v2725 = vpop.f32.mrb[0].mxu0
        %v2726 = vadd.f32 0.0, %v2725
        %v2727 = vpop.f32.mrb[0].mxu0
        %2728 = vdwg.mxu0
        %2737 = vrot.lane.b32.xlu0 %v2127, 8
        %v2738 = vpop.permute.xlu0 %2737
        %2739 = vrot.lane.b32.xlu0 %v2130, 8
        %v2740 = vpop.permute.xlu0 %2739
        %2741 = vrot.lane.b32.xlu0 %v2135, 8
        %v2742 = vpop.permute.xlu0 %2741
        %2743 = vrot.lane.b32.xlu0 %v2138, 8
        %v2744 = vpop.permute.xlu0 %2743
        %2745 = vrot.lane.b32.xlu0 %v2143, 8
        %v2746 = vpop.permute.xlu0 %2745
        %2747 = vrot.lane.b32.xlu0 %v2146, 8
        %v2748 = vpop.permute.xlu0 %2747
        %2749 = vrot.lane.b32.xlu0 %v2151, 8
        %v2750 = vpop.permute.xlu0 %2749
        %2751 = vrot.lane.b32.xlu0 %v2154, 8
        %v2752 = vpop.permute.xlu0 %2751
        %2769 = vrot.lane.b32.xlu0 %v2413, 16
        %v2770 = vpop.permute.xlu0 %2769
        %2771 = vrot.lane.b32.xlu0 %v2416, 16
        %v2772 = vpop.permute.xlu0 %2771
        %2773 = vrot.lane.b32.xlu0 %v2421, 16
        %v2774 = vpop.permute.xlu0 %2773
        %2775 = vrot.lane.b32.xlu0 %v2424, 16
        %v2776 = vpop.permute.xlu0 %2775
        %2777 = vrot.lane.b32.xlu0 %v2429, 16
        %v2778 = vpop.permute.xlu0 %2777
        %2779 = vrot.lane.b32.xlu0 %v2432, 16
        %v2780 = vpop.permute.xlu0 %2779
        %2781 = vrot.lane.b32.xlu0 %v2437, 16
        %v2782 = vpop.permute.xlu0 %2781
        %2783 = vrot.lane.b32.xlu0 %v2440, 16
        %v2784 = vpop.permute.xlu0 %2783
        %2801 = vrot.lane.b32.xlu0 %v2699, 24
        %v2802 = vpop.permute.xlu0 %2801
        %2803 = vrot.lane.b32.xlu0 %v2702, 24
        %v2804 = vpop.permute.xlu0 %2803
        %2805 = vrot.lane.b32.xlu0 %v2707, 24
        %v2806 = vpop.permute.xlu0 %2805
        %2807 = vrot.lane.b32.xlu0 %v2710, 24
        %v2808 = vpop.permute.xlu0 %2807
        %2809 = vrot.lane.b32.xlu0 %v2715, 24
        %v2810 = vpop.permute.xlu0 %2809
        %2811 = vrot.lane.b32.xlu0 %v2718, 24
        %v2812 = vpop.permute.xlu0 %2811
        %2813 = vrot.lane.b32.xlu0 %v2723, 24
        %v2814 = vpop.permute.xlu0 %2813
        %2815 = vrot.lane.b32.xlu0 %v2726, 24
        %v2816 = vpop.permute.xlu0 %2815
        %v2825 = vsel %vm1595, %v1837, %v2738
        %v2826 = vsel %vm1595, %v1840, %v2740
        %v2827 = vsel %vm1595, %v1845, %v2742
        %v2828 = vsel %vm1595, %v1848, %v2744
        %v2829 = vsel %vm1595, %v1853, %v2746
        %v2830 = vsel %vm1595, %v1856, %v2748
        %v2831 = vsel %vm1595, %v1861, %v2750
        %v2832 = vsel %vm1595, %v1864, %v2752
        %vm2833 = vcmask 130048
        %v2834 = vsel %vm2833, %v2825, %v2770
        %v2835 = vsel %vm2833, %v2826, %v2772
        %v2836 = vsel %vm2833, %v2827, %v2774
        %v2837 = vsel %vm2833, %v2828, %v2776
        %v2838 = vsel %vm2833, %v2829, %v2778
        %v2839 = vsel %vm2833, %v2830, %v2780
        %v2840 = vsel %vm2833, %v2831, %v2782
        %v2841 = vsel %vm2833, %v2832, %v2784
        %vm2842 = vcmask 195584
        %v2843 = vsel %vm2842, %v2834, %v2802
        %v2844 = vsel %vm2842, %v2835, %v2804
        %v2845 = vsel %vm2842, %v2836, %v2806
        %v2846 = vsel %vm2842, %v2837, %v2808
        %v2847 = vsel %vm2842, %v2838, %v2810
        %v2848 = vsel %vm2842, %v2839, %v2812
        %v2849 = vsel %vm2842, %v2840, %v2814
        %v2850 = vsel %vm2842, %v2841, %v2816
        %v2851 = vmul.f32 %v1537, 0.35355338
        %v2852 = vmul.f32 %v1540, 0.35355338
        %v2853 = vmul.f32 %v1545, 0.35355338
        %v2854 = vmul.f32 %v1548, 0.35355338
        %v2855 = vmul.f32 %v1553, 0.35355338
        %v2856 = vmul.f32 %v1556, 0.35355338
        %v2857 = vmul.f32 %v1561, 0.35355338
        %v2858 = vmul.f32 %v1564, 0.35355338
        %v2859 = vpack.c.bf16 %v2852, %v2851
        %v2860 = vpack.c.bf16 %v2854, %v2853
        %v2861 = vpack.c.bf16 %v2856, %v2855
        %v2862 = vpack.c.bf16 %v2858, %v2857
        %v2863 = vpack.c.bf16 %v1540, %v1537
        %v2864 = vpack.c.bf16 %v1548, %v1545
        %v2865 = vpack.c.bf16 %v1556, %v1553
        %v2866 = vpack.c.bf16 %v1564, %v1561
        %2871 = vrot.lane.b32.xlu0 %v2863, 96
        %v2872 = vpop.permute.xlu0 %2871
        %2873 = vrot.lane.b32.xlu0 %v2864, 96
        %v2874 = vpop.permute.xlu0 %2873
        %2875 = vrot.lane.b32.xlu0 %v2865, 96
        %v2876 = vpop.permute.xlu0 %2875
        %2877 = vrot.lane.b32.xlu0 %v2866, 96
        %v2878 = vpop.permute.xlu0 %2877
        %v2880 = vsel %vm1595, %v2859, 0
        %v2883 = vsel %vm1595, %v2860, 0
        %v2886 = vsel %vm1595, %v2861, 0
        %v2889 = vsel %vm1595, %v2862, 0
        %v2892 = vsel %vm1595, %v2872, 0
        %v2895 = vsel %vm1595, %v2874, 0
        %v2898 = vsel %vm1595, %v2876, 0
        %v2901 = vsel %vm1595, %v2878, 0
        %2903 = vmatprep.subr.bf16.mxu0 0
        %2904 = vmatpush1.bf16.xpose.msra.mxu0 %v2892
        %2905 = vmatprep.subr.bf16.mxu0 0
        %2906 = vmatpush1.bf16.xpose.msra.mxu0 %v2895
        %2907 = vmatprep.subr.bf16.mxu0 0
        %2908 = vmatpush1.bf16.xpose.msra.mxu0 %v2898
        %2909 = vmatprep.subr.bf16.mxu0 0
        %2910 = vmatpush1.bf16.xpose.msra.mxu0 %v2901
        %2911 = vmatprep.subr.bf16.mxu0 0
        %2912 = vmatpush1.bf16.xpose.msra.mxu0 0
        %2913 = vmatprep.subr.bf16.mxu0 0
        %2914 = vmatpush1.bf16.xpose.msra.mxu0 0
        %2915 = vmatprep.subr.bf16.mxu0 0
        %2916 = vmatpush1.bf16.xpose.msra.mxu0 0
        %2917 = vmatprep.subr.bf16.mxu0 0
        %2918 = vmatpush1.bf16.xpose.msra.mxu0 0
        %2919 = vmatprep.subr.bf16.mxu0 0
        %2920 = vmatpush1.bf16.xpose.msra.mxu0 0
        %2921 = vmatprep.subr.bf16.mxu0 0
        %2922 = vmatpush1.bf16.xpose.msra.mxu0 0
        %2923 = vmatprep.subr.bf16.mxu0 0
        %2924 = vmatpush1.bf16.xpose.msra.mxu0 0
        %2925 = vmatprep.subr.bf16.mxu0 0
        %2926 = vmatpush1.bf16.xpose.msra.mxu0 0
        %2927 = vmatprep.subr.bf16.mxu0 0
        %2928 = vmatpush1.bf16.xpose.msra.mxu0 0
        %2929 = vmatprep.subr.bf16.mxu0 0
        %2930 = vmatpush1.bf16.xpose.msra.mxu0 0
        %2931 = vmatprep.subr.bf16.mxu0 0
        %2932 = vmatpush1.bf16.xpose.msra.mxu0 0
        %2933 = vmatprep.subr.bf16.mxu0 0
        %2934 = vmatpush1.bf16.xpose.msra.mxu0 0
        %2935 = vmatprep.mubr.bf16.mxu0 0
        %2936 = vmatmul.mubr.bf16.gmra.mrb[0].mxu0 %v2880
        %v2937 = vpop.f32.mrb[0].mxu0
        %v2938 = vadd.f32 0.0, %v2937
        %v2939 = vpop.f32.mrb[0].mxu0
        %v2940 = vpop.f32.mrb[0].mxu0
        %v2941 = vadd.f32 0.0, %v2940
        %v2942 = vpop.f32.mrb[0].mxu0
        %2943 = vmatprep.mubr.bf16.mxu0 0
        %2944 = vmatmul.mubr.bf16.gmra.mrb[0].mxu0 %v2883
        %v2945 = vpop.f32.mrb[0].mxu0
        %v2946 = vadd.f32 0.0, %v2945
        %v2947 = vpop.f32.mrb[0].mxu0
        %v2948 = vpop.f32.mrb[0].mxu0
        %v2949 = vadd.f32 0.0, %v2948
        %v2950 = vpop.f32.mrb[0].mxu0
        %2951 = vmatprep.mubr.bf16.mxu0 0
        %2952 = vmatmul.mubr.bf16.gmra.mrb[0].mxu0 %v2886
        %v2953 = vpop.f32.mrb[0].mxu0
        %v2954 = vadd.f32 0.0, %v2953
        %v2955 = vpop.f32.mrb[0].mxu0
        %v2956 = vpop.f32.mrb[0].mxu0
        %v2957 = vadd.f32 0.0, %v2956
        %v2958 = vpop.f32.mrb[0].mxu0
        %2959 = vmatprep.mubr.bf16.mxu0 0
        %2960 = vmatmul.mubr.bf16.gmra.mrb[0].mxu0 %v2889
        %v2961 = vpop.f32.mrb[0].mxu0
        %v2962 = vadd.f32 0.0, %v2961
        %v2963 = vpop.f32.mrb[0].mxu0
        %v2964 = vpop.f32.mrb[0].mxu0
        %v2965 = vadd.f32 0.0, %v2964
        %v2966 = vpop.f32.mrb[0].mxu0
        %2967 = vdwg.mxu0
        %v2968 = vsel %vm1685, %v2938, -inf
        %2969 = vmax.xlane.f32.xlu0 %v2968
        %v2970 = vpop.xlane.xlu0 %2969
        %v2971 = vsel %vm1685, %v2941, -inf
        %2972 = vmax.xlane.f32.xlu0 %v2971
        %v2973 = vpop.xlane.xlu0 %2972
        %v2974 = vsel %vm1685, %v2946, -inf
        %2975 = vmax.xlane.f32.xlu0 %v2974
        %v2976 = vpop.xlane.xlu0 %2975
        %v2977 = vsel %vm1685, %v2949, -inf
        %2978 = vmax.xlane.f32.xlu0 %v2977
        %v2979 = vpop.xlane.xlu0 %2978
        %v2980 = vsel %vm1685, %v2954, -inf
        %2981 = vmax.xlane.f32.xlu0 %v2980
        %v2982 = vpop.xlane.xlu0 %2981
        %v2983 = vsel %vm1685, %v2957, -inf
        %2984 = vmax.xlane.f32.xlu0 %v2983
        %v2985 = vpop.xlane.xlu0 %2984
        %v2986 = vsel %vm1685, %v2962, -inf
        %2987 = vmax.xlane.f32.xlu0 %v2986
        %v2988 = vpop.xlane.xlu0 %2987
        %v2989 = vsel %vm1685, %v2965, -inf
        %2990 = vmax.xlane.f32.xlu0 %v2989
        %v2991 = vpop.xlane.xlu0 %2990
        %v2992 = vsub.f32 %v2938, %v2970
        %v2993 = vsub.f32 %v2941, %v2973
        %v2994 = vsub.f32 %v2946, %v2976
        %v2995 = vsub.f32 %v2949, %v2979
        %v2996 = vsub.f32 %v2954, %v2982
        %v2997 = vsub.f32 %v2957, %v2985
        %v2998 = vsub.f32 %v2962, %v2988
        %v2999 = vsub.f32 %v2965, %v2991
        %v3000 = vmul.f32 %v2992, 1.442695
        %v3001 = vpow.pop %v3000
        %v3002 = vmul.f32 %v2993, 1.442695
        %v3003 = vpow.pop %v3002
        %v3004 = vmul.f32 %v2994, 1.442695
        %v3005 = vpow.pop %v3004
        %v3006 = vmul.f32 %v2995, 1.442695
        %v3007 = vpow.pop %v3006
        %v3008 = vmul.f32 %v2996, 1.442695
        %v3009 = vpow.pop %v3008
        %v3010 = vmul.f32 %v2997, 1.442695
        %v3011 = vpow.pop %v3010
        %v3012 = vmul.f32 %v2998, 1.442695
        %v3013 = vpow.pop %v3012
        %v3014 = vmul.f32 %v2999, 1.442695
        %v3015 = vpow.pop %v3014
        %v3016 = vsel %vm1685, %v3001, 0.0
        %3017 = vadd.xlane.f32.xlu0 %v3016
        %v3018 = vpop.xlane.xlu0 %3017
        %v3019 = vsel %vm1685, %v3003, 0.0
        %3020 = vadd.xlane.f32.xlu0 %v3019
        %v3021 = vpop.xlane.xlu0 %3020
        %v3022 = vsel %vm1685, %v3005, 0.0
        %3023 = vadd.xlane.f32.xlu0 %v3022
        %v3024 = vpop.xlane.xlu0 %3023
        %v3025 = vsel %vm1685, %v3007, 0.0
        %3026 = vadd.xlane.f32.xlu0 %v3025
        %v3027 = vpop.xlane.xlu0 %3026
        %v3028 = vsel %vm1685, %v3009, 0.0
        %3029 = vadd.xlane.f32.xlu0 %v3028
        %v3030 = vpop.xlane.xlu0 %3029
        %v3031 = vsel %vm1685, %v3011, 0.0
        %3032 = vadd.xlane.f32.xlu0 %v3031
        %v3033 = vpop.xlane.xlu0 %3032
        %v3034 = vsel %vm1685, %v3013, 0.0
        %3035 = vadd.xlane.f32.xlu0 %v3034
        %v3036 = vpop.xlane.xlu0 %3035
        %v3037 = vsel %vm1685, %v3015, 0.0
        %3038 = vadd.xlane.f32.xlu0 %v3037
        %v3039 = vpop.xlane.xlu0 %3038
        %v3040 = vrcp.pop %v3018
        %v3041 = vrcp.pop %v3021
        %v3042 = vrcp.pop %v3024
        %v3043 = vrcp.pop %v3027
        %v3044 = vrcp.pop %v3030
        %v3045 = vrcp.pop %v3033
        %v3046 = vrcp.pop %v3036
        %v3047 = vrcp.pop %v3039
        %v3048 = vmul.f32 %v3001, %v3040
        %v3049 = vmul.f32 %v3003, %v3041
        %v3050 = vmul.f32 %v3005, %v3042
        %v3051 = vmul.f32 %v3007, %v3043
        %v3052 = vmul.f32 %v3009, %v3044
        %v3053 = vmul.f32 %v3011, %v3045
        %v3054 = vmul.f32 %v3013, %v3046
        %v3055 = vmul.f32 %v3015, %v3047
        %v3056 = vpack.c.bf16 %v3049, %v3048
        %v3057 = vpack.c.bf16 %v3051, %v3050
        %v3058 = vpack.c.bf16 %v3053, %v3052
        %v3059 = vpack.c.bf16 %v3055, %v3054
        %3060 = vrot.lane.b32.xlu0 %v2863, 64
        %v3061 = vpop.permute.xlu0 %3060
        %3062 = vrot.lane.b32.xlu0 %v2864, 64
        %v3063 = vpop.permute.xlu0 %3062
        %3064 = vrot.lane.b32.xlu0 %v2865, 64
        %v3065 = vpop.permute.xlu0 %3064
        %3066 = vrot.lane.b32.xlu0 %v2866, 64
        %v3067 = vpop.permute.xlu0 %3066
        %v3073 = vsel %vm1685, %v3056, 0
        %v3076 = vsel %vm1685, %v3057, 0
        %v3079 = vsel %vm1685, %v3058, 0
        %v3082 = vsel %vm1685, %v3059, 0
        %3084 = vmatprep.subr.bf16.mxu0 0
        %3085 = vmatpush1.bf16.msra.mxu0 %v3061
        %3086 = vmatprep.subr.bf16.mxu0 0
        %3087 = vmatpush1.bf16.msra.mxu0 %v3063
        %3088 = vmatprep.subr.bf16.mxu0 0
        %3089 = vmatpush1.bf16.msra.mxu0 %v3065
        %3090 = vmatprep.subr.bf16.mxu0 0
        %3091 = vmatpush1.bf16.msra.mxu0 %v3067
        %3092 = vmatprep.subr.bf16.mxu0 0
        %3093 = vmatpush1.bf16.msra.mxu0 0
        %3094 = vmatprep.subr.bf16.mxu0 0
        %3095 = vmatpush1.bf16.msra.mxu0 0
        %3096 = vmatprep.subr.bf16.mxu0 0
        %3097 = vmatpush1.bf16.msra.mxu0 0
        %3098 = vmatprep.subr.bf16.mxu0 0
        %3099 = vmatpush1.bf16.msra.mxu0 0
        %3100 = vmatprep.subr.bf16.mxu0 0
        %3101 = vmatpush1.bf16.msra.mxu0 0
        %3102 = vmatprep.subr.bf16.mxu0 0
        %3103 = vmatpush1.bf16.msra.mxu0 0
        %3104 = vmatprep.subr.bf16.mxu0 0
        %3105 = vmatpush1.bf16.msra.mxu0 0
        %3106 = vmatprep.subr.bf16.mxu0 0
        %3107 = vmatpush1.bf16.msra.mxu0 0
        %3108 = vmatprep.subr.bf16.mxu0 0
        %3109 = vmatpush1.bf16.msra.mxu0 0
        %3110 = vmatprep.subr.bf16.mxu0 0
        %3111 = vmatpush1.bf16.msra.mxu0 0
        %3112 = vmatprep.subr.bf16.mxu0 0
        %3113 = vmatpush1.bf16.msra.mxu0 0
        %3114 = vmatprep.subr.bf16.mxu0 0
        %3115 = vmatpush1.bf16.msra.mxu0 0
        %3116 = vmatprep.mubr.bf16.mxu0 0
        %3117 = vmatmul.mubr.bf16.gmra.mrb[0].mxu0 %v3073
        %v3118 = vpop.f32.mrb[0].mxu0
        %v3119 = vadd.f32 0.0, %v3118
        %v3120 = vpop.f32.mrb[0].mxu0
        %v3121 = vpop.f32.mrb[0].mxu0
        %v3122 = vadd.f32 0.0, %v3121
        %v3123 = vpop.f32.mrb[0].mxu0
        %3124 = vmatprep.mubr.bf16.mxu0 0
        %3125 = vmatmul.mubr.bf16.gmra.mrb[0].mxu0 %v3076
        %v3126 = vpop.f32.mrb[0].mxu0
        %v3127 = vadd.f32 0.0, %v3126
        %v3128 = vpop.f32.mrb[0].mxu0
        %v3129 = vpop.f32.mrb[0].mxu0
        %v3130 = vadd.f32 0.0, %v3129
        %v3131 = vpop.f32.mrb[0].mxu0
        %3132 = vmatprep.mubr.bf16.mxu0 0
        %3133 = vmatmul.mubr.bf16.gmra.mrb[0].mxu0 %v3079
        %v3134 = vpop.f32.mrb[0].mxu0
        %v3135 = vadd.f32 0.0, %v3134
        %v3136 = vpop.f32.mrb[0].mxu0
        %v3137 = vpop.f32.mrb[0].mxu0
        %v3138 = vadd.f32 0.0, %v3137
        %v3139 = vpop.f32.mrb[0].mxu0
        %3140 = vmatprep.mubr.bf16.mxu0 0
        %3141 = vmatmul.mubr.bf16.gmra.mrb[0].mxu0 %v3082
        %v3142 = vpop.f32.mrb[0].mxu0
        %v3143 = vadd.f32 0.0, %v3142
        %v3144 = vpop.f32.mrb[0].mxu0
        %v3145 = vpop.f32.mrb[0].mxu0
        %v3146 = vadd.f32 0.0, %v3145
        %v3147 = vpop.f32.mrb[0].mxu0
        %3148 = vdwg.mxu0
        %3153 = vrot.lane.b32.xlu0 %v2859, 120
        %v3154 = vpop.permute.xlu0 %3153
        %3155 = vrot.lane.b32.xlu0 %v2860, 120
        %v3156 = vpop.permute.xlu0 %3155
        %3157 = vrot.lane.b32.xlu0 %v2861, 120
        %v3158 = vpop.permute.xlu0 %3157
        %3159 = vrot.lane.b32.xlu0 %v2862, 120
        %v3160 = vpop.permute.xlu0 %3159
        %3161 = vrot.lane.b32.xlu0 %v2863, 88
        %v3162 = vpop.permute.xlu0 %3161
        %3163 = vrot.lane.b32.xlu0 %v2864, 88
        %v3164 = vpop.permute.xlu0 %3163
        %3165 = vrot.lane.b32.xlu0 %v2865, 88
        %v3166 = vpop.permute.xlu0 %3165
        %3167 = vrot.lane.b32.xlu0 %v2866, 88
        %v3168 = vpop.permute.xlu0 %3167
        %v3170 = vsel %vm1595, %v3154, 0
        %v3173 = vsel %vm1595, %v3156, 0
        %v3176 = vsel %vm1595, %v3158, 0
        %v3179 = vsel %vm1595, %v3160, 0
        %v3182 = vsel %vm1595, %v3162, 0
        %v3185 = vsel %vm1595, %v3164, 0
        %v3188 = vsel %vm1595, %v3166, 0
        %v3191 = vsel %vm1595, %v3168, 0
        %3193 = vmatprep.subr.bf16.mxu0 0
        %3194 = vmatpush1.bf16.xpose.msra.mxu0 %v3182
        %3195 = vmatprep.subr.bf16.mxu0 0
        %3196 = vmatpush1.bf16.xpose.msra.mxu0 %v3185
        %3197 = vmatprep.subr.bf16.mxu0 0
        %3198 = vmatpush1.bf16.xpose.msra.mxu0 %v3188
        %3199 = vmatprep.subr.bf16.mxu0 0
        %3200 = vmatpush1.bf16.xpose.msra.mxu0 %v3191
        %3201 = vmatprep.subr.bf16.mxu0 0
        %3202 = vmatpush1.bf16.xpose.msra.mxu0 0
        %3203 = vmatprep.subr.bf16.mxu0 0
        %3204 = vmatpush1.bf16.xpose.msra.mxu0 0
        %3205 = vmatprep.subr.bf16.mxu0 0
        %3206 = vmatpush1.bf16.xpose.msra.mxu0 0
        %3207 = vmatprep.subr.bf16.mxu0 0
        %3208 = vmatpush1.bf16.xpose.msra.mxu0 0
        %3209 = vmatprep.subr.bf16.mxu0 0
        %3210 = vmatpush1.bf16.xpose.msra.mxu0 0
        %3211 = vmatprep.subr.bf16.mxu0 0
        %3212 = vmatpush1.bf16.xpose.msra.mxu0 0
        %3213 = vmatprep.subr.bf16.mxu0 0
        %3214 = vmatpush1.bf16.xpose.msra.mxu0 0
        %3215 = vmatprep.subr.bf16.mxu0 0
        %3216 = vmatpush1.bf16.xpose.msra.mxu0 0
        %3217 = vmatprep.subr.bf16.mxu0 0
        %3218 = vmatpush1.bf16.xpose.msra.mxu0 0
        %3219 = vmatprep.subr.bf16.mxu0 0
        %3220 = vmatpush1.bf16.xpose.msra.mxu0 0
        %3221 = vmatprep.subr.bf16.mxu0 0
        %3222 = vmatpush1.bf16.xpose.msra.mxu0 0
        %3223 = vmatprep.subr.bf16.mxu0 0
        %3224 = vmatpush1.bf16.xpose.msra.mxu0 0
        %3225 = vmatprep.mubr.bf16.mxu0 0
        %3226 = vmatmul.mubr.bf16.gmra.mrb[0].mxu0 %v3170
        %v3227 = vpop.f32.mrb[0].mxu0
        %v3228 = vadd.f32 0.0, %v3227
        %v3229 = vpop.f32.mrb[0].mxu0
        %v3230 = vpop.f32.mrb[0].mxu0
        %v3231 = vadd.f32 0.0, %v3230
        %v3232 = vpop.f32.mrb[0].mxu0
        %3233 = vmatprep.mubr.bf16.mxu0 0
        %3234 = vmatmul.mubr.bf16.gmra.mrb[0].mxu0 %v3173
        %v3235 = vpop.f32.mrb[0].mxu0
        %v3236 = vadd.f32 0.0, %v3235
        %v3237 = vpop.f32.mrb[0].mxu0
        %v3238 = vpop.f32.mrb[0].mxu0
        %v3239 = vadd.f32 0.0, %v3238
        %v3240 = vpop.f32.mrb[0].mxu0
        %3241 = vmatprep.mubr.bf16.mxu0 0
        %3242 = vmatmul.mubr.bf16.gmra.mrb[0].mxu0 %v3176
        %v3243 = vpop.f32.mrb[0].mxu0
        %v3244 = vadd.f32 0.0, %v3243
        %v3245 = vpop.f32.mrb[0].mxu0
        %v3246 = vpop.f32.mrb[0].mxu0
        %v3247 = vadd.f32 0.0, %v3246
        %v3248 = vpop.f32.mrb[0].mxu0
        %3249 = vmatprep.mubr.bf16.mxu0 0
        %3250 = vmatmul.mubr.bf16.gmra.mrb[0].mxu0 %v3179
        %v3251 = vpop.f32.mrb[0].mxu0
        %v3252 = vadd.f32 0.0, %v3251
        %v3253 = vpop.f32.mrb[0].mxu0
        %v3254 = vpop.f32.mrb[0].mxu0
        %v3255 = vadd.f32 0.0, %v3254
        %v3256 = vpop.f32.mrb[0].mxu0
        %3257 = vdwg.mxu0
        %v3258 = vsel %vm1685, %v3228, -inf
        %3259 = vmax.xlane.f32.xlu0 %v3258
        %v3260 = vpop.xlane.xlu0 %3259
        %v3261 = vsel %vm1685, %v3231, -inf
        %3262 = vmax.xlane.f32.xlu0 %v3261
        %v3263 = vpop.xlane.xlu0 %3262
        %v3264 = vsel %vm1685, %v3236, -inf
        %3265 = vmax.xlane.f32.xlu0 %v3264
        %v3266 = vpop.xlane.xlu0 %3265
        %v3267 = vsel %vm1685, %v3239, -inf
        %3268 = vmax.xlane.f32.xlu0 %v3267
        %v3269 = vpop.xlane.xlu0 %3268
        %v3270 = vsel %vm1685, %v3244, -inf
        %3271 = vmax.xlane.f32.xlu0 %v3270
        %v3272 = vpop.xlane.xlu0 %3271
        %v3273 = vsel %vm1685, %v3247, -inf
        %3274 = vmax.xlane.f32.xlu0 %v3273
        %v3275 = vpop.xlane.xlu0 %3274
        %v3276 = vsel %vm1685, %v3252, -inf
        %3277 = vmax.xlane.f32.xlu0 %v3276
        %v3278 = vpop.xlane.xlu0 %3277
        %v3279 = vsel %vm1685, %v3255, -inf
        %3280 = vmax.xlane.f32.xlu0 %v3279
        %v3281 = vpop.xlane.xlu0 %3280
        %v3282 = vsub.f32 %v3228, %v3260
        %v3283 = vsub.f32 %v3231, %v3263
        %v3284 = vsub.f32 %v3236, %v3266
        %v3285 = vsub.f32 %v3239, %v3269
        %v3286 = vsub.f32 %v3244, %v3272
        %v3287 = vsub.f32 %v3247, %v3275
        %v3288 = vsub.f32 %v3252, %v3278
        %v3289 = vsub.f32 %v3255, %v3281
        %v3290 = vmul.f32 %v3282, 1.442695
        %v3291 = vpow.pop %v3290
        %v3292 = vmul.f32 %v3283, 1.442695
        %v3293 = vpow.pop %v3292
        %v3294 = vmul.f32 %v3284, 1.442695
        %v3295 = vpow.pop %v3294
        %v3296 = vmul.f32 %v3285, 1.442695
        %v3297 = vpow.pop %v3296
        %v3298 = vmul.f32 %v3286, 1.442695
        %v3299 = vpow.pop %v3298
        %v3300 = vmul.f32 %v3287, 1.442695
        %v3301 = vpow.pop %v3300
        %v3302 = vmul.f32 %v3288, 1.442695
        %v3303 = vpow.pop %v3302
        %v3304 = vmul.f32 %v3289, 1.442695
        %v3305 = vpow.pop %v3304
        %v3306 = vsel %vm1685, %v3291, 0.0
        %3307 = vadd.xlane.f32.xlu0 %v3306
        %v3308 = vpop.xlane.xlu0 %3307
        %v3309 = vsel %vm1685, %v3293, 0.0
        %3310 = vadd.xlane.f32.xlu0 %v3309
        %v3311 = vpop.xlane.xlu0 %3310
        %v3312 = vsel %vm1685, %v3295, 0.0
        %3313 = vadd.xlane.f32.xlu0 %v3312
        %v3314 = vpop.xlane.xlu0 %3313
        %v3315 = vsel %vm1685, %v3297, 0.0
        %3316 = vadd.xlane.f32.xlu0 %v3315
        %v3317 = vpop.xlane.xlu0 %3316
        %v3318 = vsel %vm1685, %v3299, 0.0
        %3319 = vadd.xlane.f32.xlu0 %v3318
        %v3320 = vpop.xlane.xlu0 %3319
        %v3321 = vsel %vm1685, %v3301, 0.0
        %3322 = vadd.xlane.f32.xlu0 %v3321
        %v3323 = vpop.xlane.xlu0 %3322
        %v3324 = vsel %vm1685, %v3303, 0.0
        %3325 = vadd.xlane.f32.xlu0 %v3324
        %v3326 = vpop.xlane.xlu0 %3325
        %v3327 = vsel %vm1685, %v3305, 0.0
        %3328 = vadd.xlane.f32.xlu0 %v3327
        %v3329 = vpop.xlane.xlu0 %3328
        %v3330 = vrcp.pop %v3308
        %v3331 = vrcp.pop %v3311
        %v3332 = vrcp.pop %v3314
        %v3333 = vrcp.pop %v3317
        %v3334 = vrcp.pop %v3320
        %v3335 = vrcp.pop %v3323
        %v3336 = vrcp.pop %v3326
        %v3337 = vrcp.pop %v3329
        %v3338 = vmul.f32 %v3291, %v3330
        %v3339 = vmul.f32 %v3293, %v3331
        %v3340 = vmul.f32 %v3295, %v3332
        %v3341 = vmul.f32 %v3297, %v3333
        %v3342 = vmul.f32 %v3299, %v3334
        %v3343 = vmul.f32 %v3301, %v3335
        %v3344 = vmul.f32 %v3303, %v3336
        %v3345 = vmul.f32 %v3305, %v3337
        %v3346 = vpack.c.bf16 %v3339, %v3338
        %v3347 = vpack.c.bf16 %v3341, %v3340
        %v3348 = vpack.c.bf16 %v3343, %v3342
        %v3349 = vpack.c.bf16 %v3345, %v3344
        %3350 = vrot.lane.b32.xlu0 %v2863, 56
        %v3351 = vpop.permute.xlu0 %3350
        %3352 = vrot.lane.b32.xlu0 %v2864, 56
        %v3353 = vpop.permute.xlu0 %3352
        %3354 = vrot.lane.b32.xlu0 %v2865, 56
        %v3355 = vpop.permute.xlu0 %3354
        %3356 = vrot.lane.b32.xlu0 %v2866, 56
        %v3357 = vpop.permute.xlu0 %3356
        %v3363 = vsel %vm1685, %v3346, 0
        %v3366 = vsel %vm1685, %v3347, 0
        %v3369 = vsel %vm1685, %v3348, 0
        %v3372 = vsel %vm1685, %v3349, 0
        %3374 = vmatprep.subr.bf16.mxu0 0
        %3375 = vmatpush1.bf16.msra.mxu0 %v3351
        %3376 = vmatprep.subr.bf16.mxu0 0
        %3377 = vmatpush1.bf16.msra.mxu0 %v3353
        %3378 = vmatprep.subr.bf16.mxu0 0
        %3379 = vmatpush1.bf16.msra.mxu0 %v3355
        %3380 = vmatprep.subr.bf16.mxu0 0
        %3381 = vmatpush1.bf16.msra.mxu0 %v3357
        %3382 = vmatprep.subr.bf16.mxu0 0
        %3383 = vmatpush1.bf16.msra.mxu0 0
        %3384 = vmatprep.subr.bf16.mxu0 0
        %3385 = vmatpush1.bf16.msra.mxu0 0
        %3386 = vmatprep.subr.bf16.mxu0 0
        %3387 = vmatpush1.bf16.msra.mxu0 0
        %3388 = vmatprep.subr.bf16.mxu0 0
        %3389 = vmatpush1.bf16.msra.mxu0 0
        %3390 = vmatprep.subr.bf16.mxu0 0
        %3391 = vmatpush1.bf16.msra.mxu0 0
        %3392 = vmatprep.subr.bf16.mxu0 0
        %3393 = vmatpush1.bf16.msra.mxu0 0
        %3394 = vmatprep.subr.bf16.mxu0 0
        %3395 = vmatpush1.bf16.msra.mxu0 0
        %3396 = vmatprep.subr.bf16.mxu0 0
        %3397 = vmatpush1.bf16.msra.mxu0 0
        %3398 = vmatprep.subr.bf16.mxu0 0
        %3399 = vmatpush1.bf16.msra.mxu0 0
        %3400 = vmatprep.subr.bf16.mxu0 0
        %3401 = vmatpush1.bf16.msra.mxu0 0
        %3402 = vmatprep.subr.bf16.mxu0 0
        %3403 = vmatpush1.bf16.msra.mxu0 0
        %3404 = vmatprep.subr.bf16.mxu0 0
        %3405 = vmatpush1.bf16.msra.mxu0 0
        %3406 = vmatprep.mubr.bf16.mxu0 0
        %3407 = vmatmul.mubr.bf16.gmra.mrb[0].mxu0 %v3363
        %v3408 = vpop.f32.mrb[0].mxu0
        %v3409 = vadd.f32 0.0, %v3408
        %v3410 = vpop.f32.mrb[0].mxu0
        %v3411 = vpop.f32.mrb[0].mxu0
        %v3412 = vadd.f32 0.0, %v3411
        %v3413 = vpop.f32.mrb[0].mxu0
        %3414 = vmatprep.mubr.bf16.mxu0 0
        %3415 = vmatmul.mubr.bf16.gmra.mrb[0].mxu0 %v3366
        %v3416 = vpop.f32.mrb[0].mxu0
        %v3417 = vadd.f32 0.0, %v3416
        %v3418 = vpop.f32.mrb[0].mxu0
        %v3419 = vpop.f32.mrb[0].mxu0
        %v3420 = vadd.f32 0.0, %v3419
        %v3421 = vpop.f32.mrb[0].mxu0
        %3422 = vmatprep.mubr.bf16.mxu0 0
        %3423 = vmatmul.mubr.bf16.gmra.mrb[0].mxu0 %v3369
        %v3424 = vpop.f32.mrb[0].mxu0
        %v3425 = vadd.f32 0.0, %v3424
        %v3426 = vpop.f32.mrb[0].mxu0
        %v3427 = vpop.f32.mrb[0].mxu0
        %v3428 = vadd.f32 0.0, %v3427
        %v3429 = vpop.f32.mrb[0].mxu0
        %3430 = vmatprep.mubr.bf16.mxu0 0
        %3431 = vmatmul.mubr.bf16.gmra.mrb[0].mxu0 %v3372
        %v3432 = vpop.f32.mrb[0].mxu0
        %v3433 = vadd.f32 0.0, %v3432
        %v3434 = vpop.f32.mrb[0].mxu0
        %v3435 = vpop.f32.mrb[0].mxu0
        %v3436 = vadd.f32 0.0, %v3435
        %v3437 = vpop.f32.mrb[0].mxu0
        %3438 = vdwg.mxu0
        %3439 = vrot.lane.b32.xlu0 %v2859, 112
        %v3440 = vpop.permute.xlu0 %3439
        %3441 = vrot.lane.b32.xlu0 %v2860, 112
        %v3442 = vpop.permute.xlu0 %3441
        %3443 = vrot.lane.b32.xlu0 %v2861, 112
        %v3444 = vpop.permute.xlu0 %3443
        %3445 = vrot.lane.b32.xlu0 %v2862, 112
        %v3446 = vpop.permute.xlu0 %3445
        %3447 = vrot.lane.b32.xlu0 %v2863, 80
        %v3448 = vpop.permute.xlu0 %3447
        %3449 = vrot.lane.b32.xlu0 %v2864, 80
        %v3450 = vpop.permute.xlu0 %3449
        %3451 = vrot.lane.b32.xlu0 %v2865, 80
        %v3452 = vpop.permute.xlu0 %3451
        %3453 = vrot.lane.b32.xlu0 %v2866, 80
        %v3454 = vpop.permute.xlu0 %3453
        %v3456 = vsel %vm1595, %v3440, 0
        %v3459 = vsel %vm1595, %v3442, 0
        %v3462 = vsel %vm1595, %v3444, 0
        %v3465 = vsel %vm1595, %v3446, 0
        %v3468 = vsel %vm1595, %v3448, 0
        %v3471 = vsel %vm1595, %v3450, 0
        %v3474 = vsel %vm1595, %v3452, 0
        %v3477 = vsel %vm1595, %v3454, 0
        %3479 = vmatprep.subr.bf16.mxu0 0
        %3480 = vmatpush1.bf16.xpose.msra.mxu0 %v3468
        %3481 = vmatprep.subr.bf16.mxu0 0
        %3482 = vmatpush1.bf16.xpose.msra.mxu0 %v3471
        %3483 = vmatprep.subr.bf16.mxu0 0
        %3484 = vmatpush1.bf16.xpose.msra.mxu0 %v3474
        %3485 = vmatprep.subr.bf16.mxu0 0
        %3486 = vmatpush1.bf16.xpose.msra.mxu0 %v3477
        %3487 = vmatprep.subr.bf16.mxu0 0
        %3488 = vmatpush1.bf16.xpose.msra.mxu0 0
        %3489 = vmatprep.subr.bf16.mxu0 0
        %3490 = vmatpush1.bf16.xpose.msra.mxu0 0
        %3491 = vmatprep.subr.bf16.mxu0 0
        %3492 = vmatpush1.bf16.xpose.msra.mxu0 0
        %3493 = vmatprep.subr.bf16.mxu0 0
        %3494 = vmatpush1.bf16.xpose.msra.mxu0 0
        %3495 = vmatprep.subr.bf16.mxu0 0
        %3496 = vmatpush1.bf16.xpose.msra.mxu0 0
        %3497 = vmatprep.subr.bf16.mxu0 0
        %3498 = vmatpush1.bf16.xpose.msra.mxu0 0
        %3499 = vmatprep.subr.bf16.mxu0 0
        %3500 = vmatpush1.bf16.xpose.msra.mxu0 0
        %3501 = vmatprep.subr.bf16.mxu0 0
        %3502 = vmatpush1.bf16.xpose.msra.mxu0 0
        %3503 = vmatprep.subr.bf16.mxu0 0
        %3504 = vmatpush1.bf16.xpose.msra.mxu0 0
        %3505 = vmatprep.subr.bf16.mxu0 0
        %3506 = vmatpush1.bf16.xpose.msra.mxu0 0
        %3507 = vmatprep.subr.bf16.mxu0 0
        %3508 = vmatpush1.bf16.xpose.msra.mxu0 0
        %3509 = vmatprep.subr.bf16.mxu0 0
        %3510 = vmatpush1.bf16.xpose.msra.mxu0 0
        %3511 = vmatprep.mubr.bf16.mxu0 0
        %3512 = vmatmul.mubr.bf16.gmra.mrb[0].mxu0 %v3456
        %v3513 = vpop.f32.mrb[0].mxu0
        %v3514 = vadd.f32 0.0, %v3513
        %v3515 = vpop.f32.mrb[0].mxu0
        %v3516 = vpop.f32.mrb[0].mxu0
        %v3517 = vadd.f32 0.0, %v3516
        %v3518 = vpop.f32.mrb[0].mxu0
        %3519 = vmatprep.mubr.bf16.mxu0 0
        %3520 = vmatmul.mubr.bf16.gmra.mrb[0].mxu0 %v3459
        %v3521 = vpop.f32.mrb[0].mxu0
        %v3522 = vadd.f32 0.0, %v3521
        %v3523 = vpop.f32.mrb[0].mxu0
        %v3524 = vpop.f32.mrb[0].mxu0
        %v3525 = vadd.f32 0.0, %v3524
        %v3526 = vpop.f32.mrb[0].mxu0
        %3527 = vmatprep.mubr.bf16.mxu0 0
        %3528 = vmatmul.mubr.bf16.gmra.mrb[0].mxu0 %v3462
        %v3529 = vpop.f32.mrb[0].mxu0
        %v3530 = vadd.f32 0.0, %v3529
        %v3531 = vpop.f32.mrb[0].mxu0
        %v3532 = vpop.f32.mrb[0].mxu0
        %v3533 = vadd.f32 0.0, %v3532
        %v3534 = vpop.f32.mrb[0].mxu0
        %3535 = vmatprep.mubr.bf16.mxu0 0
        %3536 = vmatmul.mubr.bf16.gmra.mrb[0].mxu0 %v3465
        %v3537 = vpop.f32.mrb[0].mxu0
        %v3538 = vadd.f32 0.0, %v3537
        %v3539 = vpop.f32.mrb[0].mxu0
        %v3540 = vpop.f32.mrb[0].mxu0
        %v3541 = vadd.f32 0.0, %v3540
        %v3542 = vpop.f32.mrb[0].mxu0
        %3543 = vdwg.mxu0
        %v3544 = vsel %vm1685, %v3514, -inf
        %3545 = vmax.xlane.f32.xlu0 %v3544
        %v3546 = vpop.xlane.xlu0 %3545
        %v3547 = vsel %vm1685, %v3517, -inf
        %3548 = vmax.xlane.f32.xlu0 %v3547
        %v3549 = vpop.xlane.xlu0 %3548
        %v3550 = vsel %vm1685, %v3522, -inf
        %3551 = vmax.xlane.f32.xlu0 %v3550
        %v3552 = vpop.xlane.xlu0 %3551
        %v3553 = vsel %vm1685, %v3525, -inf
        %3554 = vmax.xlane.f32.xlu0 %v3553
        %v3555 = vpop.xlane.xlu0 %3554
        %v3556 = vsel %vm1685, %v3530, -inf
        %3557 = vmax.xlane.f32.xlu0 %v3556
        %v3558 = vpop.xlane.xlu0 %3557
        %v3559 = vsel %vm1685, %v3533, -inf
        %3560 = vmax.xlane.f32.xlu0 %v3559
        %v3561 = vpop.xlane.xlu0 %3560
        %v3562 = vsel %vm1685, %v3538, -inf
        %3563 = vmax.xlane.f32.xlu0 %v3562
        %v3564 = vpop.xlane.xlu0 %3563
        %v3565 = vsel %vm1685, %v3541, -inf
        %3566 = vmax.xlane.f32.xlu0 %v3565
        %v3567 = vpop.xlane.xlu0 %3566
        %v3568 = vsub.f32 %v3514, %v3546
        %v3569 = vsub.f32 %v3517, %v3549
        %v3570 = vsub.f32 %v3522, %v3552
        %v3571 = vsub.f32 %v3525, %v3555
        %v3572 = vsub.f32 %v3530, %v3558
        %v3573 = vsub.f32 %v3533, %v3561
        %v3574 = vsub.f32 %v3538, %v3564
        %v3575 = vsub.f32 %v3541, %v3567
        %v3576 = vmul.f32 %v3568, 1.442695
        %v3577 = vpow.pop %v3576
        %v3578 = vmul.f32 %v3569, 1.442695
        %v3579 = vpow.pop %v3578
        %v3580 = vmul.f32 %v3570, 1.442695
        %v3581 = vpow.pop %v3580
        %v3582 = vmul.f32 %v3571, 1.442695
        %v3583 = vpow.pop %v3582
        %v3584 = vmul.f32 %v3572, 1.442695
        %v3585 = vpow.pop %v3584
        %v3586 = vmul.f32 %v3573, 1.442695
        %v3587 = vpow.pop %v3586
        %v3588 = vmul.f32 %v3574, 1.442695
        %v3589 = vpow.pop %v3588
        %v3590 = vmul.f32 %v3575, 1.442695
        %v3591 = vpow.pop %v3590
        %v3592 = vsel %vm1685, %v3577, 0.0
        %3593 = vadd.xlane.f32.xlu0 %v3592
        %v3594 = vpop.xlane.xlu0 %3593
        %v3595 = vsel %vm1685, %v3579, 0.0
        %3596 = vadd.xlane.f32.xlu0 %v3595
        %v3597 = vpop.xlane.xlu0 %3596
        %v3598 = vsel %vm1685, %v3581, 0.0
        %3599 = vadd.xlane.f32.xlu0 %v3598
        %v3600 = vpop.xlane.xlu0 %3599
        %v3601 = vsel %vm1685, %v3583, 0.0
        %3602 = vadd.xlane.f32.xlu0 %v3601
        %v3603 = vpop.xlane.xlu0 %3602
        %v3604 = vsel %vm1685, %v3585, 0.0
        %3605 = vadd.xlane.f32.xlu0 %v3604
        %v3606 = vpop.xlane.xlu0 %3605
        %v3607 = vsel %vm1685, %v3587, 0.0
        %3608 = vadd.xlane.f32.xlu0 %v3607
        %v3609 = vpop.xlane.xlu0 %3608
        %v3610 = vsel %vm1685, %v3589, 0.0
        %3611 = vadd.xlane.f32.xlu0 %v3610
        %v3612 = vpop.xlane.xlu0 %3611
        %v3613 = vsel %vm1685, %v3591, 0.0
        %3614 = vadd.xlane.f32.xlu0 %v3613
        %v3615 = vpop.xlane.xlu0 %3614
        %v3616 = vrcp.pop %v3594
        %v3617 = vrcp.pop %v3597
        %v3618 = vrcp.pop %v3600
        %v3619 = vrcp.pop %v3603
        %v3620 = vrcp.pop %v3606
        %v3621 = vrcp.pop %v3609
        %v3622 = vrcp.pop %v3612
        %v3623 = vrcp.pop %v3615
        %v3624 = vmul.f32 %v3577, %v3616
        %v3625 = vmul.f32 %v3579, %v3617
        %v3626 = vmul.f32 %v3581, %v3618
        %v3627 = vmul.f32 %v3583, %v3619
        %v3628 = vmul.f32 %v3585, %v3620
        %v3629 = vmul.f32 %v3587, %v3621
        %v3630 = vmul.f32 %v3589, %v3622
        %v3631 = vmul.f32 %v3591, %v3623
        %v3632 = vpack.c.bf16 %v3625, %v3624
        %v3633 = vpack.c.bf16 %v3627, %v3626
        %v3634 = vpack.c.bf16 %v3629, %v3628
        %v3635 = vpack.c.bf16 %v3631, %v3630
        %3636 = vrot.lane.b32.xlu0 %v2863, 48
        %v3637 = vpop.permute.xlu0 %3636
        %3638 = vrot.lane.b32.xlu0 %v2864, 48
        %v3639 = vpop.permute.xlu0 %3638
        %3640 = vrot.lane.b32.xlu0 %v2865, 48
        %v3641 = vpop.permute.xlu0 %3640
        %3642 = vrot.lane.b32.xlu0 %v2866, 48
        %v3643 = vpop.permute.xlu0 %3642
        %v3649 = vsel %vm1685, %v3632, 0
        %v3652 = vsel %vm1685, %v3633, 0
        %v3655 = vsel %vm1685, %v3634, 0
        %v3658 = vsel %vm1685, %v3635, 0
        %3660 = vmatprep.subr.bf16.mxu0 0
        %3661 = vmatpush1.bf16.msra.mxu0 %v3637
        %3662 = vmatprep.subr.bf16.mxu0 0
        %3663 = vmatpush1.bf16.msra.mxu0 %v3639
        %3664 = vmatprep.subr.bf16.mxu0 0
        %3665 = vmatpush1.bf16.msra.mxu0 %v3641
        %3666 = vmatprep.subr.bf16.mxu0 0
        %3667 = vmatpush1.bf16.msra.mxu0 %v3643
        %3668 = vmatprep.subr.bf16.mxu0 0
        %3669 = vmatpush1.bf16.msra.mxu0 0
        %3670 = vmatprep.subr.bf16.mxu0 0
        %3671 = vmatpush1.bf16.msra.mxu0 0
        %3672 = vmatprep.subr.bf16.mxu0 0
        %3673 = vmatpush1.bf16.msra.mxu0 0
        %3674 = vmatprep.subr.bf16.mxu0 0
        %3675 = vmatpush1.bf16.msra.mxu0 0
        %3676 = vmatprep.subr.bf16.mxu0 0
        %3677 = vmatpush1.bf16.msra.mxu0 0
        %3678 = vmatprep.subr.bf16.mxu0 0
        %3679 = vmatpush1.bf16.msra.mxu0 0
        %3680 = vmatprep.subr.bf16.mxu0 0
        %3681 = vmatpush1.bf16.msra.mxu0 0
        %3682 = vmatprep.subr.bf16.mxu0 0
        %3683 = vmatpush1.bf16.msra.mxu0 0
        %3684 = vmatprep.subr.bf16.mxu0 0
        %3685 = vmatpush1.bf16.msra.mxu0 0
        %3686 = vmatprep.subr.bf16.mxu0 0
        %3687 = vmatpush1.bf16.msra.mxu0 0
        %3688 = vmatprep.subr.bf16.mxu0 0
        %3689 = vmatpush1.bf16.msra.mxu0 0
        %3690 = vmatprep.subr.bf16.mxu0 0
        %3691 = vmatpush1.bf16.msra.mxu0 0
        %3692 = vmatprep.mubr.bf16.mxu0 0
        %3693 = vmatmul.mubr.bf16.gmra.mrb[0].mxu0 %v3649
        %v3694 = vpop.f32.mrb[0].mxu0
        %v3695 = vadd.f32 0.0, %v3694
        %v3696 = vpop.f32.mrb[0].mxu0
        %v3697 = vpop.f32.mrb[0].mxu0
        %v3698 = vadd.f32 0.0, %v3697
        %v3699 = vpop.f32.mrb[0].mxu0
        %3700 = vmatprep.mubr.bf16.mxu0 0
        %3701 = vmatmul.mubr.bf16.gmra.mrb[0].mxu0 %v3652
        %v3702 = vpop.f32.mrb[0].mxu0
        %v3703 = vadd.f32 0.0, %v3702
        %v3704 = vpop.f32.mrb[0].mxu0
        %v3705 = vpop.f32.mrb[0].mxu0
        %v3706 = vadd.f32 0.0, %v3705
        %v3707 = vpop.f32.mrb[0].mxu0
        %3708 = vmatprep.mubr.bf16.mxu0 0
        %3709 = vmatmul.mubr.bf16.gmra.mrb[0].mxu0 %v3655
        %v3710 = vpop.f32.mrb[0].mxu0
        %v3711 = vadd.f32 0.0, %v3710
        %v3712 = vpop.f32.mrb[0].mxu0
        %v3713 = vpop.f32.mrb[0].mxu0
        %v3714 = vadd.f32 0.0, %v3713
        %v3715 = vpop.f32.mrb[0].mxu0
        %3716 = vmatprep.mubr.bf16.mxu0 0
        %3717 = vmatmul.mubr.bf16.gmra.mrb[0].mxu0 %v3658
        %v3718 = vpop.f32.mrb[0].mxu0
        %v3719 = vadd.f32 0.0, %v3718
        %v3720 = vpop.f32.mrb[0].mxu0
        %v3721 = vpop.f32.mrb[0].mxu0
        %v3722 = vadd.f32 0.0, %v3721
        %v3723 = vpop.f32.mrb[0].mxu0
        %3724 = vdwg.mxu0
        %3725 = vrot.lane.b32.xlu0 %v2859, 104
        %v3726 = vpop.permute.xlu0 %3725
        %3727 = vrot.lane.b32.xlu0 %v2860, 104
        %v3728 = vpop.permute.xlu0 %3727
        %3729 = vrot.lane.b32.xlu0 %v2861, 104
        %v3730 = vpop.permute.xlu0 %3729
        %3731 = vrot.lane.b32.xlu0 %v2862, 104
        %v3732 = vpop.permute.xlu0 %3731
        %3733 = vrot.lane.b32.xlu0 %v2863, 72
        %v3734 = vpop.permute.xlu0 %3733
        %3735 = vrot.lane.b32.xlu0 %v2864, 72
        %v3736 = vpop.permute.xlu0 %3735
        %3737 = vrot.lane.b32.xlu0 %v2865, 72
        %v3738 = vpop.permute.xlu0 %3737
        %3739 = vrot.lane.b32.xlu0 %v2866, 72
        %v3740 = vpop.permute.xlu0 %3739
        %v3742 = vsel %vm1595, %v3726, 0
        %v3745 = vsel %vm1595, %v3728, 0
        %v3748 = vsel %vm1595, %v3730, 0
        %v3751 = vsel %vm1595, %v3732, 0
        %v3754 = vsel %vm1595, %v3734, 0
        %v3757 = vsel %vm1595, %v3736, 0
        %v3760 = vsel %vm1595, %v3738, 0
        %v3763 = vsel %vm1595, %v3740, 0
        %3765 = vmatprep.subr.bf16.mxu0 0
        %3766 = vmatpush1.bf16.xpose.msra.mxu0 %v3754
        %3767 = vmatprep.subr.bf16.mxu0 0
        %3768 = vmatpush1.bf16.xpose.msra.mxu0 %v3757
        %3769 = vmatprep.subr.bf16.mxu0 0
        %3770 = vmatpush1.bf16.xpose.msra.mxu0 %v3760
        %3771 = vmatprep.subr.bf16.mxu0 0
        %3772 = vmatpush1.bf16.xpose.msra.mxu0 %v3763
        %3773 = vmatprep.subr.bf16.mxu0 0
        %3774 = vmatpush1.bf16.xpose.msra.mxu0 0
        %3775 = vmatprep.subr.bf16.mxu0 0
        %3776 = vmatpush1.bf16.xpose.msra.mxu0 0
        %3777 = vmatprep.subr.bf16.mxu0 0
        %3778 = vmatpush1.bf16.xpose.msra.mxu0 0
        %3779 = vmatprep.subr.bf16.mxu0 0
        %3780 = vmatpush1.bf16.xpose.msra.mxu0 0
        %3781 = vmatprep.subr.bf16.mxu0 0
        %3782 = vmatpush1.bf16.xpose.msra.mxu0 0
        %3783 = vmatprep.subr.bf16.mxu0 0
        %3784 = vmatpush1.bf16.xpose.msra.mxu0 0
        %3785 = vmatprep.subr.bf16.mxu0 0
        %3786 = vmatpush1.bf16.xpose.msra.mxu0 0
        %3787 = vmatprep.subr.bf16.mxu0 0
        %3788 = vmatpush1.bf16.xpose.msra.mxu0 0
        %3789 = vmatprep.subr.bf16.mxu0 0
        %3790 = vmatpush1.bf16.xpose.msra.mxu0 0
        %3791 = vmatprep.subr.bf16.mxu0 0
        %3792 = vmatpush1.bf16.xpose.msra.mxu0 0
        %3793 = vmatprep.subr.bf16.mxu0 0
        %3794 = vmatpush1.bf16.xpose.msra.mxu0 0
        %3795 = vmatprep.subr.bf16.mxu0 0
        %3796 = vmatpush1.bf16.xpose.msra.mxu0 0
        %3797 = vmatprep.mubr.bf16.mxu0 0
        %3798 = vmatmul.mubr.bf16.gmra.mrb[0].mxu0 %v3742
        %v3799 = vpop.f32.mrb[0].mxu0
        %v3800 = vadd.f32 0.0, %v3799
        %v3801 = vpop.f32.mrb[0].mxu0
        %v3802 = vpop.f32.mrb[0].mxu0
        %v3803 = vadd.f32 0.0, %v3802
        %v3804 = vpop.f32.mrb[0].mxu0
        %3805 = vmatprep.mubr.bf16.mxu0 0
        %3806 = vmatmul.mubr.bf16.gmra.mrb[0].mxu0 %v3745
        %v3807 = vpop.f32.mrb[0].mxu0
        %v3808 = vadd.f32 0.0, %v3807
        %v3809 = vpop.f32.mrb[0].mxu0
        %v3810 = vpop.f32.mrb[0].mxu0
        %v3811 = vadd.f32 0.0, %v3810
        %v3812 = vpop.f32.mrb[0].mxu0
        %3813 = vmatprep.mubr.bf16.mxu0 0
        %3814 = vmatmul.mubr.bf16.gmra.mrb[0].mxu0 %v3748
        %v3815 = vpop.f32.mrb[0].mxu0
        %v3816 = vadd.f32 0.0, %v3815
        %v3817 = vpop.f32.mrb[0].mxu0
        %v3818 = vpop.f32.mrb[0].mxu0
        %v3819 = vadd.f32 0.0, %v3818
        %v3820 = vpop.f32.mrb[0].mxu0
        %3821 = vmatprep.mubr.bf16.mxu0 0
        %3822 = vmatmul.mubr.bf16.gmra.mrb[0].mxu0 %v3751
        %v3823 = vpop.f32.mrb[0].mxu0
        %v3824 = vadd.f32 0.0, %v3823
        %v3825 = vpop.f32.mrb[0].mxu0
        %v3826 = vpop.f32.mrb[0].mxu0
        %v3827 = vadd.f32 0.0, %v3826
        %v3828 = vpop.f32.mrb[0].mxu0
        %3829 = vdwg.mxu0
        %v3830 = vsel %vm1685, %v3800, -inf
        %3831 = vmax.xlane.f32.xlu0 %v3830
        %v3832 = vpop.xlane.xlu0 %3831
        %v3833 = vsel %vm1685, %v3803, -inf
        %3834 = vmax.xlane.f32.xlu0 %v3833
        %v3835 = vpop.xlane.xlu0 %3834
        %v3836 = vsel %vm1685, %v3808, -inf
        %3837 = vmax.xlane.f32.xlu0 %v3836
        %v3838 = vpop.xlane.xlu0 %3837
        %v3839 = vsel %vm1685, %v3811, -inf
        %3840 = vmax.xlane.f32.xlu0 %v3839
        %v3841 = vpop.xlane.xlu0 %3840
        %v3842 = vsel %vm1685, %v3816, -inf
        %3843 = vmax.xlane.f32.xlu0 %v3842
        %v3844 = vpop.xlane.xlu0 %3843
        %v3845 = vsel %vm1685, %v3819, -inf
        %3846 = vmax.xlane.f32.xlu0 %v3845
        %v3847 = vpop.xlane.xlu0 %3846
        %v3848 = vsel %vm1685, %v3824, -inf
        %3849 = vmax.xlane.f32.xlu0 %v3848
        %v3850 = vpop.xlane.xlu0 %3849
        %v3851 = vsel %vm1685, %v3827, -inf
        %3852 = vmax.xlane.f32.xlu0 %v3851
        %v3853 = vpop.xlane.xlu0 %3852
        %v3854 = vsub.f32 %v3800, %v3832
        %v3855 = vsub.f32 %v3803, %v3835
        %v3856 = vsub.f32 %v3808, %v3838
        %v3857 = vsub.f32 %v3811, %v3841
        %v3858 = vsub.f32 %v3816, %v3844
        %v3859 = vsub.f32 %v3819, %v3847
        %v3860 = vsub.f32 %v3824, %v3850
        %v3861 = vsub.f32 %v3827, %v3853
        %v3862 = vmul.f32 %v3854, 1.442695
        %v3863 = vpow.pop %v3862
        %v3864 = vmul.f32 %v3855, 1.442695
        %v3865 = vpow.pop %v3864
        %v3866 = vmul.f32 %v3856, 1.442695
        %v3867 = vpow.pop %v3866
        %v3868 = vmul.f32 %v3857, 1.442695
        %v3869 = vpow.pop %v3868
        %v3870 = vmul.f32 %v3858, 1.442695
        %v3871 = vpow.pop %v3870
        %v3872 = vmul.f32 %v3859, 1.442695
        %v3873 = vpow.pop %v3872
        %v3874 = vmul.f32 %v3860, 1.442695
        %v3875 = vpow.pop %v3874
        %v3876 = vmul.f32 %v3861, 1.442695
        %v3877 = vpow.pop %v3876
        %v3878 = vsel %vm1685, %v3863, 0.0
        %3879 = vadd.xlane.f32.xlu0 %v3878
        %v3880 = vpop.xlane.xlu0 %3879
        %v3881 = vsel %vm1685, %v3865, 0.0
        %3882 = vadd.xlane.f32.xlu0 %v3881
        %v3883 = vpop.xlane.xlu0 %3882
        %v3884 = vsel %vm1685, %v3867, 0.0
        %3885 = vadd.xlane.f32.xlu0 %v3884
        %v3886 = vpop.xlane.xlu0 %3885
        %v3887 = vsel %vm1685, %v3869, 0.0
        %3888 = vadd.xlane.f32.xlu0 %v3887
        %v3889 = vpop.xlane.xlu0 %3888
        %v3890 = vsel %vm1685, %v3871, 0.0
        %3891 = vadd.xlane.f32.xlu0 %v3890
        %v3892 = vpop.xlane.xlu0 %3891
        %v3893 = vsel %vm1685, %v3873, 0.0
        %3894 = vadd.xlane.f32.xlu0 %v3893
        %v3895 = vpop.xlane.xlu0 %3894
        %v3896 = vsel %vm1685, %v3875, 0.0
        %3897 = vadd.xlane.f32.xlu0 %v3896
        %v3898 = vpop.xlane.xlu0 %3897
        %v3899 = vsel %vm1685, %v3877, 0.0
        %3900 = vadd.xlane.f32.xlu0 %v3899
        %v3901 = vpop.xlane.xlu0 %3900
        %v3902 = vrcp.pop %v3880
        %v3903 = vrcp.pop %v3883
        %v3904 = vrcp.pop %v3886
        %v3905 = vrcp.pop %v3889
        %v3906 = vrcp.pop %v3892
        %v3907 = vrcp.pop %v3895
        %v3908 = vrcp.pop %v3898
        %v3909 = vrcp.pop %v3901
        %v3910 = vmul.f32 %v3863, %v3902
        %v3911 = vmul.f32 %v3865, %v3903
        %v3912 = vmul.f32 %v3867, %v3904
        %v3913 = vmul.f32 %v3869, %v3905
        %v3914 = vmul.f32 %v3871, %v3906
        %v3915 = vmul.f32 %v3873, %v3907
        %v3916 = vmul.f32 %v3875, %v3908
        %v3917 = vmul.f32 %v3877, %v3909
        %v3918 = vpack.c.bf16 %v3911, %v3910
        %v3919 = vpack.c.bf16 %v3913, %v3912
        %v3920 = vpack.c.bf16 %v3915, %v3914
        %v3921 = vpack.c.bf16 %v3917, %v3916
        %3922 = vrot.lane.b32.xlu0 %v2863, 40
        %v3923 = vpop.permute.xlu0 %3922
        %3924 = vrot.lane.b32.xlu0 %v2864, 40
        %v3925 = vpop.permute.xlu0 %3924
        %3926 = vrot.lane.b32.xlu0 %v2865, 40
        %v3927 = vpop.permute.xlu0 %3926
        %3928 = vrot.lane.b32.xlu0 %v2866, 40
        %v3929 = vpop.permute.xlu0 %3928
        %v3935 = vsel %vm1685, %v3918, 0
        %v3938 = vsel %vm1685, %v3919, 0
        %v3941 = vsel %vm1685, %v3920, 0
        %v3944 = vsel %vm1685, %v3921, 0
        %3946 = vmatprep.subr.bf16.mxu0 0
        %3947 = vmatpush1.bf16.msra.mxu0 %v3923
        %3948 = vmatprep.subr.bf16.mxu0 0
        %3949 = vmatpush1.bf16.msra.mxu0 %v3925
        %3950 = vmatprep.subr.bf16.mxu0 0
        %3951 = vmatpush1.bf16.msra.mxu0 %v3927
        %3952 = vmatprep.subr.bf16.mxu0 0
        %3953 = vmatpush1.bf16.msra.mxu0 %v3929
        %3954 = vmatprep.subr.bf16.mxu0 0
        %3955 = vmatpush1.bf16.msra.mxu0 0
        %3956 = vmatprep.subr.bf16.mxu0 0
        %3957 = vmatpush1.bf16.msra.mxu0 0
        %3958 = vmatprep.subr.bf16.mxu0 0
        %3959 = vmatpush1.bf16.msra.mxu0 0
        %3960 = vmatprep.subr.bf16.mxu0 0
        %3961 = vmatpush1.bf16.msra.mxu0 0
        %3962 = vmatprep.subr.bf16.mxu0 0
        %3963 = vmatpush1.bf16.msra.mxu0 0
        %3964 = vmatprep.subr.bf16.mxu0 0
        %3965 = vmatpush1.bf16.msra.mxu0 0
        %3966 = vmatprep.subr.bf16.mxu0 0
        %3967 = vmatpush1.bf16.msra.mxu0 0
        %3968 = vmatprep.subr.bf16.mxu0 0
        %3969 = vmatpush1.bf16.msra.mxu0 0
        %3970 = vmatprep.subr.bf16.mxu0 0
        %3971 = vmatpush1.bf16.msra.mxu0 0
        %3972 = vmatprep.subr.bf16.mxu0 0
        %3973 = vmatpush1.bf16.msra.mxu0 0
        %3974 = vmatprep.subr.bf16.mxu0 0
        %3975 = vmatpush1.bf16.msra.mxu0 0
        %3976 = vmatprep.subr.bf16.mxu0 0
        %3977 = vmatpush1.bf16.msra.mxu0 0
        %3978 = vmatprep.mubr.bf16.mxu0 0
        %3979 = vmatmul.mubr.bf16.gmra.mrb[0].mxu0 %v3935
        %v3980 = vpop.f32.mrb[0].mxu0
        %v3981 = vadd.f32 0.0, %v3980
        %v3982 = vpop.f32.mrb[0].mxu0
        %v3983 = vpop.f32.mrb[0].mxu0
        %v3984 = vadd.f32 0.0, %v3983
        %v3985 = vpop.f32.mrb[0].mxu0
        %3986 = vmatprep.mubr.bf16.mxu0 0
        %3987 = vmatmul.mubr.bf16.gmra.mrb[0].mxu0 %v3938
        %v3988 = vpop.f32.mrb[0].mxu0
        %v3989 = vadd.f32 0.0, %v3988
        %v3990 = vpop.f32.mrb[0].mxu0
        %v3991 = vpop.f32.mrb[0].mxu0
        %v3992 = vadd.f32 0.0, %v3991
        %v3993 = vpop.f32.mrb[0].mxu0
        %3994 = vmatprep.mubr.bf16.mxu0 0
        %3995 = vmatmul.mubr.bf16.gmra.mrb[0].mxu0 %v3941
        %v3996 = vpop.f32.mrb[0].mxu0
        %v3997 = vadd.f32 0.0, %v3996
        %v3998 = vpop.f32.mrb[0].mxu0
        %v3999 = vpop.f32.mrb[0].mxu0
        %v4000 = vadd.f32 0.0, %v3999
        %v4001 = vpop.f32.mrb[0].mxu0
        %4002 = vmatprep.mubr.bf16.mxu0 0
        %4003 = vmatmul.mubr.bf16.gmra.mrb[0].mxu0 %v3944
        %v4004 = vpop.f32.mrb[0].mxu0
        %v4005 = vadd.f32 0.0, %v4004
        %v4006 = vpop.f32.mrb[0].mxu0
        %v4007 = vpop.f32.mrb[0].mxu0
        %v4008 = vadd.f32 0.0, %v4007
        %v4009 = vpop.f32.mrb[0].mxu0
        %4010 = vdwg.mxu0
        %4019 = vrot.lane.b32.xlu0 %v3409, 8
        %v4020 = vpop.permute.xlu0 %4019
        %4021 = vrot.lane.b32.xlu0 %v3412, 8
        %v4022 = vpop.permute.xlu0 %4021
        %4023 = vrot.lane.b32.xlu0 %v3417, 8
        %v4024 = vpop.permute.xlu0 %4023
        %4025 = vrot.lane.b32.xlu0 %v3420, 8
        %v4026 = vpop.permute.xlu0 %4025
        %4027 = vrot.lane.b32.xlu0 %v3425, 8
        %v4028 = vpop.permute.xlu0 %4027
        %4029 = vrot.lane.b32.xlu0 %v3428, 8
        %v4030 = vpop.permute.xlu0 %4029
        %4031 = vrot.lane.b32.xlu0 %v3433, 8
        %v4032 = vpop.permute.xlu0 %4031
        %4033 = vrot.lane.b32.xlu0 %v3436, 8
        %v4034 = vpop.permute.xlu0 %4033
        %4051 = vrot.lane.b32.xlu0 %v3695, 16
        %v4052 = vpop.permute.xlu0 %4051
        %4053 = vrot.lane.b32.xlu0 %v3698, 16
        %v4054 = vpop.permute.xlu0 %4053
        %4055 = vrot.lane.b32.xlu0 %v3703, 16
        %v4056 = vpop.permute.xlu0 %4055
        %4057 = vrot.lane.b32.xlu0 %v3706, 16
        %v4058 = vpop.permute.xlu0 %4057
        %4059 = vrot.lane.b32.xlu0 %v3711, 16
        %v4060 = vpop.permute.xlu0 %4059
        %4061 = vrot.lane.b32.xlu0 %v3714, 16
        %v4062 = vpop.permute.xlu0 %4061
        %4063 = vrot.lane.b32.xlu0 %v3719, 16
        %v4064 = vpop.permute.xlu0 %4063
        %4065 = vrot.lane.b32.xlu0 %v3722, 16
        %v4066 = vpop.permute.xlu0 %4065
        %4083 = vrot.lane.b32.xlu0 %v3981, 24
        %v4084 = vpop.permute.xlu0 %4083
        %4085 = vrot.lane.b32.xlu0 %v3984, 24
        %v4086 = vpop.permute.xlu0 %4085
        %4087 = vrot.lane.b32.xlu0 %v3989, 24
        %v4088 = vpop.permute.xlu0 %4087
        %4089 = vrot.lane.b32.xlu0 %v3992, 24
        %v4090 = vpop.permute.xlu0 %4089
        %4091 = vrot.lane.b32.xlu0 %v3997, 24
        %v4092 = vpop.permute.xlu0 %4091
        %4093 = vrot.lane.b32.xlu0 %v4000, 24
        %v4094 = vpop.permute.xlu0 %4093
        %4095 = vrot.lane.b32.xlu0 %v4005, 24
        %v4096 = vpop.permute.xlu0 %4095
        %4097 = vrot.lane.b32.xlu0 %v4008, 24
        %v4098 = vpop.permute.xlu0 %4097
        %v4107 = vsel %vm1595, %v3119, %v4020
        %v4108 = vsel %vm1595, %v3122, %v4022
        %v4109 = vsel %vm1595, %v3127, %v4024
        %v4110 = vsel %vm1595, %v3130, %v4026
        %v4111 = vsel %vm1595, %v3135, %v4028
        %v4112 = vsel %vm1595, %v3138, %v4030
        %v4113 = vsel %vm1595, %v3143, %v4032
        %v4114 = vsel %vm1595, %v3146, %v4034
        %v4115 = vsel %vm2833, %v4107, %v4052
        %v4116 = vsel %vm2833, %v4108, %v4054
        %v4117 = vsel %vm2833, %v4109, %v4056
        %v4118 = vsel %vm2833, %v4110, %v4058
        %v4119 = vsel %vm2833, %v4111, %v4060
        %v4120 = vsel %vm2833, %v4112, %v4062
        %v4121 = vsel %vm2833, %v4113, %v4064
        %v4122 = vsel %vm2833, %v4114, %v4066
        %v4123 = vsel %vm2842, %v4115, %v4084
        %v4124 = vsel %vm2842, %v4116, %v4086
        %v4125 = vsel %vm2842, %v4117, %v4088
        %v4126 = vsel %vm2842, %v4118, %v4090
        %v4127 = vsel %vm2842, %v4119, %v4092
        %v4128 = vsel %vm2842, %v4120, %v4094
        %v4129 = vsel %vm2842, %v4121, %v4096
        %v4130 = vsel %vm2842, %v4122, %v4098
        %v4131 = vpack.c.bf16 %v2844, %v2843
        %v4132 = vpack.c.bf16 %v2846, %v2845
        %v4133 = vpack.c.bf16 %v2848, %v2847
        %v4134 = vpack.c.bf16 %v2850, %v2849
        %v4135 = vpack.c.bf16 %v4124, %v4123
        %v4136 = vpack.c.bf16 %v4126, %v4125
        %v4137 = vpack.c.bf16 %v4128, %v4127
        %v4138 = vpack.c.bf16 %v4130, %v4129
        %v4139 = vld [vmem:[%s799] sm:$0xf]
        %v4140 = vld [vmem:[%s799 + $0x4] sm:$0xf]
        %v4141 = vld [vmem:[%s799 + $0x8] sm:$0xf]
        %v4142 = vld [vmem:[%s799 + $0xc] sm:$0xf]
        %v4143 = vld [vmem:[%s802] sm:$0x1]
        %v4145 = vlaneseq
        %v4146 = vshrl.u32 %v4145, 7
        %v4147 = vsub.s32 0, %v4146
        %v4148 = vrot.slane %v4143, %v4147
        %v4154 = vunpack.c.l.b16 %v4139
        %v4155 = vunpack.c.l.b16 %v4140
        %v4156 = vunpack.c.l.b16 %v4141
        %v4157 = vunpack.c.l.b16 %v4142
        %v4158 = vpack.c.b16 %v4155, %v4154
        %v4159 = vpack.c.b16 %v4157, %v4156
        %v4163 = vsel %vm1161, %v4131, 0
        %v4166 = vsel %vm1161, %v4132, 0
        %v4169 = vsel %vm1161, %v4133, 0
        %v4172 = vsel %vm1161, %v4134, 0
        %v4175 = vsel %vm1161, %v4135, 0
        %v4178 = vsel %vm1161, %v4136, 0
        %v4181 = vsel %vm1161, %v4137, 0
        %v4184 = vsel %vm1161, %v4138, 0
        %4186 = vmatprep.subr.bf16.mxu0 0
        %4187 = vmatpush1.bf16.msra.mxu0 %v4158
        %4188 = vmatprep.subr.bf16.mxu0 0
        %4189 = vmatpush1.bf16.msra.mxu0 %v4159
        %4190 = vmatprep.subr.bf16.mxu0 0
        %4191 = vmatpush1.bf16.msra.mxu0 0
        %4192 = vmatprep.subr.bf16.mxu0 0
        %4193 = vmatpush1.bf16.msra.mxu0 0
        %4194 = vmatprep.subr.bf16.mxu0 0
        %4195 = vmatpush1.bf16.msra.mxu0 0
        %4196 = vmatprep.subr.bf16.mxu0 0
        %4197 = vmatpush1.bf16.msra.mxu0 0
        %4198 = vmatprep.subr.bf16.mxu0 0
        %4199 = vmatpush1.bf16.msra.mxu0 0
        %4200 = vmatprep.subr.bf16.mxu0 0
        %4201 = vmatpush1.bf16.msra.mxu0 0
        %4202 = vmatprep.subr.bf16.mxu0 0
        %4203 = vmatpush1.bf16.msra.mxu0 0
        %4204 = vmatprep.subr.bf16.mxu0 0
        %4205 = vmatpush1.bf16.msra.mxu0 0
        %4206 = vmatprep.subr.bf16.mxu0 0
        %4207 = vmatpush1.bf16.msra.mxu0 0
        %4208 = vmatprep.subr.bf16.mxu0 0
        %4209 = vmatpush1.bf16.msra.mxu0 0
        %4210 = vmatprep.subr.bf16.mxu0 0
        %4211 = vmatpush1.bf16.msra.mxu0 0
        %4212 = vmatprep.subr.bf16.mxu0 0
        %4213 = vmatpush1.bf16.msra.mxu0 0
        %4214 = vmatprep.subr.bf16.mxu0 0
        %4215 = vmatpush1.bf16.msra.mxu0 0
        %4216 = vmatprep.subr.bf16.mxu0 0
        %4217 = vmatpush1.bf16.msra.mxu0 0
        %4218 = vmatprep.mubr.bf16.mxu0 0
        %4219 = vmatmul.mubr.bf16.gmra.mrb[0].mxu0 %v4163
        %v4220 = vpop.f32.mrb[0].mxu0
        %v4221 = vadd.f32 %v4148, %v4220
        %v4222 = vpop.f32.mrb[0].mxu0
        %v4223 = vpop.f32.mrb[0].mxu0
        %v4224 = vadd.f32 %v4148, %v4223
        %v4225 = vpop.f32.mrb[0].mxu0
        %4226 = vmatprep.mubr.bf16.mxu0 0
        %4227 = vmatmul.mubr.bf16.gmra.mrb[0].mxu0 %v4166
        %v4228 = vpop.f32.mrb[0].mxu0
        %v4229 = vadd.f32 %v4148, %v4228
        %v4230 = vpop.f32.mrb[0].mxu0
        %v4231 = vpop.f32.mrb[0].mxu0
        %v4232 = vadd.f32 %v4148, %v4231
        %v4233 = vpop.f32.mrb[0].mxu0
        %4234 = vmatprep.mubr.bf16.mxu0 0
        %4235 = vmatmul.mubr.bf16.gmra.mrb[0].mxu0 %v4169
        %v4236 = vpop.f32.mrb[0].mxu0
        %v4237 = vadd.f32 %v4148, %v4236
        %v4238 = vpop.f32.mrb[0].mxu0
        %v4239 = vpop.f32.mrb[0].mxu0
        %v4240 = vadd.f32 %v4148, %v4239
        %v4241 = vpop.f32.mrb[0].mxu0
        %4242 = vmatprep.mubr.bf16.mxu0 0
        %4243 = vmatmul.mubr.bf16.gmra.mrb[0].mxu0 %v4172
        %v4244 = vpop.f32.mrb[0].mxu0
        %v4245 = vadd.f32 %v4148, %v4244
        %v4246 = vpop.f32.mrb[0].mxu0
        %v4247 = vpop.f32.mrb[0].mxu0
        %v4248 = vadd.f32 %v4148, %v4247
        %v4249 = vpop.f32.mrb[0].mxu0
        %4250 = vmatprep.mubr.bf16.mxu0 0
        %4251 = vmatmul.mubr.bf16.gmra.mrb[0].mxu0 %v4175
        %v4252 = vpop.f32.mrb[0].mxu0
        %v4253 = vadd.f32 %v4148, %v4252
        %v4254 = vpop.f32.mrb[0].mxu0
        %v4255 = vpop.f32.mrb[0].mxu0
        %v4256 = vadd.f32 %v4148, %v4255
        %v4257 = vpop.f32.mrb[0].mxu0
        %4258 = vmatprep.mubr.bf16.mxu0 0
        %4259 = vmatmul.mubr.bf16.gmra.mrb[0].mxu0 %v4178
        %v4260 = vpop.f32.mrb[0].mxu0
        %v4261 = vadd.f32 %v4148, %v4260
        %v4262 = vpop.f32.mrb[0].mxu0
        %v4263 = vpop.f32.mrb[0].mxu0
        %v4264 = vadd.f32 %v4148, %v4263
        %v4265 = vpop.f32.mrb[0].mxu0
        %4266 = vmatprep.mubr.bf16.mxu0 0
        %4267 = vmatmul.mubr.bf16.gmra.mrb[0].mxu0 %v4181
        %v4268 = vpop.f32.mrb[0].mxu0
        %v4269 = vadd.f32 %v4148, %v4268
        %v4270 = vpop.f32.mrb[0].mxu0
        %v4271 = vpop.f32.mrb[0].mxu0
        %v4272 = vadd.f32 %v4148, %v4271
        %v4273 = vpop.f32.mrb[0].mxu0
        %4274 = vmatprep.mubr.bf16.mxu0 0
        %4275 = vmatmul.mubr.bf16.gmra.mrb[0].mxu0 %v4184
        %v4276 = vpop.f32.mrb[0].mxu0
        %v4277 = vadd.f32 %v4148, %v4276
        %v4278 = vpop.f32.mrb[0].mxu0
        %v4279 = vpop.f32.mrb[0].mxu0
        %v4280 = vadd.f32 %v4148, %v4279
        %v4281 = vpop.f32.mrb[0].mxu0
        %4282 = vdwg.mxu0
        %v4283 = vadd.f32 %v1127, %v4221
        %v4284 = vadd.f32 %v1128, %v4224
        %v4285 = vadd.f32 %v1129, %v4229
        %v4286 = vadd.f32 %v1130, %v4232
        %v4287 = vadd.f32 %v1131, %v4237
        %v4288 = vadd.f32 %v1132, %v4240
        %v4289 = vadd.f32 %v1133, %v4245
        %v4290 = vadd.f32 %v1134, %v4248
        %v4291 = vadd.f32 %v1135, %v4253
        %v4292 = vadd.f32 %v1136, %v4256
        %v4293 = vadd.f32 %v1137, %v4261
        %v4294 = vadd.f32 %v1138, %v4264
        %v4295 = vadd.f32 %v1139, %v4269
        %v4296 = vadd.f32 %v1140, %v4272
        %v4297 = vadd.f32 %v1141, %v4277
        %v4298 = vadd.f32 %v1142, %v4280
        %v4299 = vld [vmem:[%s805] sm:$0x1]
        %v4300 = vld [vmem:[%s808] sm:$0x1]
        %v4301 = vsel %vm1161, %v4283, 0.0
        %4302 = vadd.xlane.f32.xlu0 %v4301
        %v4303 = vpop.xlane.xlu0 %4302
        %v4304 = vsel %vm1161, %v4284, 0.0
        %4305 = vadd.xlane.f32.xlu0 %v4304
        %v4306 = vpop.xlane.xlu0 %4305
        %v4307 = vsel %vm1161, %v4285, 0.0
        %4308 = vadd.xlane.f32.xlu0 %v4307
        %v4309 = vpop.xlane.xlu0 %4308
        %v4310 = vsel %vm1161, %v4286, 0.0
        %4311 = vadd.xlane.f32.xlu0 %v4310
        %v4312 = vpop.xlane.xlu0 %4311
        %v4313 = vsel %vm1161, %v4287, 0.0
        %4314 = vadd.xlane.f32.xlu0 %v4313
        %v4315 = vpop.xlane.xlu0 %4314
        %v4316 = vsel %vm1161, %v4288, 0.0
        %4317 = vadd.xlane.f32.xlu0 %v4316
        %v4318 = vpop.xlane.xlu0 %4317
        %v4319 = vsel %vm1161, %v4289, 0.0
        %4320 = vadd.xlane.f32.xlu0 %v4319
        %v4321 = vpop.xlane.xlu0 %4320
        %v4322 = vsel %vm1161, %v4290, 0.0
        %4323 = vadd.xlane.f32.xlu0 %v4322
        %v4324 = vpop.xlane.xlu0 %4323
        %v4325 = vsel %vm1161, %v4291, 0.0
        %4326 = vadd.xlane.f32.xlu0 %v4325
        %v4327 = vpop.xlane.xlu0 %4326
        %v4328 = vsel %vm1161, %v4292, 0.0
        %4329 = vadd.xlane.f32.xlu0 %v4328
        %v4330 = vpop.xlane.xlu0 %4329
        %v4331 = vsel %vm1161, %v4293, 0.0
        %4332 = vadd.xlane.f32.xlu0 %v4331
        %v4333 = vpop.xlane.xlu0 %4332
        %v4334 = vsel %vm1161, %v4294, 0.0
        %4335 = vadd.xlane.f32.xlu0 %v4334
        %v4336 = vpop.xlane.xlu0 %4335
        %v4337 = vsel %vm1161, %v4295, 0.0
        %4338 = vadd.xlane.f32.xlu0 %v4337
        %v4339 = vpop.xlane.xlu0 %4338
        %v4340 = vsel %vm1161, %v4296, 0.0
        %4341 = vadd.xlane.f32.xlu0 %v4340
        %v4342 = vpop.xlane.xlu0 %4341
        %v4343 = vsel %vm1161, %v4297, 0.0
        %4344 = vadd.xlane.f32.xlu0 %v4343
        %v4345 = vpop.xlane.xlu0 %4344
        %v4346 = vsel %vm1161, %v4298, 0.0
        %4347 = vadd.xlane.f32.xlu0 %v4346
        %v4348 = vpop.xlane.xlu0 %4347
        %v4349 = vmul.f32 %v4303, %v1210
        %v4350 = vmul.f32 %v4306, %v1210
        %v4351 = vmul.f32 %v4309, %v1210
        %v4352 = vmul.f32 %v4312, %v1210
        %v4353 = vmul.f32 %v4315, %v1210
        %v4354 = vmul.f32 %v4318, %v1210
        %v4355 = vmul.f32 %v4321, %v1210
        %v4356 = vmul.f32 %v4324, %v1210
        %v4357 = vmul.f32 %v4327, %v1210
        %v4358 = vmul.f32 %v4330, %v1210
        %v4359 = vmul.f32 %v4333, %v1210
        %v4360 = vmul.f32 %v4336, %v1210
        %v4361 = vmul.f32 %v4339, %v1210
        %v4362 = vmul.f32 %v4342, %v1210
        %v4363 = vmul.f32 %v4345, %v1210
        %v4364 = vmul.f32 %v4348, %v1210
        %v4365 = vsub.f32 %v4283, %v4349
        %v4366 = vsub.f32 %v4284, %v4350
        %v4367 = vsub.f32 %v4285, %v4351
        %v4368 = vsub.f32 %v4286, %v4352
        %v4369 = vsub.f32 %v4287, %v4353
        %v4370 = vsub.f32 %v4288, %v4354
        %v4371 = vsub.f32 %v4289, %v4355
        %v4372 = vsub.f32 %v4290, %v4356
        %v4373 = vsub.f32 %v4291, %v4357
        %v4374 = vsub.f32 %v4292, %v4358
        %v4375 = vsub.f32 %v4293, %v4359
        %v4376 = vsub.f32 %v4294, %v4360
        %v4377 = vsub.f32 %v4295, %v4361
        %v4378 = vsub.f32 %v4296, %v4362
        %v4379 = vsub.f32 %v4297, %v4363
        %v4380 = vsub.f32 %v4298, %v4364
        %v4381 = vmul.f32 %v4365, %v4365
        %v4382 = vmul.f32 %v4366, %v4366
        %v4383 = vmul.f32 %v4367, %v4367
        %v4384 = vmul.f32 %v4368, %v4368
        %v4385 = vmul.f32 %v4369, %v4369
        %v4386 = vmul.f32 %v4370, %v4370
        %v4387 = vmul.f32 %v4371, %v4371
        %v4388 = vmul.f32 %v4372, %v4372
        %v4389 = vmul.f32 %v4373, %v4373
        %v4390 = vmul.f32 %v4374, %v4374
        %v4391 = vmul.f32 %v4375, %v4375
        %v4392 = vmul.f32 %v4376, %v4376
        %v4393 = vmul.f32 %v4377, %v4377
        %v4394 = vmul.f32 %v4378, %v4378
        %v4395 = vmul.f32 %v4379, %v4379
        %v4396 = vmul.f32 %v4380, %v4380
        %v4397 = vsel %vm1161, %v4381, 0.0
        %4398 = vadd.xlane.f32.xlu0 %v4397
        %v4399 = vpop.xlane.xlu0 %4398
        %v4400 = vsel %vm1161, %v4382, 0.0
        %4401 = vadd.xlane.f32.xlu0 %v4400
        %v4402 = vpop.xlane.xlu0 %4401
        %v4403 = vsel %vm1161, %v4383, 0.0
        %4404 = vadd.xlane.f32.xlu0 %v4403
        %v4405 = vpop.xlane.xlu0 %4404
        %v4406 = vsel %vm1161, %v4384, 0.0
        %4407 = vadd.xlane.f32.xlu0 %v4406
        %v4408 = vpop.xlane.xlu0 %4407
        %v4409 = vsel %vm1161, %v4385, 0.0
        %4410 = vadd.xlane.f32.xlu0 %v4409
        %v4411 = vpop.xlane.xlu0 %4410
        %v4412 = vsel %vm1161, %v4386, 0.0
        %4413 = vadd.xlane.f32.xlu0 %v4412
        %v4414 = vpop.xlane.xlu0 %4413
        %v4415 = vsel %vm1161, %v4387, 0.0
        %4416 = vadd.xlane.f32.xlu0 %v4415
        %v4417 = vpop.xlane.xlu0 %4416
        %v4418 = vsel %vm1161, %v4388, 0.0
        %4419 = vadd.xlane.f32.xlu0 %v4418
        %v4420 = vpop.xlane.xlu0 %4419
        %v4421 = vsel %vm1161, %v4389, 0.0
        %4422 = vadd.xlane.f32.xlu0 %v4421
        %v4423 = vpop.xlane.xlu0 %4422
        %v4424 = vsel %vm1161, %v4390, 0.0
        %4425 = vadd.xlane.f32.xlu0 %v4424
        %v4426 = vpop.xlane.xlu0 %4425
        %v4427 = vsel %vm1161, %v4391, 0.0
        %4428 = vadd.xlane.f32.xlu0 %v4427
        %v4429 = vpop.xlane.xlu0 %4428
        %v4430 = vsel %vm1161, %v4392, 0.0
        %4431 = vadd.xlane.f32.xlu0 %v4430
        %v4432 = vpop.xlane.xlu0 %4431
        %v4433 = vsel %vm1161, %v4393, 0.0
        %4434 = vadd.xlane.f32.xlu0 %v4433
        %v4435 = vpop.xlane.xlu0 %4434
        %v4436 = vsel %vm1161, %v4394, 0.0
        %4437 = vadd.xlane.f32.xlu0 %v4436
        %v4438 = vpop.xlane.xlu0 %4437
        %v4439 = vsel %vm1161, %v4395, 0.0
        %4440 = vadd.xlane.f32.xlu0 %v4439
        %v4441 = vpop.xlane.xlu0 %4440
        %v4442 = vsel %vm1161, %v4396, 0.0
        %4443 = vadd.xlane.f32.xlu0 %v4442
        %v4444 = vpop.xlane.xlu0 %4443
        %v4445 = vmul.f32 %v4399, %v1210
        %v4446 = vmul.f32 %v4402, %v1210
        %v4447 = vmul.f32 %v4405, %v1210
        %v4448 = vmul.f32 %v4408, %v1210
        %v4449 = vmul.f32 %v4411, %v1210
        %v4450 = vmul.f32 %v4414, %v1210
        %v4451 = vmul.f32 %v4417, %v1210
        %v4452 = vmul.f32 %v4420, %v1210
        %v4453 = vmul.f32 %v4423, %v1210
        %v4454 = vmul.f32 %v4426, %v1210
        %v4455 = vmul.f32 %v4429, %v1210
        %v4456 = vmul.f32 %v4432, %v1210
        %v4457 = vmul.f32 %v4435, %v1210
        %v4458 = vmul.f32 %v4438, %v1210
        %v4459 = vmul.f32 %v4441, %v1210
        %v4460 = vmul.f32 %v4444, %v1210
        %v4461 = vadd.f32 %v4445, 1e-05
        %v4462 = vadd.f32 %v4446, 1e-05
        %v4463 = vadd.f32 %v4447, 1e-05
        %v4464 = vadd.f32 %v4448, 1e-05
        %v4465 = vadd.f32 %v4449, 1e-05
        %v4466 = vadd.f32 %v4450, 1e-05
        %v4467 = vadd.f32 %v4451, 1e-05
        %v4468 = vadd.f32 %v4452, 1e-05
        %v4469 = vadd.f32 %v4453, 1e-05
        %v4470 = vadd.f32 %v4454, 1e-05
        %v4471 = vadd.f32 %v4455, 1e-05
        %v4472 = vadd.f32 %v4456, 1e-05
        %v4473 = vadd.f32 %v4457, 1e-05
        %v4474 = vadd.f32 %v4458, 1e-05
        %v4475 = vadd.f32 %v4459, 1e-05
        %v4476 = vadd.f32 %v4460, 1e-05
        %v4477 = vrsqrt.pop %v4461
        %v4478 = vrsqrt.pop %v4462
        %v4479 = vrsqrt.pop %v4463
        %v4480 = vrsqrt.pop %v4464
        %v4481 = vrsqrt.pop %v4465
        %v4482 = vrsqrt.pop %v4466
        %v4483 = vrsqrt.pop %v4467
        %v4484 = vrsqrt.pop %v4468
        %v4485 = vrsqrt.pop %v4469
        %v4486 = vrsqrt.pop %v4470
        %v4487 = vrsqrt.pop %v4471
        %v4488 = vrsqrt.pop %v4472
        %v4489 = vrsqrt.pop %v4473
        %v4490 = vrsqrt.pop %v4474
        %v4491 = vrsqrt.pop %v4475
        %v4492 = vrsqrt.pop %v4476
        %v4493 = vmul.f32 %v4365, %v4477
        %v4494 = vmul.f32 %v4366, %v4478
        %v4495 = vmul.f32 %v4367, %v4479
        %v4496 = vmul.f32 %v4368, %v4480
        %v4497 = vmul.f32 %v4369, %v4481
        %v4498 = vmul.f32 %v4370, %v4482
        %v4499 = vmul.f32 %v4371, %v4483
        %v4500 = vmul.f32 %v4372, %v4484
        %v4501 = vmul.f32 %v4373, %v4485
        %v4502 = vmul.f32 %v4374, %v4486
        %v4503 = vmul.f32 %v4375, %v4487
        %v4504 = vmul.f32 %v4376, %v4488
        %v4505 = vmul.f32 %v4377, %v4489
        %v4506 = vmul.f32 %v4378, %v4490
        %v4507 = vmul.f32 %v4379, %v4491
        %v4508 = vmul.f32 %v4380, %v4492
        %v4510 = vlaneseq
        %v4511 = vshrl.u32 %v4510, 7
        %v4512 = vsub.s32 0, %v4511
        %v4513 = vrot.slane %v4299, %v4512
        %v4515 = vmul.f32 %v4493, %v4513
        %v4516 = vmul.f32 %v4494, %v4513
        %v4517 = vmul.f32 %v4495, %v4513
        %v4518 = vmul.f32 %v4496, %v4513
        %v4519 = vmul.f32 %v4497, %v4513
        %v4520 = vmul.f32 %v4498, %v4513
        %v4521 = vmul.f32 %v4499, %v4513
        %v4522 = vmul.f32 %v4500, %v4513
        %v4523 = vmul.f32 %v4501, %v4513
        %v4524 = vmul.f32 %v4502, %v4513
        %v4525 = vmul.f32 %v4503, %v4513
        %v4526 = vmul.f32 %v4504, %v4513
        %v4527 = vmul.f32 %v4505, %v4513
        %v4528 = vmul.f32 %v4506, %v4513
        %v4529 = vmul.f32 %v4507, %v4513
        %v4530 = vmul.f32 %v4508, %v4513
        %v4532 = vlaneseq
        %v4533 = vshrl.u32 %v4532, 7
        %v4534 = vsub.s32 0, %v4533
        %v4535 = vrot.slane %v4300, %v4534
        %v4537 = vadd.f32 %v4515, %v4535
        %v4538 = vadd.f32 %v4516, %v4535
        %v4539 = vadd.f32 %v4517, %v4535
        %v4540 = vadd.f32 %v4518, %v4535
        %v4541 = vadd.f32 %v4519, %v4535
        %v4542 = vadd.f32 %v4520, %v4535
        %v4543 = vadd.f32 %v4521, %v4535
        %v4544 = vadd.f32 %v4522, %v4535
        %v4545 = vadd.f32 %v4523, %v4535
        %v4546 = vadd.f32 %v4524, %v4535
        %v4547 = vadd.f32 %v4525, %v4535
        %v4548 = vadd.f32 %v4526, %v4535
        %v4549 = vadd.f32 %v4527, %v4535
        %v4550 = vadd.f32 %v4528, %v4535
        %v4551 = vadd.f32 %v4529, %v4535
        %v4552 = vadd.f32 %v4530, %v4535
        %v4553 = vpack.c.bf16 %v4538, %v4537
        %v4554 = vpack.c.bf16 %v4540, %v4539
        %v4555 = vpack.c.bf16 %v4542, %v4541
        %v4556 = vpack.c.bf16 %v4544, %v4543
        %v4557 = vpack.c.bf16 %v4546, %v4545
        %v4558 = vpack.c.bf16 %v4548, %v4547
        %v4559 = vpack.c.bf16 %v4550, %v4549
        %v4560 = vpack.c.bf16 %v4552, %v4551
        %v4561 = vld [vmem:[%s813] sm:$0xf]
        %v4562 = vld [vmem:[%s813 + $0x4] sm:$0xf]
        %v4563 = vld [vmem:[%s813 + $0x8] sm:$0xf]
        %v4564 = vld [vmem:[%s813 + $0xc] sm:$0xf]
        %v4565 = vld [vmem:[%s816] sm:$0x1]
        %v4567 = vlaneseq
        %v4568 = vshrl.u32 %v4567, 7
        %v4569 = vsub.s32 0, %v4568
        %v4570 = vrot.slane %v4565, %v4569
        %v4576 = vunpack.c.l.b16 %v4561
        %v4577 = vunpack.c.l.b16 %v4562
        %v4578 = vunpack.c.l.b16 %v4563
        %v4579 = vunpack.c.l.b16 %v4564
        %v4580 = vpack.c.b16 %v4577, %v4576
        %v4581 = vpack.c.b16 %v4579, %v4578
        %v4585 = vsel %vm1161, %v4553, 0
        %v4588 = vsel %vm1161, %v4554, 0
        %v4591 = vsel %vm1161, %v4555, 0
        %v4594 = vsel %vm1161, %v4556, 0
        %v4597 = vsel %vm1161, %v4557, 0
        %v4600 = vsel %vm1161, %v4558, 0
        %v4603 = vsel %vm1161, %v4559, 0
        %v4606 = vsel %vm1161, %v4560, 0
        %4608 = vmatprep.subr.bf16.mxu0 0
        %4609 = vmatpush1.bf16.msra.mxu0 %v4580
        %4610 = vmatprep.subr.bf16.mxu0 0
        %4611 = vmatpush1.bf16.msra.mxu0 %v4581
        %4612 = vmatprep.subr.bf16.mxu0 0
        %4613 = vmatpush1.bf16.msra.mxu0 0
        %4614 = vmatprep.subr.bf16.mxu0 0
        %4615 = vmatpush1.bf16.msra.mxu0 0
        %4616 = vmatprep.subr.bf16.mxu0 0
        %4617 = vmatpush1.bf16.msra.mxu0 0
        %4618 = vmatprep.subr.bf16.mxu0 0
        %4619 = vmatpush1.bf16.msra.mxu0 0
        %4620 = vmatprep.subr.bf16.mxu0 0
        %4621 = vmatpush1.bf16.msra.mxu0 0
        %4622 = vmatprep.subr.bf16.mxu0 0
        %4623 = vmatpush1.bf16.msra.mxu0 0
        %4624 = vmatprep.subr.bf16.mxu0 0
        %4625 = vmatpush1.bf16.msra.mxu0 0
        %4626 = vmatprep.subr.bf16.mxu0 0
        %4627 = vmatpush1.bf16.msra.mxu0 0
        %4628 = vmatprep.subr.bf16.mxu0 0
        %4629 = vmatpush1.bf16.msra.mxu0 0
        %4630 = vmatprep.subr.bf16.mxu0 0
        %4631 = vmatpush1.bf16.msra.mxu0 0
        %4632 = vmatprep.subr.bf16.mxu0 0
        %4633 = vmatpush1.bf16.msra.mxu0 0
        %4634 = vmatprep.subr.bf16.mxu0 0
        %4635 = vmatpush1.bf16.msra.mxu0 0
        %4636 = vmatprep.subr.bf16.mxu0 0
        %4637 = vmatpush1.bf16.msra.mxu0 0
        %4638 = vmatprep.subr.bf16.mxu0 0
        %4639 = vmatpush1.bf16.msra.mxu0 0
        %4640 = vmatprep.mubr.bf16.mxu0 0
        %4641 = vmatmul.mubr.bf16.gmra.mrb[0].mxu0 %v4585
        %v4642 = vpop.f32.mrb[0].mxu0
        %v4643 = vadd.f32 %v4570, %v4642
        %v4644 = vpop.f32.mrb[0].mxu0
        %v4645 = vpop.f32.mrb[0].mxu0
        %v4646 = vadd.f32 %v4570, %v4645
        %v4647 = vpop.f32.mrb[0].mxu0
        %4648 = vmatprep.mubr.bf16.mxu0 0
        %4649 = vmatmul.mubr.bf16.gmra.mrb[0].mxu0 %v4588
        %v4650 = vpop.f32.mrb[0].mxu0
        %v4651 = vadd.f32 %v4570, %v4650
        %v4652 = vpop.f32.mrb[0].mxu0
        %v4653 = vpop.f32.mrb[0].mxu0
        %v4654 = vadd.f32 %v4570, %v4653
        %v4655 = vpop.f32.mrb[0].mxu0
        %4656 = vmatprep.mubr.bf16.mxu0 0
        %4657 = vmatmul.mubr.bf16.gmra.mrb[0].mxu0 %v4591
        %v4658 = vpop.f32.mrb[0].mxu0
        %v4659 = vadd.f32 %v4570, %v4658
        %v4660 = vpop.f32.mrb[0].mxu0
        %v4661 = vpop.f32.mrb[0].mxu0
        %v4662 = vadd.f32 %v4570, %v4661
        %v4663 = vpop.f32.mrb[0].mxu0
        %4664 = vmatprep.mubr.bf16.mxu0 0
        %4665 = vmatmul.mubr.bf16.gmra.mrb[0].mxu0 %v4594
        %v4666 = vpop.f32.mrb[0].mxu0
        %v4667 = vadd.f32 %v4570, %v4666
        %v4668 = vpop.f32.mrb[0].mxu0
        %v4669 = vpop.f32.mrb[0].mxu0
        %v4670 = vadd.f32 %v4570, %v4669
        %v4671 = vpop.f32.mrb[0].mxu0
        %4672 = vmatprep.mubr.bf16.mxu0 0
        %4673 = vmatmul.mubr.bf16.gmra.mrb[0].mxu0 %v4597
        %v4674 = vpop.f32.mrb[0].mxu0
        %v4675 = vadd.f32 %v4570, %v4674
        %v4676 = vpop.f32.mrb[0].mxu0
        %v4677 = vpop.f32.mrb[0].mxu0
        %v4678 = vadd.f32 %v4570, %v4677
        %v4679 = vpop.f32.mrb[0].mxu0
        %4680 = vmatprep.mubr.bf16.mxu0 0
        %4681 = vmatmul.mubr.bf16.gmra.mrb[0].mxu0 %v4600
        %v4682 = vpop.f32.mrb[0].mxu0
        %v4683 = vadd.f32 %v4570, %v4682
        %v4684 = vpop.f32.mrb[0].mxu0
        %v4685 = vpop.f32.mrb[0].mxu0
        %v4686 = vadd.f32 %v4570, %v4685
        %v4687 = vpop.f32.mrb[0].mxu0
        %4688 = vmatprep.mubr.bf16.mxu0 0
        %4689 = vmatmul.mubr.bf16.gmra.mrb[0].mxu0 %v4603
        %v4690 = vpop.f32.mrb[0].mxu0
        %v4691 = vadd.f32 %v4570, %v4690
        %v4692 = vpop.f32.mrb[0].mxu0
        %v4693 = vpop.f32.mrb[0].mxu0
        %v4694 = vadd.f32 %v4570, %v4693
        %v4695 = vpop.f32.mrb[0].mxu0
        %4696 = vmatprep.mubr.bf16.mxu0 0
        %4697 = vmatmul.mubr.bf16.gmra.mrb[0].mxu0 %v4606
        %v4698 = vpop.f32.mrb[0].mxu0
        %v4699 = vadd.f32 %v4570, %v4698
        %v4700 = vpop.f32.mrb[0].mxu0
        %v4701 = vpop.f32.mrb[0].mxu0
        %v4702 = vadd.f32 %v4570, %v4701
        %v4703 = vpop.f32.mrb[0].mxu0
        %4704 = vdwg.mxu0
        %v4705 = vmul.f32 %v4643, 0.5
        %v4706 = vmul.f32 %v4646, 0.5
        %v4707 = vmul.f32 %v4651, 0.5
        %v4708 = vmul.f32 %v4654, 0.5
        %v4709 = vmul.f32 %v4659, 0.5
        %v4710 = vmul.f32 %v4662, 0.5
        %v4711 = vmul.f32 %v4667, 0.5
        %v4712 = vmul.f32 %v4670, 0.5
        %v4713 = vmul.f32 %v4675, 0.5
        %v4714 = vmul.f32 %v4678, 0.5
        %v4715 = vmul.f32 %v4683, 0.5
        %v4716 = vmul.f32 %v4686, 0.5
        %v4717 = vmul.f32 %v4691, 0.5
        %v4718 = vmul.f32 %v4694, 0.5
        %v4719 = vmul.f32 %v4699, 0.5
        %v4720 = vmul.f32 %v4702, 0.5
        %v4721 = vmul.f32 %v4643, 0.70710677
        %v4722 = vmul.f32 %v4646, 0.70710677
        %v4723 = vmul.f32 %v4651, 0.70710677
        %v4724 = vmul.f32 %v4654, 0.70710677
        %v4725 = vmul.f32 %v4659, 0.70710677
        %v4726 = vmul.f32 %v4662, 0.70710677
        %v4727 = vmul.f32 %v4667, 0.70710677
        %v4728 = vmul.f32 %v4670, 0.70710677
        %v4729 = vmul.f32 %v4675, 0.70710677
        %v4730 = vmul.f32 %v4678, 0.70710677
        %v4731 = vmul.f32 %v4683, 0.70710677
        %v4732 = vmul.f32 %v4686, 0.70710677
        %v4733 = vmul.f32 %v4691, 0.70710677
        %v4734 = vmul.f32 %v4694, 0.70710677
        %v4735 = vmul.f32 %v4699, 0.70710677
        %v4736 = vmul.f32 %v4702, 0.70710677
        %v4737 = verf.f32.pop %v4721
        %v4738 = verf.f32.pop %v4722
        %v4739 = verf.f32.pop %v4723
        %v4740 = verf.f32.pop %v4724
        %v4741 = verf.f32.pop %v4725
        %v4742 = verf.f32.pop %v4726
        %v4743 = verf.f32.pop %v4727
        %v4744 = verf.f32.pop %v4728
        %v4745 = verf.f32.pop %v4729
        %v4746 = verf.f32.pop %v4730
        %v4747 = verf.f32.pop %v4731
        %v4748 = verf.f32.pop %v4732
        %v4749 = verf.f32.pop %v4733
        %v4750 = verf.f32.pop %v4734
        %v4751 = verf.f32.pop %v4735
        %v4752 = verf.f32.pop %v4736
        %v4753 = vadd.f32 %v4737, 1.0
        %v4754 = vadd.f32 %v4738, 1.0
        %v4755 = vadd.f32 %v4739, 1.0
        %v4756 = vadd.f32 %v4740, 1.0
        %v4757 = vadd.f32 %v4741, 1.0
        %v4758 = vadd.f32 %v4742, 1.0
        %v4759 = vadd.f32 %v4743, 1.0
        %v4760 = vadd.f32 %v4744, 1.0
        %v4761 = vadd.f32 %v4745, 1.0
        %v4762 = vadd.f32 %v4746, 1.0
        %v4763 = vadd.f32 %v4747, 1.0
        %v4764 = vadd.f32 %v4748, 1.0
        %v4765 = vadd.f32 %v4749, 1.0
        %v4766 = vadd.f32 %v4750, 1.0
        %v4767 = vadd.f32 %v4751, 1.0
        %v4768 = vadd.f32 %v4752, 1.0
        %v4769 = vmul.f32 %v4705, %v4753
        %v4770 = vmul.f32 %v4706, %v4754
        %v4771 = vmul.f32 %v4707, %v4755
        %v4772 = vmul.f32 %v4708, %v4756
        %v4773 = vmul.f32 %v4709, %v4757
        %v4774 = vmul.f32 %v4710, %v4758
        %v4775 = vmul.f32 %v4711, %v4759
        %v4776 = vmul.f32 %v4712, %v4760
        %v4777 = vmul.f32 %v4713, %v4761
        %v4778 = vmul.f32 %v4714, %v4762
        %v4779 = vmul.f32 %v4715, %v4763
        %v4780 = vmul.f32 %v4716, %v4764
        %v4781 = vmul.f32 %v4717, %v4765
        %v4782 = vmul.f32 %v4718, %v4766
        %v4783 = vmul.f32 %v4719, %v4767
        %v4784 = vmul.f32 %v4720, %v4768
        %v4785 = vpack.c.bf16 %v4770, %v4769
        %v4786 = vpack.c.bf16 %v4772, %v4771
        %v4787 = vpack.c.bf16 %v4774, %v4773
        %v4788 = vpack.c.bf16 %v4776, %v4775
        %v4789 = vpack.c.bf16 %v4778, %v4777
        %v4790 = vpack.c.bf16 %v4780, %v4779
        %v4791 = vpack.c.bf16 %v4782, %v4781
        %v4792 = vpack.c.bf16 %v4784, %v4783
        %v4793 = vld [vmem:[%s821] sm:$0xf]
        %v4794 = vld [vmem:[%s821 + $0x4] sm:$0xf]
        %v4795 = vld [vmem:[%s821 + $0x8] sm:$0xf]
        %v4796 = vld [vmem:[%s821 + $0xc] sm:$0xf]
        %v4797 = vld [vmem:[%s821 + $0x10] sm:$0xf]
        %v4798 = vld [vmem:[%s821 + $0x14] sm:$0xf]
        %v4799 = vld [vmem:[%s821 + $0x18] sm:$0xf]
        %v4800 = vld [vmem:[%s821 + $0x1c] sm:$0xf]
        %v4801 = vld [vmem:[%s821 + $0x20] sm:$0xf]
        %v4802 = vld [vmem:[%s821 + $0x24] sm:$0xf]
        %v4803 = vld [vmem:[%s821 + $0x28] sm:$0xf]
        %v4804 = vld [vmem:[%s821 + $0x2c] sm:$0xf]
        %v4805 = vld [vmem:[%s821 + $0x30] sm:$0xf]
        %v4806 = vld [vmem:[%s821 + $0x34] sm:$0xf]
        %v4807 = vld [vmem:[%s821 + $0x38] sm:$0xf]
        %v4808 = vld [vmem:[%s821 + $0x3c] sm:$0xf]
        %v4809 = vld [vmem:[%s824] sm:$0x1]
        %v4811 = vlaneseq
        %v4812 = vshrl.u32 %v4811, 7
        %v4813 = vsub.s32 0, %v4812
        %v4814 = vrot.slane %v4809, %v4813
        %v4832 = vunpack.c.l.b16 %v4793
        %v4833 = vunpack.c.l.b16 %v4794
        %v4834 = vunpack.c.l.b16 %v4795
        %v4835 = vunpack.c.l.b16 %v4796
        %v4836 = vunpack.c.l.b16 %v4797
        %v4837 = vunpack.c.l.b16 %v4798
        %v4838 = vunpack.c.l.b16 %v4799
        %v4839 = vunpack.c.l.b16 %v4800
        %v4840 = vunpack.c.l.b16 %v4801
        %v4841 = vunpack.c.l.b16 %v4802
        %v4842 = vunpack.c.l.b16 %v4803
        %v4843 = vunpack.c.l.b16 %v4804
        %v4844 = vunpack.c.l.b16 %v4805
        %v4845 = vunpack.c.l.b16 %v4806
        %v4846 = vunpack.c.l.b16 %v4807
        %v4847 = vunpack.c.l.b16 %v4808
        %v4848 = vpack.c.b16 %v4833, %v4832
        %v4849 = vpack.c.b16 %v4835, %v4834
        %v4850 = vpack.c.b16 %v4837, %v4836
        %v4851 = vpack.c.b16 %v4839, %v4838
        %v4852 = vpack.c.b16 %v4841, %v4840
        %v4853 = vpack.c.b16 %v4843, %v4842
        %v4854 = vpack.c.b16 %v4845, %v4844
        %v4855 = vpack.c.b16 %v4847, %v4846
        %4864 = vmatprep.subr.bf16.mxu0 0
        %4865 = vmatpush1.bf16.msra.mxu0 %v4848
        %4866 = vmatprep.subr.bf16.mxu0 0
        %4867 = vmatpush1.bf16.msra.mxu0 %v4849
        %4868 = vmatprep.subr.bf16.mxu0 0
        %4869 = vmatpush1.bf16.msra.mxu0 %v4850
        %4870 = vmatprep.subr.bf16.mxu0 0
        %4871 = vmatpush1.bf16.msra.mxu0 %v4851
        %4872 = vmatprep.subr.bf16.mxu0 0
        %4873 = vmatpush1.bf16.msra.mxu0 %v4852
        %4874 = vmatprep.subr.bf16.mxu0 0
        %4875 = vmatpush1.bf16.msra.mxu0 %v4853
        %4876 = vmatprep.subr.bf16.mxu0 0
        %4877 = vmatpush1.bf16.msra.mxu0 %v4854
        %4878 = vmatprep.subr.bf16.mxu0 0
        %4879 = vmatpush1.bf16.msra.mxu0 %v4855
        %4880 = vmatprep.subr.bf16.mxu0 0
        %4881 = vmatpush1.bf16.msra.mxu0 0
        %4882 = vmatprep.subr.bf16.mxu0 0
        %4883 = vmatpush1.bf16.msra.mxu0 0
        %4884 = vmatprep.subr.bf16.mxu0 0
        %4885 = vmatpush1.bf16.msra.mxu0 0
        %4886 = vmatprep.subr.bf16.mxu0 0
        %4887 = vmatpush1.bf16.msra.mxu0 0
        %4888 = vmatprep.subr.bf16.mxu0 0
        %4889 = vmatpush1.bf16.msra.mxu0 0
        %4890 = vmatprep.subr.bf16.mxu0 0
        %4891 = vmatpush1.bf16.msra.mxu0 0
        %4892 = vmatprep.subr.bf16.mxu0 0
        %4893 = vmatpush1.bf16.msra.mxu0 0
        %4894 = vmatprep.subr.bf16.mxu0 0
        %4895 = vmatpush1.bf16.msra.mxu0 0
        %4896 = vmatprep.mubr.bf16.mxu0 0
        %4897 = vmatmul.mubr.bf16.gmra.mrb[0].mxu0 %v4785
        %v4898 = vpop.f32.mrb[0].mxu0
        %v4899 = vadd.f32 %v4814, %v4898
        %v4900 = vpop.f32.mrb[0].mxu0
        %v4901 = vpop.f32.mrb[0].mxu0
        %v4902 = vadd.f32 %v4814, %v4901
        %v4903 = vpop.f32.mrb[0].mxu0
        %4904 = vmatprep.mubr.bf16.mxu0 0
        %4905 = vmatmul.mubr.bf16.gmra.mrb[0].mxu0 %v4786
        %v4906 = vpop.f32.mrb[0].mxu0
        %v4907 = vadd.f32 %v4814, %v4906
        %v4908 = vpop.f32.mrb[0].mxu0
        %v4909 = vpop.f32.mrb[0].mxu0
        %v4910 = vadd.f32 %v4814, %v4909
        %v4911 = vpop.f32.mrb[0].mxu0
        %4912 = vmatprep.mubr.bf16.mxu0 0
        %4913 = vmatmul.mubr.bf16.gmra.mrb[0].mxu0 %v4787
        %v4914 = vpop.f32.mrb[0].mxu0
        %v4915 = vadd.f32 %v4814, %v4914
        %v4916 = vpop.f32.mrb[0].mxu0
        %v4917 = vpop.f32.mrb[0].mxu0
        %v4918 = vadd.f32 %v4814, %v4917
        %v4919 = vpop.f32.mrb[0].mxu0
        %4920 = vmatprep.mubr.bf16.mxu0 0
        %4921 = vmatmul.mubr.bf16.gmra.mrb[0].mxu0 %v4788
        %v4922 = vpop.f32.mrb[0].mxu0
        %v4923 = vadd.f32 %v4814, %v4922
        %v4924 = vpop.f32.mrb[0].mxu0
        %v4925 = vpop.f32.mrb[0].mxu0
        %v4926 = vadd.f32 %v4814, %v4925
        %v4927 = vpop.f32.mrb[0].mxu0
        %4928 = vmatprep.mubr.bf16.mxu0 0
        %4929 = vmatmul.mubr.bf16.gmra.mrb[0].mxu0 %v4789
        %v4930 = vpop.f32.mrb[0].mxu0
        %v4931 = vadd.f32 %v4814, %v4930
        %v4932 = vpop.f32.mrb[0].mxu0
        %v4933 = vpop.f32.mrb[0].mxu0
        %v4934 = vadd.f32 %v4814, %v4933
        %v4935 = vpop.f32.mrb[0].mxu0
        %4936 = vmatprep.mubr.bf16.mxu0 0
        %4937 = vmatmul.mubr.bf16.gmra.mrb[0].mxu0 %v4790
        %v4938 = vpop.f32.mrb[0].mxu0
        %v4939 = vadd.f32 %v4814, %v4938
        %v4940 = vpop.f32.mrb[0].mxu0
        %v4941 = vpop.f32.mrb[0].mxu0
        %v4942 = vadd.f32 %v4814, %v4941
        %v4943 = vpop.f32.mrb[0].mxu0
        %4944 = vmatprep.mubr.bf16.mxu0 0
        %4945 = vmatmul.mubr.bf16.gmra.mrb[0].mxu0 %v4791
        %v4946 = vpop.f32.mrb[0].mxu0
        %v4947 = vadd.f32 %v4814, %v4946
        %v4948 = vpop.f32.mrb[0].mxu0
        %v4949 = vpop.f32.mrb[0].mxu0
        %v4950 = vadd.f32 %v4814, %v4949
        %v4951 = vpop.f32.mrb[0].mxu0
        %4952 = vmatprep.mubr.bf16.mxu0 0
        %4953 = vmatmul.mubr.bf16.gmra.mrb[0].mxu0 %v4792
        %v4954 = vpop.f32.mrb[0].mxu0
        %v4955 = vadd.f32 %v4814, %v4954
        %v4956 = vpop.f32.mrb[0].mxu0
        %v4957 = vpop.f32.mrb[0].mxu0
        %v4958 = vadd.f32 %v4814, %v4957
        %v4959 = vpop.f32.mrb[0].mxu0
        %4960 = vdwg.mxu0
        %v4961 = vadd.f32 %v1143, %v4899
        %v4962 = vadd.f32 %v1144, %v4902
        %v4963 = vadd.f32 %v1145, %v4907
        %v4964 = vadd.f32 %v1146, %v4910
        %v4965 = vadd.f32 %v1147, %v4915
        %v4966 = vadd.f32 %v1148, %v4918
        %v4967 = vadd.f32 %v1149, %v4923
        %v4968 = vadd.f32 %v1150, %v4926
        %v4969 = vadd.f32 %v1151, %v4931
        %v4970 = vadd.f32 %v1152, %v4934
        %v4971 = vadd.f32 %v1153, %v4939
        %v4972 = vadd.f32 %v1154, %v4942
        %v4973 = vadd.f32 %v1155, %v4947
        %v4974 = vadd.f32 %v1156, %v4950
        %v4975 = vadd.f32 %v1157, %v4955
        %v4976 = vadd.f32 %v1158, %v4958
        %4977 = vst.msk [vmem:[#allocation2] sm:$0xff] %vm1161, %v4283
        %4978 = vst.msk [vmem:[#allocation2 + $0x8] sm:$0xff] %vm1161, %v4284
        %4979 = vst.msk [vmem:[#allocation2 + $0x10] sm:$0xff] %vm1161, %v4285
        %4980 = vst.msk [vmem:[#allocation2 + $0x18] sm:$0xff] %vm1161, %v4286
        %4981 = vst.msk [vmem:[#allocation2 + $0x20] sm:$0xff] %vm1161, %v4287
        %4982 = vst.msk [vmem:[#allocation2 + $0x28] sm:$0xff] %vm1161, %v4288
        %4983 = vst.msk [vmem:[#allocation2 + $0x30] sm:$0xff] %vm1161, %v4289
        %4984 = vst.msk [vmem:[#allocation2 + $0x38] sm:$0xff] %vm1161, %v4290
        %4985 = vst.msk [vmem:[#allocation2 + $0x40] sm:$0xff] %vm1161, %v4291
        %4986 = vst.msk [vmem:[#allocation2 + $0x48] sm:$0xff] %vm1161, %v4292
        %4987 = vst.msk [vmem:[#allocation2 + $0x50] sm:$0xff] %vm1161, %v4293
        %4988 = vst.msk [vmem:[#allocation2 + $0x58] sm:$0xff] %vm1161, %v4294
        %4989 = vst.msk [vmem:[#allocation2 + $0x60] sm:$0xff] %vm1161, %v4295
        %4990 = vst.msk [vmem:[#allocation2 + $0x68] sm:$0xff] %vm1161, %v4296
        %4991 = vst.msk [vmem:[#allocation2 + $0x70] sm:$0xff] %vm1161, %v4297
        %4992 = vst.msk [vmem:[#allocation2 + $0x78] sm:$0xff] %vm1161, %v4298
        %4993 = vst.msk [vmem:[#allocation3] sm:$0xff] %vm1161, %v4961
        %4994 = vst.msk [vmem:[#allocation3 + $0x8] sm:$0xff] %vm1161, %v4962
        %4995 = vst.msk [vmem:[#allocation3 + $0x10] sm:$0xff] %vm1161, %v4963
        %4996 = vst.msk [vmem:[#allocation3 + $0x18] sm:$0xff] %vm1161, %v4964
        %4997 = vst.msk [vmem:[#allocation3 + $0x20] sm:$0xff] %vm1161, %v4965
        %4998 = vst.msk [vmem:[#allocation3 + $0x28] sm:$0xff] %vm1161, %v4966
        %4999 = vst.msk [vmem:[#allocation3 + $0x30] sm:$0xff] %vm1161, %v4967
        %5000 = vst.msk [vmem:[#allocation3 + $0x38] sm:$0xff] %vm1161, %v4968
        %5001 = vst.msk [vmem:[#allocation3 + $0x40] sm:$0xff] %vm1161, %v4969
        %5002 = vst.msk [vmem:[#allocation3 + $0x48] sm:$0xff] %vm1161, %v4970
        %5003 = vst.msk [vmem:[#allocation3 + $0x50] sm:$0xff] %vm1161, %v4971
        %5004 = vst.msk [vmem:[#allocation3 + $0x58] sm:$0xff] %vm1161, %v4972
        %5005 = vst.msk [vmem:[#allocation3 + $0x60] sm:$0xff] %vm1161, %v4973
        %5006 = vst.msk [vmem:[#allocation3 + $0x68] sm:$0xff] %vm1161, %v4974
        %5007 = vst.msk [vmem:[#allocation3 + $0x70] sm:$0xff] %vm1161, %v4975
        %5008 = vst.msk [vmem:[#allocation3 + $0x78] sm:$0xff] %vm1161, %v4976
        %p5009 = scmp.eq.s32.totalorder %s37, 1
        // Predicated region
        $region105: #{tpu_custom_call.1} parent=99 // pred_check
          %p5010 = pneg %p5009
        $region106: #{tpu_custom_call.1} parent=99 // pred_check_branch
          %5012 = sbr.rel (%p5010) target = $region108
        $region107: #{tpu_custom_call.1} parent=99 // pred_region
          %v5013 = vadd.f32 %v4301, %v4304
          %v5014 = vadd.f32 %v5013, %v4307
          %v5015 = vadd.f32 %v5014, %v4310
          %v5016 = vadd.f32 %v5015, %v4313
          %v5017 = vadd.f32 %v5016, %v4316
          %v5018 = vadd.f32 %v5017, %v4319
          %v5019 = vadd.f32 %v5018, %v4322
          %v5020 = vrot.slane %v5019, 4
          %v5021 = vadd.f32 %v5019, %v5020
          %v5022 = vrot.slane %v5021, 2
          %v5023 = vadd.f32 %v5021, %v5022
          %v5024 = vrot.slane %v5023, 1
          %v5025 = vadd.f32 %v5023, %v5024
          %v5026 = vrcp.pop 64.0
          %v5027 = vmul.f32 %v5025, %v5026
          %v5028 = vsel %vm1161, %v4961, 0.0
          %v5029 = vsel %vm1161, %v4962, 0.0
          %v5030 = vadd.f32 %v5028, %v5029
          %v5031 = vsel %vm1161, %v4963, 0.0
          %v5032 = vadd.f32 %v5030, %v5031
          %v5033 = vsel %vm1161, %v4964, 0.0
          %v5034 = vadd.f32 %v5032, %v5033
          %v5035 = vsel %vm1161, %v4965, 0.0
          %v5036 = vadd.f32 %v5034, %v5035
          %v5037 = vsel %vm1161, %v4966, 0.0
          %v5038 = vadd.f32 %v5036, %v5037
          %v5039 = vsel %vm1161, %v4967, 0.0
          %v5040 = vadd.f32 %v5038, %v5039
          %v5041 = vsel %vm1161, %v4968, 0.0
          %v5042 = vadd.f32 %v5040, %v5041
          %v5043 = vrot.slane %v5042, 4
          %v5044 = vadd.f32 %v5042, %v5043
          %v5045 = vrot.slane %v5044, 2
          %v5046 = vadd.f32 %v5044, %v5045
          %v5047 = vrot.slane %v5046, 1
          %v5048 = vadd.f32 %v5046, %v5047
          %v5049 = vmul.f32 %v5048, %v5026
          %5051 = vrot.lane.b32.xlu0 %v5049, 32
          %v5052 = vpop.permute.xlu0 %5051
          %v5054 = vsel %vm1161, %v5027, %v5052
          %v5055 = vadd.f32 %v4325, %v4328
          %v5056 = vadd.f32 %v5055, %v4331
          %v5057 = vadd.f32 %v5056, %v4334
          %v5058 = vadd.f32 %v5057, %v4337
          %v5059 = vadd.f32 %v5058, %v4340
          %v5060 = vadd.f32 %v5059, %v4343
          %v5061 = vadd.f32 %v5060, %v4346
          %v5062 = vrot.slane %v5061, 4
          %v5063 = vadd.f32 %v5061, %v5062
          %v5064 = vrot.slane %v5063, 2
          %v5065 = vadd.f32 %v5063, %v5064
          %v5066 = vrot.slane %v5065, 1
          %v5067 = vadd.f32 %v5065, %v5066
          %v5068 = vmul.f32 %v5067, %v5026
          %v5069 = vsel %vm1161, %v4969, 0.0
          %v5070 = vsel %vm1161, %v4970, 0.0
          %v5071 = vadd.f32 %v5069, %v5070
          %v5072 = vsel %vm1161, %v4971, 0.0
          %v5073 = vadd.f32 %v5071, %v5072
          %v5074 = vsel %vm1161, %v4972, 0.0
          %v5075 = vadd.f32 %v5073, %v5074
          %v5076 = vsel %vm1161, %v4973, 0.0
          %v5077 = vadd.f32 %v5075, %v5076
          %v5078 = vsel %vm1161, %v4974, 0.0
          %v5079 = vadd.f32 %v5077, %v5078
          %v5080 = vsel %vm1161, %v4975, 0.0
          %v5081 = vadd.f32 %v5079, %v5080
          %v5082 = vsel %vm1161, %v4976, 0.0
          %v5083 = vadd.f32 %v5081, %v5082
          %v5084 = vrot.slane %v5083, 4
          %v5085 = vadd.f32 %v5083, %v5084
          %v5086 = vrot.slane %v5085, 2
          %v5087 = vadd.f32 %v5085, %v5086
          %v5088 = vrot.slane %v5087, 1
          %v5089 = vadd.f32 %v5087, %v5088
          %v5090 = vmul.f32 %v5089, %v5026
          %5092 = vrot.lane.b32.xlu0 %v5090, 32
          %v5093 = vpop.permute.xlu0 %5092
          %v5095 = vsel %vm1161, %v5068, %v5093
          %v5097 = vrot.slane %v5095, 7
          %vm5099 = vcmask 1040384
          %v5100 = vsel %vm5099, %v5054, %v5097
          %v5101 = vld [vmem:[%s16] sm:$0x1]
          %v5102 = vld [vmem:[%s17] sm:$0x1]
          %vm5103 = vcmask 517120
          %v5104 = vsel %vm5103, %v5100, 0.0
          %5105 = vadd.xlane.f32.xlu0 %v5104
          %v5106 = vpop.xlane.xlu0 %5105
          %v5107 = vmul.f32 %v5106, %v5026
          %v5108 = vsub.f32 %v5100, %v5107
          %v5109 = vmul.f32 %v5108, %v5108
          %v5110 = vsel %vm5103, %v5109, 0.0
          %5111 = vadd.xlane.f32.xlu0 %v5110
          %v5112 = vpop.xlane.xlu0 %5111
          %v5113 = vmul.f32 %v5112, %v5026
          %v5114 = vadd.f32 %v5113, 1e-05
          %v5115 = vrsqrt.pop %v5114
          %v5116 = vmul.f32 %v5108, %v5115
          %v5118 = vlaneseq
          %v5119 = vshrl.u32 %v5118, 7
          %v5120 = vsub.s32 0, %v5119
          %v5121 = vrot.slane %v5101, %v5120
          %v5123 = vmul.f32 %v5116, %v5121
          %v5125 = vlaneseq
          %v5126 = vshrl.u32 %v5125, 7
          %v5127 = vsub.s32 0, %v5126
          %v5128 = vrot.slane %v5102, %v5127
          %v5130 = vadd.f32 %v5123, %v5128
          %v5131 = vpack.c.bf16 %v5130, %v5130
          %v5132 = vld [vmem:[%s18] sm:$0xf]
          %v5133 = vld [vmem:[%s18 + $0x4] sm:$0xf]
          %v5134 = vld [vmem:[%s18 + $0x8] sm:$0xf]
          %v5135 = vld [vmem:[%s18 + $0xc] sm:$0xf]
          %v5136 = vld [vmem:[%s18 + $0x10] sm:$0xf]
          %v5137 = vld [vmem:[%s18 + $0x14] sm:$0xf]
          %v5138 = vld [vmem:[%s18 + $0x18] sm:$0xf]
          %v5139 = vld [vmem:[%s18 + $0x1c] sm:$0xf]
          %v5140 = vld [vmem:[%s19] sm:$0x1]
          %v5142 = vlaneseq
          %v5143 = vshrl.u32 %v5142, 7
          %v5144 = vsub.s32 0, %v5143
          %v5145 = vrot.slane %v5140, %v5144
          %v5155 = vunpack.c.l.b16 %v5132
          %v5156 = vunpack.c.l.b16 %v5133
          %v5157 = vunpack.c.l.b16 %v5134
          %v5158 = vunpack.c.l.b16 %v5135
          %v5159 = vunpack.c.l.b16 %v5136
          %v5160 = vunpack.c.l.b16 %v5137
          %v5161 = vunpack.c.l.b16 %v5138
          %v5162 = vunpack.c.l.b16 %v5139
          %v5163 = vpack.c.b16 %v5156, %v5155
          %v5164 = vpack.c.b16 %v5158, %v5157
          %v5165 = vpack.c.b16 %v5160, %v5159
          %v5166 = vpack.c.b16 %v5162, %v5161
          %v5172 = vsel %vm1685, %v5131, 0
          %5174 = vmatprep.subr.bf16.mxu0 0
          %5175 = vmatpush1.bf16.msra.mxu0 %v5163
          %5176 = vmatprep.subr.bf16.mxu0 0
          %5177 = vmatpush1.bf16.msra.mxu0 %v5164
          %5178 = vmatprep.subr.bf16.mxu0 0
          %5179 = vmatpush1.bf16.msra.mxu0 %v5165
          %5180 = vmatprep.subr.bf16.mxu0 0
          %5181 = vmatpush1.bf16.msra.mxu0 %v5166
          %5182 = vmatprep.subr.bf16.mxu0 0
          %5183 = vmatpush1.bf16.msra.mxu0 0
          %5184 = vmatprep.subr.bf16.mxu0 0
          %5185 = vmatpush1.bf16.msra.mxu0 0
          %5186 = vmatprep.subr.bf16.mxu0 0
          %5187 = vmatpush1.bf16.msra.mxu0 0
          %5188 = vmatprep.subr.bf16.mxu0 0
          %5189 = vmatpush1.bf16.msra.mxu0 0
          %5190 = vmatprep.subr.bf16.mxu0 0
          %5191 = vmatpush1.bf16.msra.mxu0 0
          %5192 = vmatprep.subr.bf16.mxu0 0
          %5193 = vmatpush1.bf16.msra.mxu0 0
          %5194 = vmatprep.subr.bf16.mxu0 0
          %5195 = vmatpush1.bf16.msra.mxu0 0
          %5196 = vmatprep.subr.bf16.mxu0 0
          %5197 = vmatpush1.bf16.msra.mxu0 0
          %5198 = vmatprep.subr.bf16.mxu0 0
          %5199 = vmatpush1.bf16.msra.mxu0 0
          %5200 = vmatprep.subr.bf16.mxu0 0
          %5201 = vmatpush1.bf16.msra.mxu0 0
          %5202 = vmatprep.subr.bf16.mxu0 0
          %5203 = vmatpush1.bf16.msra.mxu0 0
          %5204 = vmatprep.subr.bf16.mxu0 0
          %5205 = vmatpush1.bf16.msra.mxu0 0
          %5206 = vmatprep.mubr.bf16.mxu0 0
          %5207 = vmatmul.mubr.bf16.gmra.mrb[0].mxu0 %v5172
          %v5208 = vpop.f32.mrb[0].mxu0
          %v5209 = vadd.f32 %v5145, %v5208
          %v5210 = vpop.f32.mrb[0].mxu0
          %v5211 = vpop.f32.mrb[0].mxu0
          %v5212 = vpop.f32.mrb[0].mxu0
          %5213 = vdwg.mxu0
          %vm5214 = vcmask 74752
          %5215 = vst.msk [vmem:[#allocation4] sm:$0x3] %vm5214, %v5209
        $region108: #{tpu_custom_call.1} parent=99 // pred_fallthru
          _
        // Predicated region
        $region109: #{tpu_custom_call.1} parent=99 // pred_check
          %p5216 = pneg %p547
        $region110: #{tpu_custom_call.1} parent=99 // pred_check_branch
          %5218 = sbr.rel (%p5216) target = $region112
        $region111: #{tpu_custom_call.1} parent=99 // pred_region
          %s5220 = ssub.s32 32, 32
          %5221 = vsyncadd [#allocation5], %s5220
          %s5222 = smul.addr %s36, 32
          %s5223 = scalar_lea.hbm %s20, %s5222
          %s5225 = sshll.u32 [#allocation4], 4
          %s5226 = int_to_ptr.vmem [resolvable:$true] %s5225
          %5228 = dma.vmem_to_hbm [thread:$0]  %s5226, 32, %s5223, [#allocation5]
        $region112: #{tpu_custom_call.1} parent=99 // pred_fallthru
          _
        // Predicated region
        $region113: #{tpu_custom_call.1} parent=99 // pred_check
          %p5229 = pneg %p547
        $region114: #{tpu_custom_call.1} parent=99 // pred_check_branch
          %5231 = sbr.rel (%p5229) target = $region116
        $region115: #{tpu_custom_call.1} parent=99 // pred_region
          %5232 = dma.done [#allocation5], 32
        $region116: #{tpu_custom_call.1} parent=99 // pred_fallthru
          _
      $region100: #{tpu_custom_call.1} parent=5 // pred_fallthru
        _
      %p5233 = scmp.le.s32.totalorder 2, %s27
      // Predicated region
      $region117: #{tpu_custom_call.1} parent=5 // pred_check
        %p5234 = pneg %p5233
      $region118: #{tpu_custom_call.1} parent=5 // pred_check_branch
        %5236 = sbr.rel (%p5234) target = $region120
      $region119: #{tpu_custom_call.1} parent=5 // pred_region
        %s5237 = ssub.s32 %s27, 2
      $region120: #{tpu_custom_call.1} parent=5 // pred_fallthru
        _
    $region6: #{tpu_custom_call.1} parent=1 // loop_footer
      %s31 = sadd.s32 1, %s27
    $region7: #{tpu_custom_call.1} parent=1 // loop_footer_branch
      %26 = sbr.rel target = $region3
    $region8: #{tpu_custom_call.1} parent=1 // loop_exit
      _
    %5238 = vsyncpa [#allocation5], 1
    %s5239 = scalar_lea.sflag [#allocation5], 1
    %5240 = vsyncpa %s5239, 1

</llo_original>
